<compile_context>
chip_gen: v5e
topology: v5e:2x2
jax: 0.10.0
libtpu: 0.0.40
codegen_flags: <defaults>
</compile_context>

<pallas_src>
import functools

import jax
import jax.numpy as jnp
from jax import lax
from jax.experimental import pallas as pl
from jax.experimental.pallas import tpu as pltpu

LANE = 128          # TPU lane width; channels are padded to a multiple of this
_COL_HALO = 8       # aligned zero-column halo used to stage the activation


# ----------------------------------------------------------------------------
# Fused kernel for one (image, row-tile) grid step.
#
# x_ref  : (TH+4, Wp+2, Cin_p)   bf16  zero-padded input rows (2-row halo each
#                                      side for the fused 5x5 receptive field,
#                                      1 zero column left/right)
# w1_ref : (3, 3*Cin_p, Cmid_p)  bf16  conv1 weights, kw folded into K, BN1
#                                      scale folded in
# t1_ref : (1, Cmid_p)           f32   conv1 bias+BN1 shift
# w2_ref : (3, 3*Cmid_p, Cout_p) bf16  conv2 weights (BN2 scale folded in)
# t2_ref : (1, Cout_p)           f32   conv2 bias+BN2 shift
# o_ref  : (TH, Wp, Cout_p)      f32   output rows (lane-dense store)
# xw_ref : (TH+4, Wp, 3*Cin_p)   bf16  scratch: W-direction im2col of input
# act_ref: (TH+2, Wp+16, Cmid_p) f32   scratch: layer-1 act with aligned halo
# aw_ref : (TH+2, Wp, 3*Cmid_p)  bf16  scratch: W-direction im2col of act
# ----------------------------------------------------------------------------
def _conv_block_kernel(x_ref, w1_ref, t1_ref, w2_ref, t2_ref, o_ref,
                       xw_ref, act_ref, aw_ref, *, w_valid):
    TH, Wp, Cout_p = o_ref.shape
    R = TH + 2                      # layer-1 act rows incl. 1-row halo each side
    Cin_p = x_ref.shape[-1]
    Cmid_p = t1_ref.shape[-1]
    H8 = _COL_HALO

    # ---- W-direction im2col of the input block: done once, reused by 3 kh ----
    x32 = x_ref[...].astype(jnp.float32)                     # (TH+4, Wp+2, Cin_p)
    for kw in range(3):                                      # lane-aligned stores
        xw_ref[:, :, kw * Cin_p:(kw + 1) * Cin_p] = (
            x32[:, kw:kw + Wp, :].astype(jnp.bfloat16))

    # ---- layer 1: 3 MXU matmuls (one per kh), K = 3*Cin_p ----
    acc1 = jnp.zeros((R * Wp, Cmid_p), jnp.float32)
    for kh in range(3):
        p = xw_ref[kh:kh + R].reshape(R * Wp, 3 * Cin_p)     # major-axis slice
        acc1 = acc1 + jnp.dot(p, w1_ref[kh],
                              preferred_element_type=jnp.float32)
    a1 = jnp.maximum(acc1 + t1_ref[...], 0.0).reshape(R, Wp, Cmid_p)

    # Zero activations that lie outside the real image: they act as the zero
    # "same" padding of the second conv (width padding columns, and the 1-row
    # halo at the first / last row-tile of each image).
    col = lax.broadcasted_iota(jnp.int32, (1, Wp, 1), 1)
    row = lax.broadcasted_iota(jnp.int32, (R, 1, 1), 0)
    t = pl.program_id(1)
    pad = col >= w_valid
    pad = jnp.logical_or(pad, jnp.logical_and(t == 0, row == 0))
    pad = jnp.logical_or(pad, jnp.logical_and(t == pl.num_programs(1) - 1,
                                              row == R - 1))
    a1 = jnp.where(pad, 0.0, a1)

    # ---- stage the activation with an aligned 8-column zero halo, then build
    #      its W-direction im2col (the halo supplies layer-2's zero padding) ---
    act_ref[:, 0:H8, :] = jnp.zeros((R, H8, Cmid_p), jnp.float32)
    act_ref[:, H8:H8 + Wp, :] = a1
    act_ref[:, H8 + Wp:H8 + Wp + H8, :] = jnp.zeros((R, H8, Cmid_p), jnp.float32)
    actv = act_ref[...]                                      # (R, Wp+16, Cmid_p)
    for kw in range(3):
        aw_ref[:, :, kw * Cmid_p:(kw + 1) * Cmid_p] = (
            actv[:, H8 - 1 + kw:H8 - 1 + kw + Wp, :].astype(jnp.bfloat16))

    # ---- layer 2: 3 MXU matmuls (one per kh), K = 3*Cmid_p ----
    acc2 = jnp.zeros((TH * Wp, Cout_p), jnp.float32)
    for kh in range(3):
        p = aw_ref[kh:kh + TH].reshape(TH * Wp, 3 * Cmid_p)
        acc2 = acc2 + jnp.dot(p, w2_ref[kh],
                              preferred_element_type=jnp.float32)
    y = jnp.maximum(acc2 + t2_ref[...], 0.0)
    o_ref[...] = y.reshape(TH, Wp, Cout_p).astype(o_ref.dtype)


# ----------------------------------------------------------------------------
# Wrapper helpers.
# ----------------------------------------------------------------------------
def _round_up(x, m):
    return (x + m - 1) // m * m


def _pick_block_h(h, target):
    th = max(1, min(int(target), h))
    while h % th:
        th -= 1
    return th


def _fold_bn(w_oihw, bias, gamma, beta, mean, var, eps):
    """Fold eval-mode BatchNorm into the conv: weights absorb the scale."""
    scale = gamma / jnp.sqrt(var + eps)                      # (Cout,)
    w_hwio = jnp.transpose(w_oihw, (2, 3, 1, 0)) * scale     # OIHW -> HWIO, scaled
    shift = (bias - mean) * scale + beta                     # per-channel shift
    return w_hwio, shift


def _prep_layer(w_hwio, shift, cin_p, cout_p):
    """Zero-pad channels to lane multiples; reshape to (3, 3*cin_p, cout_p) bf16."""
    _, _, cin, cout = w_hwio.shape
    w = jnp.zeros((3, 3, cin_p, cout_p), jnp.float32)
    w = w.at[:, :, :cin, :cout].set(w_hwio)
    w = w.reshape(3, 3 * cin_p, cout_p).astype(jnp.bfloat16)
    t = jnp.zeros((1, cout_p), jnp.float32).at[0, :cout].set(shift)
    return w, t


@functools.partial(jax.jit, static_argnames=("block_h",))
def conv_block_forward(x_nchw, params, block_h=8):
    """Fused Pallas forward pass. Input/output are NCHW (PyTorch convention)."""
    eps = params["eps"]
    x = jnp.transpose(x_nchw, (0, 2, 3, 1)).astype(jnp.float32)   # NCHW -> NHWC
    N, H, W, Cin = x.shape
    Cmid = params["w1"].shape[0]
    Cout = params["w2"].shape[0]

    Cin_p = _round_up(Cin, LANE)
    Cmid_p = _round_up(Cmid, LANE)
    Cout_p = _round_up(Cout, LANE)
    Wp = _round_up(W, 16)           # keep every W-axis reshape/store aligned

    w1, s1 = _fold_bn(params["w1"], params["b1"], params["bn1_gamma"],
                      params["bn1_beta"], params["bn1_mean"],
                      params["bn1_var"], eps)
    w2, s2 = _fold_bn(params["w2"], params["b2"], params["bn2_gamma"],
                      params["bn2_beta"], params["bn2_mean"],
                      params["bn2_var"], eps)
    w1p, t1p = _prep_layer(w1, s1, Cin_p, Cmid_p)
    w2p, t2p = _prep_layer(w2, s2, Cmid_p, Cout_p)

    TH = _pick_block_h(H, block_h)
    nt = H // TH

    # Channel-padded, zero-haloed bf16 input (2 rows top/bottom for the fused
    # two-layer receptive field, 1 column left/right).
    xp = jnp.zeros((N, H + 4, Wp + 2, Cin_p), jnp.bfloat16)
    xp = xp.at[:, 2:H + 2, 1:W + 1, :Cin].set(x.astype(jnp.bfloat16))
    # Overlapping row tiles (2-row halo each side) so every grid step is
    # independent and both grid axes can be "parallel".
    rows = jnp.arange(nt)[:, None] * TH + jnp.arange(TH + 4)[None, :]
    xt = xp[:, rows]                                 # (N, nt, TH+4, Wp+2, Cin_p)

    # Scoped-VMEM budget from the actual (double-buffered) footprint.
    blk_in = (TH + 4) * (Wp + 2) * Cin_p * 2
    blk_out = TH * Wp * Cout_p * 4
    wgt = 3 * 3 * (Cin_p * Cmid_p + Cmid_p * Cout_p) * 2
    scratch = ((TH + 4) * Wp * 3 * Cin_p * 2
               + (TH + 2) * (Wp + 2 * _COL_HALO) * Cmid_p * 4
               + (TH + 2) * Wp * 3 * Cmid_p * 2)
    vmem_bytes = int(min(max(4 * (2 * (blk_in + blk_out + wgt) + scratch),
                             32 * 2**20), 64 * 2**20))

    out = pl.pallas_call(
        functools.partial(_conv_block_kernel, w_valid=W),
        out_shape=jax.ShapeDtypeStruct((N, H, Wp, Cout_p), jnp.float32),
        grid=(N, nt),
        in_specs=[
            pl.BlockSpec((None, None, TH + 4, Wp + 2, Cin_p),
                         lambda n, t: (n, t, 0, 0, 0)),
            pl.BlockSpec((3, 3 * Cin_p, Cmid_p), lambda n, t: (0, 0, 0)),
            pl.BlockSpec((1, Cmid_p), lambda n, t: (0, 0)),
            pl.BlockSpec((3, 3 * Cmid_p, Cout_p), lambda n, t: (0, 0, 0)),
            pl.BlockSpec((1, Cout_p), lambda n, t: (0, 0)),
        ],
        out_specs=pl.BlockSpec((None, TH, Wp, Cout_p),
                               lambda n, t: (n, t, 0, 0)),
        scratch_shapes=[
            pltpu.VMEM((TH + 4, Wp, 3 * Cin_p), jnp.bfloat16),
            pltpu.VMEM((TH + 2, Wp + 2 * _COL_HALO, Cmid_p), jnp.float32),
            pltpu.VMEM((TH + 2, Wp, 3 * Cmid_p), jnp.bfloat16),
        ],
        compiler_params=pltpu.CompilerParams(
            dimension_semantics=("parallel", "parallel"),
            vmem_limit_bytes=vmem_bytes),
    )(xt, w1p, t1p, w2p, t2p)

    out = out[:, :, :W, :Cout]                       # drop lane/width padding
    return jnp.transpose(out, (0, 3, 1, 2))          # NHWC -> NCHW


# ----------------------------------------------------------------------------
# Parameter construction (deterministic, synthetic).
# ----------------------------------------------------------------------------
def init_conv_block_params(key, in_c, out_c, eps=1e-5):
    ks = jax.random.split(key, 10)
    p = {}
    p["w1"] = 0.1 * jax.random.normal(ks[0], (out_c, in_c, 3, 3), jnp.float32)
    p["b1"] = 0.1 * jax.random.normal(ks[1], (out_c,), jnp.float32)
    p["bn1_gamma"] = 1.0 + 0.1 * jax.random.normal(ks[2], (out_c,), jnp.float32)
    p["bn1_beta"] = 0.1 * jax.random.normal(ks[3], (out_c,), jnp.float32)
    p["bn1_mean"] = 0.1 * jax.random.normal(ks[4], (out_c,), jnp.float32)
    p["bn1_var"] = jnp.abs(jax.random.normal(ks[5], (out_c,), jnp.float32)) + 0.5
    p["w2"] = 0.1 * jax.random.normal(ks[6], (out_c, out_c, 3, 3), jnp.float32)
    p["b2"] = 0.1 * jax.random.normal(ks[7], (out_c,), jnp.float32)
    p["bn2_gamma"] = 1.0 + 0.1 * jax.random.normal(ks[8], (out_c,), jnp.float32)
    p["bn2_beta"] = 0.1 * jax.random.normal(ks[9], (out_c,), jnp.float32)
    p["bn2_mean"] = jnp.zeros((out_c,), jnp.float32)
    p["bn2_var"] = jnp.ones((out_c,), jnp.float32)
    p["eps"] = eps
    return p


# ----------------------------------------------------------------------------
# Plain-JAX reference (mirrors the PyTorch module in eval mode).
# ----------------------------------------------------------------------------
def conv_block_reference(x_nchw, params):
    eps = params["eps"]

    def layer(x, w, b, g, beta, mean, var):
        y = lax.conv_general_dilated(
            x, w, window_strides=(1, 1), padding=((1, 1), (1, 1)),
            dimension_numbers=("NCHW", "OIHW", "NCHW"))
        y = y + b[None, :, None, None]
        y = (y - mean[None, :, None, None]) / jnp.sqrt(
            var[None, :, None, None] + eps)
        y = y * g[None, :, None, None] + beta[None, :, None, None]
        return jnp.maximum(y, 0.0)

    x = layer(x_nchw, params["w1"], params["b1"], params["bn1_gamma"],
              params["bn1_beta"], params["bn1_mean"], params["bn1_var"])
    x = layer(x, params["w2"], params["b2"], params["bn2_gamma"],
              params["bn2_beta"], params["bn2_mean"], params["bn2_var"])
    return x


if __name__ == "__main__":
    key = jax.random.PRNGKey(0)
    k_x, k_p = jax.random.split(key)

    N, in_c, out_c, H, W = 2, 4, 8, 16, 16
    x = jax.random.normal(k_x, (N, in_c, H, W), jnp.float32)
    params = init_conv_block_params(k_p, in_c, out_c)

    out = conv_block_forward(x, params)
    out = jax.block_until_ready(out)

    ref = conv_block_reference(x, params)
    assert out.shape == (N, out_c, H, W), out.shape
    # bf16 activations/weights with f32 accumulation -> ~1e-2 level agreement.
    max_err = float(jnp.max(jnp.abs(out - ref)))
    assert jnp.allclose(out, ref, atol=5e-2, rtol=5e-2), max_err

    print("KERNEL_OK")
</pallas_src>

<mosaic_0001>
module attributes {stable_mosaic.version = 11 : i64} {
  func.func @_conv_block_kernel(%arg0: i32, %arg1: i32, %arg2: memref<1x1x12x18x128xbf16, #tpu.memory_space<vmem>>, %arg3: memref<3x384x128xbf16, #tpu.memory_space<vmem>>, %arg4: memref<1x128xf32, #tpu.memory_space<vmem>>, %arg5: memref<3x384x128xbf16, #tpu.memory_space<vmem>>, %arg6: memref<1x128xf32, #tpu.memory_space<vmem>>, %arg7: memref<1x8x16x128xf32, #tpu.memory_space<vmem>>, %arg8: memref<12x16x384xbf16, #tpu.memory_space<vmem>>, %arg9: memref<10x32x128xf32, #tpu.memory_space<vmem>>, %arg10: memref<10x16x384xbf16, #tpu.memory_space<vmem>>) attributes {dimension_semantics = [#tpu.dimension_semantics<parallel>, #tpu.dimension_semantics<parallel>], iteration_bounds = array<i64: 2, 2>, scalar_prefetch = 0 : i64, scratch_operands = 3 : i64, tpu.core_type = #tpu.core_type<tc>, window_params = [{transform_indices = @transform_0, window_bounds = array<i64: 1, 1, 12, 18, 128>}, {pipeline_mode = #tpu.pipeline_mode<synchronous>, transform_indices = @transform_1, window_bounds = array<i64: 3, 384, 128>}, {pipeline_mode = #tpu.pipeline_mode<synchronous>, transform_indices = @transform_2, window_bounds = array<i64: 1, 128>}, {pipeline_mode = #tpu.pipeline_mode<synchronous>, transform_indices = @transform_3, window_bounds = array<i64: 3, 384, 128>}, {pipeline_mode = #tpu.pipeline_mode<synchronous>, transform_indices = @transform_4, window_bounds = array<i64: 1, 128>}, {transform_indices = @transform_5, window_bounds = array<i64: 1, 8, 16, 128>}]} {
    %c0 = arith.constant 0 : index
    %c0_0 = arith.constant 0 : index
    %c0_1 = arith.constant 0 : index
    %c0_2 = arith.constant 0 : index
    %c0_3 = arith.constant 0 : index
    %0 = vector.load %arg2[%c0, %c0_0, %c0_1, %c0_2, %c0_3] : memref<1x1x12x18x128xbf16, #tpu.memory_space<vmem>>, vector<1x1x12x18x128xbf16>
    %1 = vector.shape_cast %0 : vector<1x1x12x18x128xbf16> to vector<12x18x128xbf16>
    %2 = arith.extf %1 : vector<12x18x128xbf16> to vector<12x18x128xf32>
    %3 = vector.extract_strided_slice %2 {offsets = [0, 0, 0], sizes = [12, 16, 128], strides = [1, 1, 1]} : vector<12x18x128xf32> to vector<12x16x128xf32>
    %4 = arith.truncf %3 : vector<12x16x128xf32> to vector<12x16x128xbf16>
    %c0_4 = arith.constant 0 : index
    %c0_5 = arith.constant 0 : index
    %c0_6 = arith.constant 0 : index
    %5 = vector.load %arg8[%c0_4, %c0_5, %c0_6] : memref<12x16x384xbf16, #tpu.memory_space<vmem>>, vector<12x16x128xbf16>
    tpu.vector_store %arg8[%c0_4, %c0_5, %c0_6], %4 {strides = array<i32>} : memref<12x16x384xbf16, #tpu.memory_space<vmem>>, vector<12x16x128xbf16>,
    %6 = vector.extract_strided_slice %2 {offsets = [0, 1, 0], sizes = [12, 16, 128], strides = [1, 1, 1]} : vector<12x18x128xf32> to vector<12x16x128xf32>
    %7 = arith.truncf %6 : vector<12x16x128xf32> to vector<12x16x128xbf16>
    %c0_7 = arith.constant 0 : index
    %c0_8 = arith.constant 0 : index
    %c128 = arith.constant 128 : index
    %8 = vector.load %arg8[%c0_7, %c0_8, %c128] : memref<12x16x384xbf16, #tpu.memory_space<vmem>>, vector<12x16x128xbf16>
    tpu.vector_store %arg8[%c0_7, %c0_8, %c128], %7 {strides = array<i32>} : memref<12x16x384xbf16, #tpu.memory_space<vmem>>, vector<12x16x128xbf16>,
    %9 = vector.extract_strided_slice %2 {offsets = [0, 2, 0], sizes = [12, 16, 128], strides = [1, 1, 1]} : vector<12x18x128xf32> to vector<12x16x128xf32>
    %10 = arith.truncf %9 : vector<12x16x128xf32> to vector<12x16x128xbf16>
    %c0_9 = arith.constant 0 : index
    %c0_10 = arith.constant 0 : index
    %c256 = arith.constant 256 : index
    %11 = vector.load %arg8[%c0_9, %c0_10, %c256] : memref<12x16x384xbf16, #tpu.memory_space<vmem>>, vector<12x16x128xbf16>
    tpu.vector_store %arg8[%c0_9, %c0_10, %c256], %10 {strides = array<i32>} : memref<12x16x384xbf16, #tpu.memory_space<vmem>>, vector<12x16x128xbf16>,
    %cst = arith.constant 0.000000e+00 : f32
    %12 = vector.broadcast %cst : f32 to vector<160x128xf32>
    %c0_11 = arith.constant 0 : index
    %c0_12 = arith.constant 0 : index
    %c0_13 = arith.constant 0 : index
    %13 = vector.load %arg8[%c0_11, %c0_12, %c0_13] : memref<12x16x384xbf16, #tpu.memory_space<vmem>>, vector<10x16x384xbf16>
    %14 = vector.shape_cast %13 : vector<10x16x384xbf16> to vector<160x384xbf16>
    %c0_14 = arith.constant 0 : index
    %c0_15 = arith.constant 0 : index
    %c0_16 = arith.constant 0 : index
    %15 = vector.load %arg3[%c0_14, %c0_15, %c0_16] : memref<3x384x128xbf16, #tpu.memory_space<vmem>>, vector<1x384x128xbf16>
    %16 = vector.shape_cast %15 : vector<1x384x128xbf16> to vector<384x128xbf16>
    %cst_17 = arith.constant dense<0.000000e+00> : vector<160x128xf32>
    %17 = tpu.matmul %14, %16, %cst_17 {dimension_numbers = #tpu.dot_dimension_numbers<[1], [0], [0], [1], [0, 0, 1, 1], [], []>} : vector<160x384xbf16>, vector<384x128xbf16>, vector<160x128xf32> -> vector<160x128xf32>
    %18 = arith.addf %12, %17 : vector<160x128xf32>
    %c1 = arith.constant 1 : index
    %c0_18 = arith.constant 0 : index
    %c0_19 = arith.constant 0 : index
    %19 = vector.load %arg8[%c1, %c0_18, %c0_19] : memref<12x16x384xbf16, #tpu.memory_space<vmem>>, vector<10x16x384xbf16>
    %20 = vector.shape_cast %19 : vector<10x16x384xbf16> to vector<160x384xbf16>
    %c1_20 = arith.constant 1 : index
    %c0_21 = arith.constant 0 : index
    %c0_22 = arith.constant 0 : index
    %21 = vector.load %arg3[%c1_20, %c0_21, %c0_22] : memref<3x384x128xbf16, #tpu.memory_space<vmem>>, vector<1x384x128xbf16>
    %22 = vector.shape_cast %21 : vector<1x384x128xbf16> to vector<384x128xbf16>
    %cst_23 = arith.constant dense<0.000000e+00> : vector<160x128xf32>
    %23 = tpu.matmul %20, %22, %cst_23 {dimension_numbers = #tpu.dot_dimension_numbers<[1], [0], [0], [1], [0, 0, 1, 1], [], []>} : vector<160x384xbf16>, vector<384x128xbf16>, vector<160x128xf32> -> vector<160x128xf32>
    %24 = arith.addf %18, %23 : vector<160x128xf32>
    %c2 = arith.constant 2 : index
    %c0_24 = arith.constant 0 : index
    %c0_25 = arith.constant 0 : index
    %25 = vector.load %arg8[%c2, %c0_24, %c0_25] : memref<12x16x384xbf16, #tpu.memory_space<vmem>>, vector<10x16x384xbf16>
    %26 = vector.shape_cast %25 : vector<10x16x384xbf16> to vector<160x384xbf16>
    %c2_26 = arith.constant 2 : index
    %c0_27 = arith.constant 0 : index
    %c0_28 = arith.constant 0 : index
    %27 = vector.load %arg3[%c2_26, %c0_27, %c0_28] : memref<3x384x128xbf16, #tpu.memory_space<vmem>>, vector<1x384x128xbf16>
    %28 = vector.shape_cast %27 : vector<1x384x128xbf16> to vector<384x128xbf16>
    %cst_29 = arith.constant dense<0.000000e+00> : vector<160x128xf32>
    %29 = tpu.matmul %26, %28, %cst_29 {dimension_numbers = #tpu.dot_dimension_numbers<[1], [0], [0], [1], [0, 0, 1, 1], [], []>} : vector<160x384xbf16>, vector<384x128xbf16>, vector<160x128xf32> -> vector<160x128xf32>
    %30 = arith.addf %24, %29 : vector<160x128xf32>
    %c0_30 = arith.constant 0 : index
    %c0_31 = arith.constant 0 : index
    %31 = vector.load %arg4[%c0_30, %c0_31] : memref<1x128xf32, #tpu.memory_space<vmem>>, vector<1x128xf32>
    %32 = vector.broadcast %31 : vector<1x128xf32> to vector<160x128xf32>
    %33 = arith.addf %30, %32 : vector<160x128xf32>
    %cst_32 = arith.constant 0.000000e+00 : f32
    %34 = vector.broadcast %cst_32 : f32 to vector<160x128xf32>
    %35 = arith.maximumf %33, %34 : vector<160x128xf32>
    %36 = vector.shape_cast %35 : vector<160x128xf32> to vector<10x16x128xf32>
    %37 = tpu.iota {dimensions = array<i32: 1>} : vector<1x16x1xi32>
    %38 = tpu.iota {dimensions = array<i32: 0>} : vector<10x1x1xi32>
    %c16_i32 = arith.constant 16 : i32
    %39 = vector.broadcast %c16_i32 : i32 to vector<1x16x1xi32>
    %40 = arith.cmpi sge, %37, %39 : vector<1x16x1xi32>
    %c0_i32 = arith.constant 0 : i32
    %41 = arith.cmpi eq, %arg1, %c0_i32 : i32
    %c0_i32_33 = arith.constant 0 : i32
    %42 = vector.broadcast %c0_i32_33 : i32 to vector<10x1x1xi32>
    %43 = arith.cmpi eq, %38, %42 : vector<10x1x1xi32>
    %44 = vector.broadcast %41 : i1 to vector<10x1x1xi1>
    %45 = arith.andi %44, %43 : vector<10x1x1xi1>
    %46 = vector.broadcast %40 : vector<1x16x1xi1> to vector<10x16x1xi1>
    %47 = vector.broadcast %45 : vector<10x1x1xi1> to vector<10x16x1xi1>
    %48 = arith.ori %46, %47 : vector<10x16x1xi1>
    %c1_i32 = arith.constant 1 : i32
    %49 = arith.cmpi eq, %arg1, %c1_i32 : i32
    %c9_i32 = arith.constant 9 : i32
    %50 = vector.broadcast %c9_i32 : i32 to vector<10x1x1xi32>
    %51 = arith.cmpi eq, %38, %50 : vector<10x1x1xi32>
    %52 = vector.broadcast %49 : i1 to vector<10x1x1xi1>
    %53 = arith.andi %52, %51 : vector<10x1x1xi1>
    %54 = vector.broadcast %53 : vector<10x1x1xi1> to vector<10x16x1xi1>
    %55 = arith.ori %48, %54 : vector<10x16x1xi1>
    %cst_34 = arith.constant 0.000000e+00 : f32
    %56 = vector.shape_cast %55 : vector<10x16x1xi1> to vector<10x16x1xi1>
    %57 = vector.broadcast %56 : vector<10x16x1xi1> to vector<10x16x128xi1>
    %58 = vector.broadcast %cst_34 : f32 to vector<10x16x128xf32>
    %59 = arith.select %57, %58, %36 : vector<10x16x128xi1>, vector<10x16x128xf32>
    %cst_35 = arith.constant 0.000000e+00 : f32
    %60 = vector.broadcast %cst_35 : f32 to vector<10x8x128xf32>
    %c0_36 = arith.constant 0 : index
    %c0_37 = arith.constant 0 : index
    %c0_38 = arith.constant 0 : index
    %61 = vector.load %arg9[%c0_36, %c0_37, %c0_38] : memref<10x32x128xf32, #tpu.memory_space<vmem>>, vector<10x8x128xf32>
    tpu.vector_store %arg9[%c0_36, %c0_37, %c0_38], %60 {strides = array<i32>} : memref<10x32x128xf32, #tpu.memory_space<vmem>>, vector<10x8x128xf32>,
    %c0_39 = arith.constant 0 : index
    %c8 = arith.constant 8 : index
    %c0_40 = arith.constant 0 : index
    %62 = vector.load %arg9[%c0_39, %c8, %c0_40] : memref<10x32x128xf32, #tpu.memory_space<vmem>>, vector<10x16x128xf32>
    tpu.vector_store %arg9[%c0_39, %c8, %c0_40], %59 {strides = array<i32>} : memref<10x32x128xf32, #tpu.memory_space<vmem>>, vector<10x16x128xf32>,
    %cst_41 = arith.constant 0.000000e+00 : f32
    %63 = vector.broadcast %cst_41 : f32 to vector<10x8x128xf32>
    %c0_42 = arith.constant 0 : index
    %c24 = arith.constant 24 : index
    %c0_43 = arith.constant 0 : index
    %64 = vector.load %arg9[%c0_42, %c24, %c0_43] : memref<10x32x128xf32, #tpu.memory_space<vmem>>, vector<10x8x128xf32>
    tpu.vector_store %arg9[%c0_42, %c24, %c0_43], %63 {strides = array<i32>} : memref<10x32x128xf32, #tpu.memory_space<vmem>>, vector<10x8x128xf32>,
    %c0_44 = arith.constant 0 : index
    %c0_45 = arith.constant 0 : index
    %c0_46 = arith.constant 0 : index
    %65 = vector.load %arg9[%c0_44, %c0_45, %c0_46] : memref<10x32x128xf32, #tpu.memory_space<vmem>>, vector<10x32x128xf32>
    %66 = vector.extract_strided_slice %65 {offsets = [0, 7, 0], sizes = [10, 16, 128], strides = [1, 1, 1]} : vector<10x32x128xf32> to vector<10x16x128xf32>
    %67 = arith.truncf %66 : vector<10x16x128xf32> to vector<10x16x128xbf16>
    %c0_47 = arith.constant 0 : index
    %c0_48 = arith.constant 0 : index
    %c0_49 = arith.constant 0 : index
    %68 = vector.load %arg10[%c0_47, %c0_48, %c0_49] : memref<10x16x384xbf16, #tpu.memory_space<vmem>>, vector<10x16x128xbf16>
    tpu.vector_store %arg10[%c0_47, %c0_48, %c0_49], %67 {strides = array<i32>} : memref<10x16x384xbf16, #tpu.memory_space<vmem>>, vector<10x16x128xbf16>,
    %69 = vector.extract_strided_slice %65 {offsets = [0, 8, 0], sizes = [10, 16, 128], strides = [1, 1, 1]} : vector<10x32x128xf32> to vector<10x16x128xf32>
    %70 = arith.truncf %69 : vector<10x16x128xf32> to vector<10x16x128xbf16>
    %c0_50 = arith.constant 0 : index
    %c0_51 = arith.constant 0 : index
    %c128_52 = arith.constant 128 : index
    %71 = vector.load %arg10[%c0_50, %c0_51, %c128_52] : memref<10x16x384xbf16, #tpu.memory_space<vmem>>, vector<10x16x128xbf16>
    tpu.vector_store %arg10[%c0_50, %c0_51, %c128_52], %70 {strides = array<i32>} : memref<10x16x384xbf16, #tpu.memory_space<vmem>>, vector<10x16x128xbf16>,
    %72 = vector.extract_strided_slice %65 {offsets = [0, 9, 0], sizes = [10, 16, 128], strides = [1, 1, 1]} : vector<10x32x128xf32> to vector<10x16x128xf32>
    %73 = arith.truncf %72 : vector<10x16x128xf32> to vector<10x16x128xbf16>
    %c0_53 = arith.constant 0 : index
    %c0_54 = arith.constant 0 : index
    %c256_55 = arith.constant 256 : index
    %74 = vector.load %arg10[%c0_53, %c0_54, %c256_55] : memref<10x16x384xbf16, #tpu.memory_space<vmem>>, vector<10x16x128xbf16>
    tpu.vector_store %arg10[%c0_53, %c0_54, %c256_55], %73 {strides = array<i32>} : memref<10x16x384xbf16, #tpu.memory_space<vmem>>, vector<10x16x128xbf16>,
    %cst_56 = arith.constant 0.000000e+00 : f32
    %75 = vector.broadcast %cst_56 : f32 to vector<128x128xf32>
    %c0_57 = arith.constant 0 : index
    %c0_58 = arith.constant 0 : index
    %c0_59 = arith.constant 0 : index
    %76 = vector.load %arg10[%c0_57, %c0_58, %c0_59] : memref<10x16x384xbf16, #tpu.memory_space<vmem>>, vector<8x16x384xbf16>
    %77 = vector.shape_cast %76 : vector<8x16x384xbf16> to vector<128x384xbf16>
    %c0_60 = arith.constant 0 : index
    %c0_61 = arith.constant 0 : index
    %c0_62 = arith.constant 0 : index
    %78 = vector.load %arg5[%c0_60, %c0_61, %c0_62] : memref<3x384x128xbf16, #tpu.memory_space<vmem>>, vector<1x384x128xbf16>
    %79 = vector.shape_cast %78 : vector<1x384x128xbf16> to vector<384x128xbf16>
    %cst_63 = arith.constant dense<0.000000e+00> : vector<128x128xf32>
    %80 = tpu.matmul %77, %79, %cst_63 {dimension_numbers = #tpu.dot_dimension_numbers<[1], [0], [0], [1], [0, 0, 1, 1], [], []>} : vector<128x384xbf16>, vector<384x128xbf16>, vector<128x128xf32> -> vector<128x128xf32>
    %81 = arith.addf %75, %80 : vector<128x128xf32>
    %c1_64 = arith.constant 1 : index
    %c0_65 = arith.constant 0 : index
    %c0_66 = arith.constant 0 : index
    %82 = vector.load %arg10[%c1_64, %c0_65, %c0_66] : memref<10x16x384xbf16, #tpu.memory_space<vmem>>, vector<8x16x384xbf16>
    %83 = vector.shape_cast %82 : vector<8x16x384xbf16> to vector<128x384xbf16>
    %c1_67 = arith.constant 1 : index
    %c0_68 = arith.constant 0 : index
    %c0_69 = arith.constant 0 : index
    %84 = vector.load %arg5[%c1_67, %c0_68, %c0_69] : memref<3x384x128xbf16, #tpu.memory_space<vmem>>, vector<1x384x128xbf16>
    %85 = vector.shape_cast %84 : vector<1x384x128xbf16> to vector<384x128xbf16>
    %cst_70 = arith.constant dense<0.000000e+00> : vector<128x128xf32>
    %86 = tpu.matmul %83, %85, %cst_70 {dimension_numbers = #tpu.dot_dimension_numbers<[1], [0], [0], [1], [0, 0, 1, 1], [], []>} : vector<128x384xbf16>, vector<384x128xbf16>, vector<128x128xf32> -> vector<128x128xf32>
    %87 = arith.addf %81, %86 : vector<128x128xf32>
    %c2_71 = arith.constant 2 : index
    %c0_72 = arith.constant 0 : index
    %c0_73 = arith.constant 0 : index
    %88 = vector.load %arg10[%c2_71, %c0_72, %c0_73] : memref<10x16x384xbf16, #tpu.memory_space<vmem>>, vector<8x16x384xbf16>
    %89 = vector.shape_cast %88 : vector<8x16x384xbf16> to vector<128x384xbf16>
    %c2_74 = arith.constant 2 : index
    %c0_75 = arith.constant 0 : index
    %c0_76 = arith.constant 0 : index
    %90 = vector.load %arg5[%c2_74, %c0_75, %c0_76] : memref<3x384x128xbf16, #tpu.memory_space<vmem>>, vector<1x384x128xbf16>
    %91 = vector.shape_cast %90 : vector<1x384x128xbf16> to vector<384x128xbf16>
    %cst_77 = arith.constant dense<0.000000e+00> : vector<128x128xf32>
    %92 = tpu.matmul %89, %91, %cst_77 {dimension_numbers = #tpu.dot_dimension_numbers<[1], [0], [0], [1], [0, 0, 1, 1], [], []>} : vector<128x384xbf16>, vector<384x128xbf16>, vector<128x128xf32> -> vector<128x128xf32>
    %93 = arith.addf %87, %92 : vector<128x128xf32>
    %c0_78 = arith.constant 0 : index
    %c0_79 = arith.constant 0 : index
    %94 = vector.load %arg6[%c0_78, %c0_79] : memref<1x128xf32, #tpu.memory_space<vmem>>, vector<1x128xf32>
    %95 = vector.broadcast %94 : vector<1x128xf32> to vector<128x128xf32>
    %96 = arith.addf %93, %95 : vector<128x128xf32>
    %cst_80 = arith.constant 0.000000e+00 : f32
    %97 = vector.broadcast %cst_80 : f32 to vector<128x128xf32>
    %98 = arith.maximumf %96, %97 : vector<128x128xf32>
    %99 = vector.shape_cast %98 : vector<128x128xf32> to vector<8x16x128xf32>
    %c0_81 = arith.constant 0 : index
    %c0_82 = arith.constant 0 : index
    %c0_83 = arith.constant 0 : index
    %c0_84 = arith.constant 0 : index
    %100 = vector.load %arg7[%c0_81, %c0_82, %c0_83, %c0_84] : memref<1x8x16x128xf32, #tpu.memory_space<vmem>>, vector<1x8x16x128xf32>
    %101 = vector.shape_cast %100 : vector<1x8x16x128xf32> to vector<8x16x128xf32>
    %102 = vector.shape_cast %99 : vector<8x16x128xf32> to vector<1x8x16x128xf32>
    tpu.vector_store %arg7[%c0_81, %c0_82, %c0_83, %c0_84], %102 {strides = array<i32>} : memref<1x8x16x128xf32, #tpu.memory_space<vmem>>, vector<1x8x16x128xf32>,
    return
  }
  func.func @transform_0(%arg0: i32, %arg1: i32) -> (i32, i32, i32, i32, i32) {
    %c0_i32 = arith.constant 0 : i32
    %c0_i32_0 = arith.constant 0 : i32
    %c0_i32_1 = arith.constant 0 : i32
    %c0_i32_2 = arith.constant 0 : i32
    return %arg0, %arg1, %c0_i32, %c0_i32_0, %c0_i32_1 : i32, i32, i32, i32, i32
  }
  func.func @transform_1(%arg0: i32, %arg1: i32) -> (i32, i32, i32) {
    %c0_i32 = arith.constant 0 : i32
    %c0_i32_0 = arith.constant 0 : i32
    %c0_i32_1 = arith.constant 0 : i32
    %c0_i32_2 = arith.constant 0 : i32
    return %c0_i32, %c0_i32_0, %c0_i32_1 : i32, i32, i32
  }
  func.func @transform_2(%arg0: i32, %arg1: i32) -> (i32, i32) {
    %c0_i32 = arith.constant 0 : i32
    %c0_i32_0 = arith.constant 0 : i32
    %c0_i32_1 = arith.constant 0 : i32
    return %c0_i32, %c0_i32_0 : i32, i32
  }
  func.func @transform_3(%arg0: i32, %arg1: i32) -> (i32, i32, i32) {
    %c0_i32 = arith.constant 0 : i32
    %c0_i32_0 = arith.constant 0 : i32
    %c0_i32_1 = arith.constant 0 : i32
    %c0_i32_2 = arith.constant 0 : i32
    return %c0_i32, %c0_i32_0, %c0_i32_1 : i32, i32, i32
  }
  func.func @transform_4(%arg0: i32, %arg1: i32) -> (i32, i32) {
    %c0_i32 = arith.constant 0 : i32
    %c0_i32_0 = arith.constant 0 : i32
    %c0_i32_1 = arith.constant 0 : i32
    return %c0_i32, %c0_i32_0 : i32, i32
  }
  func.func @transform_5(%arg0: i32, %arg1: i32) -> (i32, i32, i32, i32) {
    %c0_i32 = arith.constant 0 : i32
    %c0_i32_0 = arith.constant 0 : i32
    %c0_i32_1 = arith.constant 0 : i32
    return %arg0, %arg1, %c0_i32, %c0_i32_0 : i32, i32, i32, i32
  }
}

</mosaic_0001>

<llo_original>
// kernel: conv_block_forward.1
$region0: #{conv_block_forward.1}
  #allocation0 [shape = 'u32[]', space=smem, size = 0x4, offset = 0x4, fixed_abs, tag = 'smem constant byte address 0x4 - core index']
  #allocation1 [shape = 'u32[72,128]{1,0:T(1,128)}', space=vmem, size = 0x9000, scoped, tag = 'internal scratch']
  #allocation2 [shape = 'bf16[12,16,384]{2,1,0:T(8,128)(2,1)}', space=vmem, size = 0x24000, scoped, tag = 'scratch operand']
  #allocation3 [shape = 'f32[10,32,128]{2,1,0:T(8,128)}', space=vmem, size = 0x28000, scoped, tag = 'scratch operand']
  #allocation4 [shape = 'bf16[10,16,384]{2,1,0:T(8,128)(2,1)}', space=vmem, size = 0x1e000, scoped, tag = 'scratch operand']
  %s0 = inlined_call_operand.vmem [shape: bf16[2,2,12,18,128], index: 0, kind: input, shape index: {}]
  %s1 = inlined_call_operand.vmem [shape: bf16[3,384,128], index: 1, kind: input, shape index: {}]
  %s2 = inlined_call_operand.vmem [shape: f32[1,128], index: 2, kind: input, shape index: {}]
  %s3 = inlined_call_operand.vmem [shape: bf16[3,384,128], index: 3, kind: input, shape index: {}]
  %s4 = inlined_call_operand.vmem [shape: f32[1,128], index: 4, kind: input, shape index: {}]
  %s5 = inlined_call_operand.vmem [shape: f32[2,16,16,128], index: 5, kind: output, shape index: {}]
  %s6 = sld [smem:[#allocation0]]
  $region53: #{conv_block_forward.1} parent=0
    _
  %s8 = ssub.s32 1, %s6
  %s9 = scalar_select 0, %s8, %s6
  loop: start=0, step=1, limit=6
  $region2: #{conv_block_forward.1} parent=0 // loop_pre_header
    _
  $region3: #{conv_block_forward.1} parent=0 // loop_header
    %s11 = sphi 0, %s15
    %p12 = scmp.ge.s32.totalorder %s11, 6
    %s18 = sphi 0, %s30
    %s19 = sphi 0, %s26
    %s20 = sphi 0, %s18
    %s21 = sphi 0, %s19
    %s22 = sphi 0, %s20
    %s23 = sphi 0, %s21
    %s35 = sphi 0, %s37
    %s38 = sphi 0, %s35
    %s39 = sphi 0, %s38
    %s55 = sphi 0, %s39
    %s59 = sphi 0, %s59
    %s61 = sphi 0, %s59
    %s62 = sphi 0, %s61
    %s76 = sphi 0, %s62
    %s80 = sphi 0, %s80
    %s82 = sphi 0, %s80
    %s83 = sphi 0, %s82
    %s97 = sphi 0, %s83
    %s101 = sphi 0, %s101
    %s103 = sphi 0, %s101
    %s104 = sphi 0, %s103
    %s118 = sphi 0, %s104
    %s122 = sphi 0, %s122
    %s124 = sphi 0, %s122
    %s125 = sphi 0, %s124
    %s139 = sphi 0, %s125
    %s147 = sphi 0, %s149
    %s150 = sphi 0, %s147
    %s151 = sphi 0, %s150
    %s167 = sphi 0, %s151
  $region4: #{conv_block_forward.1} parent=0 // loop_header_branch
    %14 = sbr.rel (%p12) target = $region8
  $region5: #{conv_block_forward.1} parent=0 // loop_body
    %s16 = ssub.s32 %s11, 1
    %s17 = ssub.s32 %s11, 2
    %s24 = sadd.s32 1, %s19
    %p25 = scmp.ge.s32.totalorder %s24, 2
    %s26 = scalar_select %p25, 0, %s24
    %s27 = sadd.s32 1, %s18
    %s28 = scalar_select %p25, %s27, %s18
    %p29 = scmp.ge.s32.totalorder %s28, 2
    %s30 = scalar_select %p29, 0, %s28
    %s31 = ssub.s32 %s18, %s30
    %s32 = ssub.s32 %s19, %s26
    %s33 = sor.u32 %s31, %s32
    %p34 = scmp.eq.s32.totalorder %s33, 0
    %s36 = sadd.s32 %s35, 1
    %s37 = scalar_select %p34, %s35, %s36
    %p40 = pneg %p34
    %p41 = scmp.eq.s32.totalorder %s11, 3
    %p42 = por %p40, %p41
    %p43 = scmp.ne.s32.totalorder %s35, %s38
    %p44 = scmp.eq.s32.totalorder %s11, 0
    %p45 = por %p43, %p44
    %p46 = scmp.ne.s32.totalorder %s35, %s38
    %p47 = scmp.eq.s32.totalorder %s16, 3
    %p48 = por %p46, %p47
    %p49 = scmp.ne.s32.totalorder %s38, %s39
    %p50 = scmp.eq.s32.totalorder %s16, 0
    %p51 = por %p49, %p50
    %p52 = scmp.ne.s32.totalorder %s38, %s39
    %p53 = scmp.eq.s32.totalorder %s17, 3
    %p54 = por %p52, %p53
    %p56 = scmp.ne.s32.totalorder %s39, %s55
    %p57 = scmp.eq.s32.totalorder %s17, 0
    %p58 = por %p56, %p57
    %s60 = sadd.s32 %s59, 1
    %p63 = scmp.eq.s32.totalorder %s11, 3
    %p64 = scmp.ne.s32.totalorder %s59, %s61
    %p65 = scmp.eq.s32.totalorder %s11, 0
    %p66 = por %p64, %p65
    %p67 = scmp.ne.s32.totalorder %s59, %s61
    %p68 = scmp.eq.s32.totalorder %s16, 3
    %p69 = por %p67, %p68
    %p70 = scmp.ne.s32.totalorder %s61, %s62
    %p71 = scmp.eq.s32.totalorder %s16, 0
    %p72 = por %p70, %p71
    %p73 = scmp.ne.s32.totalorder %s61, %s62
    %p74 = scmp.eq.s32.totalorder %s17, 3
    %p75 = por %p73, %p74
    %p77 = scmp.ne.s32.totalorder %s62, %s76
    %p78 = scmp.eq.s32.totalorder %s17, 0
    %p79 = por %p77, %p78
    %s81 = sadd.s32 %s80, 1
    %p84 = scmp.eq.s32.totalorder %s11, 3
    %p85 = scmp.ne.s32.totalorder %s80, %s82
    %p86 = scmp.eq.s32.totalorder %s11, 0
    %p87 = por %p85, %p86
    %p88 = scmp.ne.s32.totalorder %s80, %s82
    %p89 = scmp.eq.s32.totalorder %s16, 3
    %p90 = por %p88, %p89
    %p91 = scmp.ne.s32.totalorder %s82, %s83
    %p92 = scmp.eq.s32.totalorder %s16, 0
    %p93 = por %p91, %p92
    %p94 = scmp.ne.s32.totalorder %s82, %s83
    %p95 = scmp.eq.s32.totalorder %s17, 3
    %p96 = por %p94, %p95
    %p98 = scmp.ne.s32.totalorder %s83, %s97
    %p99 = scmp.eq.s32.totalorder %s17, 0
    %p100 = por %p98, %p99
    %s102 = sadd.s32 %s101, 1
    %p105 = scmp.eq.s32.totalorder %s11, 3
    %p106 = scmp.ne.s32.totalorder %s101, %s103
    %p107 = scmp.eq.s32.totalorder %s11, 0
    %p108 = por %p106, %p107
    %p109 = scmp.ne.s32.totalorder %s101, %s103
    %p110 = scmp.eq.s32.totalorder %s16, 3
    %p111 = por %p109, %p110
    %p112 = scmp.ne.s32.totalorder %s103, %s104
    %p113 = scmp.eq.s32.totalorder %s16, 0
    %p114 = por %p112, %p113
    %p115 = scmp.ne.s32.totalorder %s103, %s104
    %p116 = scmp.eq.s32.totalorder %s17, 3
    %p117 = por %p115, %p116
    %p119 = scmp.ne.s32.totalorder %s104, %s118
    %p120 = scmp.eq.s32.totalorder %s17, 0
    %p121 = por %p119, %p120
    %s123 = sadd.s32 %s122, 1
    %p126 = scmp.eq.s32.totalorder %s11, 3
    %p127 = scmp.ne.s32.totalorder %s122, %s124
    %p128 = scmp.eq.s32.totalorder %s11, 0
    %p129 = por %p127, %p128
    %p130 = scmp.ne.s32.totalorder %s122, %s124
    %p131 = scmp.eq.s32.totalorder %s16, 3
    %p132 = por %p130, %p131
    %p133 = scmp.ne.s32.totalorder %s124, %s125
    %p134 = scmp.eq.s32.totalorder %s16, 0
    %p135 = por %p133, %p134
    %p136 = scmp.ne.s32.totalorder %s124, %s125
    %p137 = scmp.eq.s32.totalorder %s17, 3
    %p138 = por %p136, %p137
    %p140 = scmp.ne.s32.totalorder %s125, %s139
    %p141 = scmp.eq.s32.totalorder %s17, 0
    %p142 = por %p140, %p141
    %s143 = ssub.s32 %s18, %s30
    %s144 = ssub.s32 %s19, %s26
    %s145 = sor.u32 %s143, %s144
    %p146 = scmp.eq.s32.totalorder %s145, 0
    %s148 = sadd.s32 %s147, 1
    %s149 = scalar_select %p146, %s147, %s148
    %p152 = pneg %p146
    %p153 = scmp.eq.s32.totalorder %s11, 3
    %p154 = por %p152, %p153
    %p155 = scmp.ne.s32.totalorder %s147, %s150
    %p156 = scmp.eq.s32.totalorder %s11, 0
    %p157 = por %p155, %p156
    %p158 = scmp.ne.s32.totalorder %s147, %s150
    %p159 = scmp.eq.s32.totalorder %s16, 3
    %p160 = por %p158, %p159
    %p161 = scmp.ne.s32.totalorder %s150, %s151
    %p162 = scmp.eq.s32.totalorder %s16, 0
    %p163 = por %p161, %p162
    %p164 = scmp.ne.s32.totalorder %s150, %s151
    %p165 = scmp.eq.s32.totalorder %s17, 3
    %p166 = por %p164, %p165
    %p168 = scmp.ne.s32.totalorder %s151, %s167
    %p169 = scmp.eq.s32.totalorder %s17, 0
    %p170 = por %p168, %p169
    %p171 = scmp.le.s32.totalorder 1, %s11
    %p172 = scmp.lt.s32.totalorder %s11, 5
    %p173 = pnand %p171, %p172
    %p174 = pneg %p173
    // Predicated region
    $region9: #{conv_block_forward.1} parent=5 // pred_check
      _
    $region10: #{conv_block_forward.1} parent=5 // pred_check_branch
      %176 = sbr.rel (%p173) target = $region12
    $region11: #{conv_block_forward.1} parent=5 // pred_region
      %s177 = ssub.s32 %s11, 1
      // Predicated region
      $region13: #{conv_block_forward.1} parent=11 // pred_check
        %p178 = pneg %p72
      $region14: #{conv_block_forward.1} parent=11 // pred_check_branch
        %180 = sbr.rel (%p178) target = $region16
      $region15: #{conv_block_forward.1} parent=11 // pred_region
        _
      $region16: #{conv_block_forward.1} parent=11 // pred_fallthru
        _
      // Predicated region
      $region17: #{conv_block_forward.1} parent=11 // pred_check
        %p181 = pneg %p93
      $region18: #{conv_block_forward.1} parent=11 // pred_check_branch
        %183 = sbr.rel (%p181) target = $region20
      $region19: #{conv_block_forward.1} parent=11 // pred_region
        _
      $region20: #{conv_block_forward.1} parent=11 // pred_fallthru
        _
      // Predicated region
      $region21: #{conv_block_forward.1} parent=11 // pred_check
        %p184 = pneg %p114
      $region22: #{conv_block_forward.1} parent=11 // pred_check_branch
        %186 = sbr.rel (%p184) target = $region24
      $region23: #{conv_block_forward.1} parent=11 // pred_region
        _
      $region24: #{conv_block_forward.1} parent=11 // pred_fallthru
        _
      // Predicated region
      $region25: #{conv_block_forward.1} parent=11 // pred_check
        %p187 = pneg %p135
      $region26: #{conv_block_forward.1} parent=11 // pred_check_branch
        %189 = sbr.rel (%p187) target = $region28
      $region27: #{conv_block_forward.1} parent=11 // pred_region
        _
      $region28: #{conv_block_forward.1} parent=11 // pred_fallthru
        _
    $region12: #{conv_block_forward.1} parent=5 // pred_fallthru
      _
    %p190 = scmp.lt.s32.totalorder %s11, 4
    // Predicated region
    $region29: #{conv_block_forward.1} parent=5 // pred_check
      %p191 = pneg %p190
    $region30: #{conv_block_forward.1} parent=5 // pred_check_branch
      %193 = sbr.rel (%p191) target = $region32
    $region31: #{conv_block_forward.1} parent=5 // pred_region
      // Predicated region
      $region33: #{conv_block_forward.1} parent=31 // pred_check
        %p194 = pneg %p45
      $region34: #{conv_block_forward.1} parent=31 // pred_check_branch
        %196 = sbr.rel (%p194) target = $region36
      $region35: #{conv_block_forward.1} parent=31 // pred_region
        %p197 = scmp.lt.s32.totalorder %s18, 1
        %s198 = scalar_select %p197, %s18, 1
        %p199 = scmp.lt.s32.totalorder %s19, 1
        %s200 = scalar_select %p199, %s19, 1
        %s201 = smul.addr %s200, 36
        %s202 = smul.addr %s198, 72
        %s203 = sadd.s32 %s201, %s202
        %s204 = smul.addr %s203, 4
        %s205 = scalar_lea.vmem %s0, %s204
      $region36: #{conv_block_forward.1} parent=31 // pred_fallthru
        _
    $region32: #{conv_block_forward.1} parent=5 // pred_fallthru
      _
    %p206 = scmp.le.s32.totalorder 1, %s11
    %p207 = scmp.lt.s32.totalorder %s11, 5
    %p208 = pnand %p206, %p207
    %p209 = pneg %p208
    // Predicated region
    $region37: #{conv_block_forward.1} parent=5 // pred_check
      _
    $region38: #{conv_block_forward.1} parent=5 // pred_check_branch
      %211 = sbr.rel (%p208) target = $region40
    $region39: #{conv_block_forward.1} parent=5 // pred_region
      %s212 = ssub.s32 %s11, 1
      %p213 = scmp.lt.s32.totalorder %s20, 1
      %s214 = scalar_select %p213, %s20, 1
      %p215 = scmp.lt.s32.totalorder %s21, 1
      %s216 = scalar_select %p215, %s21, 1
      %s217 = smul.addr %s216, 36
      %s218 = smul.addr %s214, 72
      %s219 = sadd.s32 %s217, %s218
      %s220 = smul.addr %s219, 4
      %s221 = scalar_lea.vmem %s0, %s220
      %p222 = pneg %p51
      %p223 = pneg %p48
      %p224 = pneg %p72
      %p225 = pneg %p69
      %p226 = pneg %p93
      %p227 = pneg %p90
      %p228 = pneg %p114
      %p229 = pneg %p111
      %p230 = pneg %p135
      %p231 = pneg %p132
      %p232 = pneg %p163
      %p233 = pneg %p160
      %s234 = smul.u32 8, %s21
      %p235 = scmp.lt.s32.totalorder %s20, 1
      %s236 = scalar_select %p235, %s20, 1
      %p237 = scmp.lt.s32.totalorder %s234, 15
      %s238 = scalar_select %p237, %s234, 15
      %s239 = smul.addr %s238, 2
      %s240 = smul.addr %s236, 32
      %s241 = sadd.s32 %s239, %s240
      %s242 = smul.addr %s241, 8
      %s243 = scalar_lea.vmem %s5, %s242
      %p244 = scmp.lt.s32.totalorder %s20, 1
      %s245 = scalar_select %p244, %s20, 1
      %p246 = scmp.lt.s32.totalorder %s21, 1
      %s247 = scalar_select %p246, %s21, 1
      %s248 = smul.addr %s247, 36
      %s249 = smul.addr %s245, 72
      %s250 = sadd.s32 %s248, %s249
      %s251 = smul.addr %s250, 4
      %s252 = scalar_lea.vmem %s0, %s251
      %s253 = smul.u32 8, %s21
      %p254 = scmp.lt.s32.totalorder %s20, 1
      %s255 = scalar_select %p254, %s20, 1
      %p256 = scmp.lt.s32.totalorder %s253, 15
      %s257 = scalar_select %p256, %s253, 15
      %s258 = smul.addr %s257, 2
      %s259 = smul.addr %s255, 32
      %s260 = sadd.s32 %s258, %s259
      %s261 = smul.addr %s260, 8
      %s262 = scalar_lea.vmem %s5, %s261
      %s263 = smul.u32 8, %s21
      %v264 = vld [vmem:[%s252] sm:$0xf]
      %v265 = vld [vmem:[%s252 + $0x4] sm:$0xf]
      %v266 = vld [vmem:[%s252 + $0x8] sm:$0x1]
      %v267 = vld [vmem:[%s252 + $0xc] sm:$0xf]
      %v268 = vld [vmem:[%s252 + $0x10] sm:$0xf]
      %v269 = vld [vmem:[%s252 + $0x14] sm:$0x1]
      %v270 = vld [vmem:[%s252 + $0x18] sm:$0xf]
      %v271 = vld [vmem:[%s252 + $0x1c] sm:$0xf]
      %v272 = vld [vmem:[%s252 + $0x20] sm:$0x1]
      %v273 = vld [vmem:[%s252 + $0x24] sm:$0xf]
      %v274 = vld [vmem:[%s252 + $0x28] sm:$0xf]
      %v275 = vld [vmem:[%s252 + $0x2c] sm:$0x1]
      %v276 = vld [vmem:[%s252 + $0x30] sm:$0xf]
      %v277 = vld [vmem:[%s252 + $0x34] sm:$0xf]
      %v278 = vld [vmem:[%s252 + $0x38] sm:$0x1]
      %v279 = vld [vmem:[%s252 + $0x3c] sm:$0xf]
      %v280 = vld [vmem:[%s252 + $0x40] sm:$0xf]
      %v281 = vld [vmem:[%s252 + $0x44] sm:$0x1]
      %v282 = vld [vmem:[%s252 + $0x48] sm:$0xf]
      %v283 = vld [vmem:[%s252 + $0x4c] sm:$0xf]
      %v284 = vld [vmem:[%s252 + $0x50] sm:$0x1]
      %v285 = vld [vmem:[%s252 + $0x54] sm:$0xf]
      %v286 = vld [vmem:[%s252 + $0x58] sm:$0xf]
      %v287 = vld [vmem:[%s252 + $0x5c] sm:$0x1]
      %v288 = vld [vmem:[%s252 + $0x60] sm:$0xf]
      %v289 = vld [vmem:[%s252 + $0x64] sm:$0xf]
      %v290 = vld [vmem:[%s252 + $0x68] sm:$0x1]
      %v291 = vld [vmem:[%s252 + $0x6c] sm:$0xf]
      %v292 = vld [vmem:[%s252 + $0x70] sm:$0xf]
      %v293 = vld [vmem:[%s252 + $0x74] sm:$0x1]
      %v294 = vld [vmem:[%s252 + $0x78] sm:$0xf]
      %v295 = vld [vmem:[%s252 + $0x7c] sm:$0xf]
      %v296 = vld [vmem:[%s252 + $0x80] sm:$0x1]
      %v297 = vld [vmem:[%s252 + $0x84] sm:$0xf]
      %v298 = vld [vmem:[%s252 + $0x88] sm:$0xf]
      %v299 = vld [vmem:[%s252 + $0x8c] sm:$0x1]
      %v300 = vunpack.c.l.bf16 %v264
      %v301 = vunpack.c.l.bf16 %v265
      %v302 = vunpack.c.l.bf16 %v266
      %v303 = vunpack.c.l.bf16 %v267
      %v304 = vunpack.c.l.bf16 %v268
      %v305 = vunpack.c.l.bf16 %v269
      %v306 = vunpack.c.l.bf16 %v270
      %v307 = vunpack.c.l.bf16 %v271
      %v308 = vunpack.c.l.bf16 %v272
      %v309 = vunpack.c.l.bf16 %v273
      %v310 = vunpack.c.l.bf16 %v274
      %v311 = vunpack.c.l.bf16 %v275
      %v312 = vunpack.c.l.bf16 %v276
      %v313 = vunpack.c.l.bf16 %v277
      %v314 = vunpack.c.l.bf16 %v278
      %v315 = vunpack.c.l.bf16 %v279
      %v316 = vunpack.c.l.bf16 %v280
      %v317 = vunpack.c.l.bf16 %v281
      %v318 = vunpack.c.l.bf16 %v282
      %v319 = vunpack.c.l.bf16 %v283
      %v320 = vunpack.c.l.bf16 %v284
      %v321 = vunpack.c.l.bf16 %v285
      %v322 = vunpack.c.l.bf16 %v286
      %v323 = vunpack.c.l.bf16 %v287
      %v324 = vunpack.c.l.bf16 %v288
      %v325 = vunpack.c.l.bf16 %v289
      %v326 = vunpack.c.l.bf16 %v290
      %v327 = vunpack.c.l.bf16 %v291
      %v328 = vunpack.c.l.bf16 %v292
      %v329 = vunpack.c.l.bf16 %v293
      %v330 = vunpack.c.l.bf16 %v294
      %v331 = vunpack.c.l.bf16 %v295
      %v332 = vunpack.c.l.bf16 %v296
      %v333 = vunpack.c.l.bf16 %v297
      %v334 = vunpack.c.l.bf16 %v298
      %v335 = vunpack.c.l.bf16 %v299
      %v336 = vpack.c.bf16 %v300, %v300
      %v337 = vpack.c.bf16 %v301, %v301
      %v338 = vpack.c.bf16 %v303, %v303
      %v339 = vpack.c.bf16 %v304, %v304
      %v340 = vpack.c.bf16 %v306, %v306
      %v341 = vpack.c.bf16 %v307, %v307
      %v342 = vpack.c.bf16 %v309, %v309
      %v343 = vpack.c.bf16 %v310, %v310
      %v344 = vpack.c.bf16 %v312, %v312
      %v345 = vpack.c.bf16 %v313, %v313
      %v346 = vpack.c.bf16 %v315, %v315
      %v347 = vpack.c.bf16 %v316, %v316
      %v348 = vpack.c.bf16 %v318, %v318
      %v349 = vpack.c.bf16 %v319, %v319
      %v350 = vpack.c.bf16 %v321, %v321
      %v351 = vpack.c.bf16 %v322, %v322
      %v352 = vpack.c.bf16 %v324, %v324
      %v353 = vpack.c.bf16 %v325, %v325
      %v354 = vpack.c.bf16 %v327, %v327
      %v355 = vpack.c.bf16 %v328, %v328
      %v356 = vpack.c.bf16 %v330, %v330
      %v357 = vpack.c.bf16 %v331, %v331
      %v358 = vpack.c.bf16 %v333, %v333
      %v359 = vpack.c.bf16 %v334, %v334
      %360 = vst [vmem:[#allocation2] sm:$0xf] %v336
      %361 = vst [vmem:[#allocation2 + $0xc] sm:$0xf] %v337
      %362 = vst [vmem:[#allocation2 + $0x18] sm:$0xf] %v338
      %363 = vst [vmem:[#allocation2 + $0x24] sm:$0xf] %v339
      %364 = vst [vmem:[#allocation2 + $0x30] sm:$0xf] %v340
      %365 = vst [vmem:[#allocation2 + $0x3c] sm:$0xf] %v341
      %366 = vst [vmem:[#allocation2 + $0x48] sm:$0xf] %v342
      %367 = vst [vmem:[#allocation2 + $0x54] sm:$0xf] %v343
      %368 = vst [vmem:[#allocation2 + $0x60] sm:$0xf] %v344
      %369 = vst [vmem:[#allocation2 + $0x6c] sm:$0xf] %v345
      %370 = vst [vmem:[#allocation2 + $0x78] sm:$0xf] %v346
      %371 = vst [vmem:[#allocation2 + $0x84] sm:$0xf] %v347
      %372 = vst [vmem:[#allocation2 + $0x90] sm:$0xf] %v348
      %373 = vst [vmem:[#allocation2 + $0x9c] sm:$0xf] %v349
      %374 = vst [vmem:[#allocation2 + $0xa8] sm:$0xf] %v350
      %375 = vst [vmem:[#allocation2 + $0xb4] sm:$0xf] %v351
      %376 = vst [vmem:[#allocation2 + $0xc0] sm:$0xf] %v352
      %377 = vst [vmem:[#allocation2 + $0xcc] sm:$0xf] %v353
      %378 = vst [vmem:[#allocation2 + $0xd8] sm:$0xf] %v354
      %379 = vst [vmem:[#allocation2 + $0xe4] sm:$0xf] %v355
      %380 = vst [vmem:[#allocation2 + $0xf0] sm:$0xf] %v356
      %381 = vst [vmem:[#allocation2 + $0xfc] sm:$0xf] %v357
      %382 = vst [vmem:[#allocation2 + $0x108] sm:$0xf] %v358
      %383 = vst [vmem:[#allocation2 + $0x114] sm:$0xf] %v359
      %v384 = vpack.c.bf16 %v302, %v302
      %v385 = vpack.c.bf16 %v305, %v305
      %v386 = vpack.c.bf16 %v308, %v308
      %v387 = vpack.c.bf16 %v311, %v311
      %v388 = vpack.c.bf16 %v314, %v314
      %v389 = vpack.c.bf16 %v317, %v317
      %v390 = vpack.c.bf16 %v320, %v320
      %v391 = vpack.c.bf16 %v323, %v323
      %v392 = vpack.c.bf16 %v326, %v326
      %v393 = vpack.c.bf16 %v329, %v329
      %v394 = vpack.c.bf16 %v332, %v332
      %v395 = vpack.c.bf16 %v335, %v335
      %vm396 = vsmask.f32 3328
      %vm397 = vsmask.f32 7440
      %vm398 = vmor %vm396, %vm397
      %v400 = vshrl.u32 %v336, 16
      %v402 = vrot.slane %v400, 4
      %v403 = vshll.u32 %v336, 16
      %v405 = vrot.slane %v403, 5
      %v406 = vor.u32 %v402, %v405
      %v407 = vrot.slane %v406, 4
      %v409 = vshll.u32 %v337, 16
      %v411 = vrot.slane %v409, 5
      %v412 = vsel %vm398, %v407, %v411
      %v413 = vshrl.u32 %v337, 16
      %v415 = vrot.slane %v413, 4
      %v416 = vor.u32 %v415, %v411
      %v417 = vrot.slane %v416, 4
      %v419 = vshll.u32 %v384, 16
      %v421 = vrot.slane %v419, 5
      %v422 = vsel %vm398, %v417, %v421
      %v424 = vshrl.u32 %v338, 16
      %v426 = vrot.slane %v424, 4
      %v427 = vshll.u32 %v338, 16
      %v429 = vrot.slane %v427, 5
      %v430 = vor.u32 %v426, %v429
      %v431 = vrot.slane %v430, 4
      %v433 = vshll.u32 %v339, 16
      %v435 = vrot.slane %v433, 5
      %v436 = vsel %vm398, %v431, %v435
      %v437 = vshrl.u32 %v339, 16
      %v439 = vrot.slane %v437, 4
      %v440 = vor.u32 %v439, %v435
      %v441 = vrot.slane %v440, 4
      %v443 = vshll.u32 %v385, 16
      %v445 = vrot.slane %v443, 5
      %v446 = vsel %vm398, %v441, %v445
      %v448 = vshrl.u32 %v340, 16
      %v450 = vrot.slane %v448, 4
      %v451 = vshll.u32 %v340, 16
      %v453 = vrot.slane %v451, 5
      %v454 = vor.u32 %v450, %v453
      %v455 = vrot.slane %v454, 4
      %v457 = vshll.u32 %v341, 16
      %v459 = vrot.slane %v457, 5
      %v460 = vsel %vm398, %v455, %v459
      %v461 = vshrl.u32 %v341, 16
      %v463 = vrot.slane %v461, 4
      %v464 = vor.u32 %v463, %v459
      %v465 = vrot.slane %v464, 4
      %v467 = vshll.u32 %v386, 16
      %v469 = vrot.slane %v467, 5
      %v470 = vsel %vm398, %v465, %v469
      %v472 = vshrl.u32 %v342, 16
      %v474 = vrot.slane %v472, 4
      %v475 = vshll.u32 %v342, 16
      %v477 = vrot.slane %v475, 5
      %v478 = vor.u32 %v474, %v477
      %v479 = vrot.slane %v478, 4
      %v481 = vshll.u32 %v343, 16
      %v483 = vrot.slane %v481, 5
      %v484 = vsel %vm398, %v479, %v483
      %v485 = vshrl.u32 %v343, 16
      %v487 = vrot.slane %v485, 4
      %v488 = vor.u32 %v487, %v483
      %v489 = vrot.slane %v488, 4
      %v491 = vshll.u32 %v387, 16
      %v493 = vrot.slane %v491, 5
      %v494 = vsel %vm398, %v489, %v493
      %v496 = vshrl.u32 %v344, 16
      %v498 = vrot.slane %v496, 4
      %v499 = vshll.u32 %v344, 16
      %v501 = vrot.slane %v499, 5
      %v502 = vor.u32 %v498, %v501
      %v503 = vrot.slane %v502, 4
      %v505 = vshll.u32 %v345, 16
      %v507 = vrot.slane %v505, 5
      %v508 = vsel %vm398, %v503, %v507
      %v509 = vshrl.u32 %v345, 16
      %v511 = vrot.slane %v509, 4
      %v512 = vor.u32 %v511, %v507
      %v513 = vrot.slane %v512, 4
      %v515 = vshll.u32 %v388, 16
      %v517 = vrot.slane %v515, 5
      %v518 = vsel %vm398, %v513, %v517
      %v520 = vshrl.u32 %v346, 16
      %v522 = vrot.slane %v520, 4
      %v523 = vshll.u32 %v346, 16
      %v525 = vrot.slane %v523, 5
      %v526 = vor.u32 %v522, %v525
      %v527 = vrot.slane %v526, 4
      %v529 = vshll.u32 %v347, 16
      %v531 = vrot.slane %v529, 5
      %v532 = vsel %vm398, %v527, %v531
      %v533 = vshrl.u32 %v347, 16
      %v535 = vrot.slane %v533, 4
      %v536 = vor.u32 %v535, %v531
      %v537 = vrot.slane %v536, 4
      %v539 = vshll.u32 %v389, 16
      %v541 = vrot.slane %v539, 5
      %v542 = vsel %vm398, %v537, %v541
      %v544 = vshrl.u32 %v348, 16
      %v546 = vrot.slane %v544, 4
      %v547 = vshll.u32 %v348, 16
      %v549 = vrot.slane %v547, 5
      %v550 = vor.u32 %v546, %v549
      %v551 = vrot.slane %v550, 4
      %v553 = vshll.u32 %v349, 16
      %v555 = vrot.slane %v553, 5
      %v556 = vsel %vm398, %v551, %v555
      %v557 = vshrl.u32 %v349, 16
      %v559 = vrot.slane %v557, 4
      %v560 = vor.u32 %v559, %v555
      %v561 = vrot.slane %v560, 4
      %v563 = vshll.u32 %v390, 16
      %v565 = vrot.slane %v563, 5
      %v566 = vsel %vm398, %v561, %v565
      %v568 = vshrl.u32 %v350, 16
      %v570 = vrot.slane %v568, 4
      %v571 = vshll.u32 %v350, 16
      %v573 = vrot.slane %v571, 5
      %v574 = vor.u32 %v570, %v573
      %v575 = vrot.slane %v574, 4
      %v577 = vshll.u32 %v351, 16
      %v579 = vrot.slane %v577, 5
      %v580 = vsel %vm398, %v575, %v579
      %v581 = vshrl.u32 %v351, 16
      %v583 = vrot.slane %v581, 4
      %v584 = vor.u32 %v583, %v579
      %v585 = vrot.slane %v584, 4
      %v587 = vshll.u32 %v391, 16
      %v589 = vrot.slane %v587, 5
      %v590 = vsel %vm398, %v585, %v589
      %v592 = vshrl.u32 %v352, 16
      %v594 = vrot.slane %v592, 4
      %v595 = vshll.u32 %v352, 16
      %v597 = vrot.slane %v595, 5
      %v598 = vor.u32 %v594, %v597
      %v599 = vrot.slane %v598, 4
      %v601 = vshll.u32 %v353, 16
      %v603 = vrot.slane %v601, 5
      %v604 = vsel %vm398, %v599, %v603
      %v605 = vshrl.u32 %v353, 16
      %v607 = vrot.slane %v605, 4
      %v608 = vor.u32 %v607, %v603
      %v609 = vrot.slane %v608, 4
      %v611 = vshll.u32 %v392, 16
      %v613 = vrot.slane %v611, 5
      %v614 = vsel %vm398, %v609, %v613
      %v616 = vshrl.u32 %v354, 16
      %v618 = vrot.slane %v616, 4
      %v619 = vshll.u32 %v354, 16
      %v621 = vrot.slane %v619, 5
      %v622 = vor.u32 %v618, %v621
      %v623 = vrot.slane %v622, 4
      %v625 = vshll.u32 %v355, 16
      %v627 = vrot.slane %v625, 5
      %v628 = vsel %vm398, %v623, %v627
      %v629 = vshrl.u32 %v355, 16
      %v631 = vrot.slane %v629, 4
      %v632 = vor.u32 %v631, %v627
      %v633 = vrot.slane %v632, 4
      %v635 = vshll.u32 %v393, 16
      %v637 = vrot.slane %v635, 5
      %v638 = vsel %vm398, %v633, %v637
      %v640 = vshrl.u32 %v356, 16
      %v642 = vrot.slane %v640, 4
      %v643 = vshll.u32 %v356, 16
      %v645 = vrot.slane %v643, 5
      %v646 = vor.u32 %v642, %v645
      %v647 = vrot.slane %v646, 4
      %v649 = vshll.u32 %v357, 16
      %v651 = vrot.slane %v649, 5
      %v652 = vsel %vm398, %v647, %v651
      %v653 = vshrl.u32 %v357, 16
      %v655 = vrot.slane %v653, 4
      %v656 = vor.u32 %v655, %v651
      %v657 = vrot.slane %v656, 4
      %v659 = vshll.u32 %v394, 16
      %v661 = vrot.slane %v659, 5
      %v662 = vsel %vm398, %v657, %v661
      %v664 = vshrl.u32 %v358, 16
      %v666 = vrot.slane %v664, 4
      %v667 = vshll.u32 %v358, 16
      %v669 = vrot.slane %v667, 5
      %v670 = vor.u32 %v666, %v669
      %v671 = vrot.slane %v670, 4
      %v673 = vshll.u32 %v359, 16
      %v675 = vrot.slane %v673, 5
      %v676 = vsel %vm398, %v671, %v675
      %v677 = vshrl.u32 %v359, 16
      %v679 = vrot.slane %v677, 4
      %v680 = vor.u32 %v679, %v675
      %v681 = vrot.slane %v680, 4
      %v683 = vshll.u32 %v395, 16
      %v685 = vrot.slane %v683, 5
      %v686 = vsel %vm398, %v681, %v685
      %711 = vst [vmem:[#allocation2 + $0x4] sm:$0xf] %v412
      %712 = vst [vmem:[#allocation2 + $0x10] sm:$0xf] %v422
      %713 = vst [vmem:[#allocation2 + $0x1c] sm:$0xf] %v436
      %714 = vst [vmem:[#allocation2 + $0x28] sm:$0xf] %v446
      %715 = vst [vmem:[#allocation2 + $0x34] sm:$0xf] %v460
      %716 = vst [vmem:[#allocation2 + $0x40] sm:$0xf] %v470
      %717 = vst [vmem:[#allocation2 + $0x4c] sm:$0xf] %v484
      %718 = vst [vmem:[#allocation2 + $0x58] sm:$0xf] %v494
      %719 = vst [vmem:[#allocation2 + $0x64] sm:$0xf] %v508
      %720 = vst [vmem:[#allocation2 + $0x70] sm:$0xf] %v518
      %721 = vst [vmem:[#allocation2 + $0x7c] sm:$0xf] %v532
      %722 = vst [vmem:[#allocation2 + $0x88] sm:$0xf] %v542
      %723 = vst [vmem:[#allocation2 + $0x94] sm:$0xf] %v556
      %724 = vst [vmem:[#allocation2 + $0xa0] sm:$0xf] %v566
      %725 = vst [vmem:[#allocation2 + $0xac] sm:$0xf] %v580
      %726 = vst [vmem:[#allocation2 + $0xb8] sm:$0xf] %v590
      %727 = vst [vmem:[#allocation2 + $0xc4] sm:$0xf] %v604
      %728 = vst [vmem:[#allocation2 + $0xd0] sm:$0xf] %v614
      %729 = vst [vmem:[#allocation2 + $0xdc] sm:$0xf] %v628
      %730 = vst [vmem:[#allocation2 + $0xe8] sm:$0xf] %v638
      %731 = vst [vmem:[#allocation2 + $0xf4] sm:$0xf] %v652
      %732 = vst [vmem:[#allocation2 + $0x100] sm:$0xf] %v662
      %733 = vst [vmem:[#allocation2 + $0x10c] sm:$0xf] %v676
      %734 = vst [vmem:[#allocation2 + $0x118] sm:$0xf] %v686
      %vm771 = vcmask 1042432
      %vm772 = vcmask 1046532
      %vm773 = vmor %vm771, %vm772
      %v774 = vrot.slane %v336, 5
      %v775 = vrot.slane %v774, 4
      %v776 = vrot.slane %v337, 5
      %v777 = vsel %vm773, %v775, %v776
      %v778 = vrot.slane %v776, 4
      %v779 = vrot.slane %v384, 5
      %v780 = vsel %vm773, %v778, %v779
      %v781 = vrot.slane %v338, 5
      %v782 = vrot.slane %v781, 4
      %v783 = vrot.slane %v339, 5
      %v784 = vsel %vm773, %v782, %v783
      %v785 = vrot.slane %v783, 4
      %v786 = vrot.slane %v385, 5
      %v787 = vsel %vm773, %v785, %v786
      %v788 = vrot.slane %v340, 5
      %v789 = vrot.slane %v788, 4
      %v790 = vrot.slane %v341, 5
      %v791 = vsel %vm773, %v789, %v790
      %v792 = vrot.slane %v790, 4
      %v793 = vrot.slane %v386, 5
      %v794 = vsel %vm773, %v792, %v793
      %v795 = vrot.slane %v342, 5
      %v796 = vrot.slane %v795, 4
      %v797 = vrot.slane %v343, 5
      %v798 = vsel %vm773, %v796, %v797
      %v799 = vrot.slane %v797, 4
      %v800 = vrot.slane %v387, 5
      %v801 = vsel %vm773, %v799, %v800
      %v802 = vrot.slane %v344, 5
      %v803 = vrot.slane %v802, 4
      %v804 = vrot.slane %v345, 5
      %v805 = vsel %vm773, %v803, %v804
      %v806 = vrot.slane %v804, 4
      %v807 = vrot.slane %v388, 5
      %v808 = vsel %vm773, %v806, %v807
      %v809 = vrot.slane %v346, 5
      %v810 = vrot.slane %v809, 4
      %v811 = vrot.slane %v347, 5
      %v812 = vsel %vm773, %v810, %v811
      %v813 = vrot.slane %v811, 4
      %v814 = vrot.slane %v389, 5
      %v815 = vsel %vm773, %v813, %v814
      %v816 = vrot.slane %v348, 5
      %v817 = vrot.slane %v816, 4
      %v818 = vrot.slane %v349, 5
      %v819 = vsel %vm773, %v817, %v818
      %v820 = vrot.slane %v818, 4
      %v821 = vrot.slane %v390, 5
      %v822 = vsel %vm773, %v820, %v821
      %v823 = vrot.slane %v350, 5
      %v824 = vrot.slane %v823, 4
      %v825 = vrot.slane %v351, 5
      %v826 = vsel %vm773, %v824, %v825
      %v827 = vrot.slane %v825, 4
      %v828 = vrot.slane %v391, 5
      %v829 = vsel %vm773, %v827, %v828
      %v830 = vrot.slane %v352, 5
      %v831 = vrot.slane %v830, 4
      %v832 = vrot.slane %v353, 5
      %v833 = vsel %vm773, %v831, %v832
      %v834 = vrot.slane %v832, 4
      %v835 = vrot.slane %v392, 5
      %v836 = vsel %vm773, %v834, %v835
      %v837 = vrot.slane %v354, 5
      %v838 = vrot.slane %v837, 4
      %v839 = vrot.slane %v355, 5
      %v840 = vsel %vm773, %v838, %v839
      %v841 = vrot.slane %v839, 4
      %v842 = vrot.slane %v393, 5
      %v843 = vsel %vm773, %v841, %v842
      %v844 = vrot.slane %v356, 5
      %v845 = vrot.slane %v844, 4
      %v846 = vrot.slane %v357, 5
      %v847 = vsel %vm773, %v845, %v846
      %v848 = vrot.slane %v846, 4
      %v849 = vrot.slane %v394, 5
      %v850 = vsel %vm773, %v848, %v849
      %v851 = vrot.slane %v358, 5
      %v852 = vrot.slane %v851, 4
      %v853 = vrot.slane %v359, 5
      %v854 = vsel %vm773, %v852, %v853
      %v855 = vrot.slane %v853, 4
      %v856 = vrot.slane %v395, 5
      %v857 = vsel %vm773, %v855, %v856
      %882 = vst [vmem:[#allocation2 + $0x8] sm:$0xf] %v777
      %883 = vst [vmem:[#allocation2 + $0x14] sm:$0xf] %v780
      %884 = vst [vmem:[#allocation2 + $0x20] sm:$0xf] %v784
      %885 = vst [vmem:[#allocation2 + $0x2c] sm:$0xf] %v787
      %886 = vst [vmem:[#allocation2 + $0x38] sm:$0xf] %v791
      %887 = vst [vmem:[#allocation2 + $0x44] sm:$0xf] %v794
      %888 = vst [vmem:[#allocation2 + $0x50] sm:$0xf] %v798
      %889 = vst [vmem:[#allocation2 + $0x5c] sm:$0xf] %v801
      %890 = vst [vmem:[#allocation2 + $0x68] sm:$0xf] %v805
      %891 = vst [vmem:[#allocation2 + $0x74] sm:$0xf] %v808
      %892 = vst [vmem:[#allocation2 + $0x80] sm:$0xf] %v812
      %893 = vst [vmem:[#allocation2 + $0x8c] sm:$0xf] %v815
      %894 = vst [vmem:[#allocation2 + $0x98] sm:$0xf] %v819
      %895 = vst [vmem:[#allocation2 + $0xa4] sm:$0xf] %v822
      %896 = vst [vmem:[#allocation2 + $0xb0] sm:$0xf] %v826
      %897 = vst [vmem:[#allocation2 + $0xbc] sm:$0xf] %v829
      %898 = vst [vmem:[#allocation2 + $0xc8] sm:$0xf] %v833
      %899 = vst [vmem:[#allocation2 + $0xd4] sm:$0xf] %v836
      %900 = vst [vmem:[#allocation2 + $0xe0] sm:$0xf] %v840
      %901 = vst [vmem:[#allocation2 + $0xec] sm:$0xf] %v843
      %902 = vst [vmem:[#allocation2 + $0xf8] sm:$0xf] %v847
      %903 = vst [vmem:[#allocation2 + $0x104] sm:$0xf] %v850
      %904 = vst [vmem:[#allocation2 + $0x110] sm:$0xf] %v854
      %905 = vst [vmem:[#allocation2 + $0x11c] sm:$0xf] %v857
      %v906 = vld [vmem:[#allocation2] sm:$0xff]
      %v907 = vld [vmem:[#allocation2 + $0x8] sm:$0xf]
      %v908 = vld [vmem:[#allocation2 + $0xc] sm:$0xff]
      %v909 = vld [vmem:[#allocation2 + $0x14] sm:$0xf]
      %v910 = vld [vmem:[#allocation2 + $0x18] sm:$0xff]
      %v911 = vld [vmem:[#allocation2 + $0x20] sm:$0xf]
      %v912 = vld [vmem:[#allocation2 + $0x24] sm:$0xff]
      %v913 = vld [vmem:[#allocation2 + $0x2c] sm:$0xf]
      %v914 = vld [vmem:[#allocation2 + $0x30] sm:$0xff]
      %v915 = vld [vmem:[#allocation2 + $0x38] sm:$0xf]
      %v916 = vld [vmem:[#allocation2 + $0x3c] sm:$0xff]
      %v917 = vld [vmem:[#allocation2 + $0x44] sm:$0xf]
      %v918 = vld [vmem:[#allocation2 + $0x48] sm:$0xff]
      %v919 = vld [vmem:[#allocation2 + $0x50] sm:$0xf]
      %v920 = vld [vmem:[#allocation2 + $0x54] sm:$0xff]
      %v921 = vld [vmem:[#allocation2 + $0x5c] sm:$0xf]
      %v922 = vld [vmem:[#allocation2 + $0x60] sm:$0xff]
      %v923 = vld [vmem:[#allocation2 + $0x68] sm:$0xf]
      %v924 = vld [vmem:[#allocation2 + $0x6c] sm:$0xff]
      %v925 = vld [vmem:[#allocation2 + $0x74] sm:$0xf]
      %v926 = vld [vmem:[#allocation2 + $0x78] sm:$0xff]
      %v927 = vld [vmem:[#allocation2 + $0x80] sm:$0xf]
      %v928 = vld [vmem:[#allocation2 + $0x84] sm:$0xff]
      %v929 = vld [vmem:[#allocation2 + $0x8c] sm:$0xf]
      %v930 = vld [vmem:[#allocation2 + $0x90] sm:$0xff]
      %v931 = vld [vmem:[#allocation2 + $0x98] sm:$0xf]
      %v932 = vld [vmem:[#allocation2 + $0x9c] sm:$0xff]
      %v933 = vld [vmem:[#allocation2 + $0xa4] sm:$0xf]
      %v934 = vld [vmem:[#allocation2 + $0xa8] sm:$0xff]
      %v935 = vld [vmem:[#allocation2 + $0xb0] sm:$0xf]
      %v936 = vld [vmem:[#allocation2 + $0xb4] sm:$0xff]
      %v937 = vld [vmem:[#allocation2 + $0xbc] sm:$0xf]
      %v938 = vld [vmem:[#allocation2 + $0xc0] sm:$0xff]
      %v939 = vld [vmem:[#allocation2 + $0xc8] sm:$0xf]
      %v940 = vld [vmem:[#allocation2 + $0xcc] sm:$0xff]
      %v941 = vld [vmem:[#allocation2 + $0xd4] sm:$0xf]
      %v942 = vld [vmem:[#allocation2 + $0xd8] sm:$0xff]
      %v943 = vld [vmem:[#allocation2 + $0xe0] sm:$0xf]
      %v944 = vld [vmem:[#allocation2 + $0xe4] sm:$0xff]
      %v945 = vld [vmem:[#allocation2 + $0xec] sm:$0xf]
      %v946 = vld [vmem:[%s1] sm:$0xf]
      %v947 = vld [vmem:[%s1 + $0x4] sm:$0xf]
      %v948 = vld [vmem:[%s1 + $0x8] sm:$0xf]
      %v949 = vld [vmem:[%s1 + $0xc] sm:$0xf]
      %v950 = vld [vmem:[%s1 + $0x10] sm:$0xf]
      %v951 = vld [vmem:[%s1 + $0x14] sm:$0xf]
      %v952 = vld [vmem:[%s1 + $0x18] sm:$0xf]
      %v953 = vld [vmem:[%s1 + $0x1c] sm:$0xf]
      %v954 = vld [vmem:[%s1 + $0x20] sm:$0xf]
      %v955 = vld [vmem:[%s1 + $0x24] sm:$0xf]
      %v956 = vld [vmem:[%s1 + $0x28] sm:$0xf]
      %v957 = vld [vmem:[%s1 + $0x2c] sm:$0xf]
      %v958 = vld [vmem:[%s1 + $0x30] sm:$0xf]
      %v959 = vld [vmem:[%s1 + $0x34] sm:$0xf]
      %v960 = vld [vmem:[%s1 + $0x38] sm:$0xf]
      %v961 = vld [vmem:[%s1 + $0x3c] sm:$0xf]
      %v962 = vld [vmem:[%s1 + $0x40] sm:$0xf]
      %v963 = vld [vmem:[%s1 + $0x44] sm:$0xf]
      %v964 = vld [vmem:[%s1 + $0x48] sm:$0xf]
      %v965 = vld [vmem:[%s1 + $0x4c] sm:$0xf]
      %v966 = vld [vmem:[%s1 + $0x50] sm:$0xf]
      %v967 = vld [vmem:[%s1 + $0x54] sm:$0xf]
      %v968 = vld [vmem:[%s1 + $0x58] sm:$0xf]
      %v969 = vld [vmem:[%s1 + $0x5c] sm:$0xf]
      %v970 = vld [vmem:[%s1 + $0x60] sm:$0xf]
      %v971 = vld [vmem:[%s1 + $0x64] sm:$0xf]
      %v972 = vld [vmem:[%s1 + $0x68] sm:$0xf]
      %v973 = vld [vmem:[%s1 + $0x6c] sm:$0xf]
      %v974 = vld [vmem:[%s1 + $0x70] sm:$0xf]
      %v975 = vld [vmem:[%s1 + $0x74] sm:$0xf]
      %v976 = vld [vmem:[%s1 + $0x78] sm:$0xf]
      %v977 = vld [vmem:[%s1 + $0x7c] sm:$0xf]
      %v978 = vld [vmem:[%s1 + $0x80] sm:$0xf]
      %v979 = vld [vmem:[%s1 + $0x84] sm:$0xf]
      %v980 = vld [vmem:[%s1 + $0x88] sm:$0xf]
      %v981 = vld [vmem:[%s1 + $0x8c] sm:$0xf]
      %v982 = vld [vmem:[%s1 + $0x90] sm:$0xf]
      %v983 = vld [vmem:[%s1 + $0x94] sm:$0xf]
      %v984 = vld [vmem:[%s1 + $0x98] sm:$0xf]
      %v985 = vld [vmem:[%s1 + $0x9c] sm:$0xf]
      %v986 = vld [vmem:[%s1 + $0xa0] sm:$0xf]
      %v987 = vld [vmem:[%s1 + $0xa4] sm:$0xf]
      %v988 = vld [vmem:[%s1 + $0xa8] sm:$0xf]
      %v989 = vld [vmem:[%s1 + $0xac] sm:$0xf]
      %v990 = vld [vmem:[%s1 + $0xb0] sm:$0xf]
      %v991 = vld [vmem:[%s1 + $0xb4] sm:$0xf]
      %v992 = vld [vmem:[%s1 + $0xb8] sm:$0xf]
      %v993 = vld [vmem:[%s1 + $0xbc] sm:$0xf]
      %s994 = scalar_lea.vmem [#allocation2], 24
      %v995 = vld [vmem:[%s994] sm:$0xff]
      %v996 = vld [vmem:[%s994 + $0x8] sm:$0xf]
      %v997 = vld [vmem:[%s994 + $0xc] sm:$0xff]
      %v998 = vld [vmem:[%s994 + $0x14] sm:$0xf]
      %v999 = vld [vmem:[%s994 + $0x18] sm:$0xff]
      %v1000 = vld [vmem:[%s994 + $0x20] sm:$0xf]
      %v1001 = vld [vmem:[%s994 + $0x24] sm:$0xff]
      %v1002 = vld [vmem:[%s994 + $0x2c] sm:$0xf]
      %v1003 = vld [vmem:[%s994 + $0x30] sm:$0xff]
      %v1004 = vld [vmem:[%s994 + $0x38] sm:$0xf]
      %v1005 = vld [vmem:[%s994 + $0x3c] sm:$0xff]
      %v1006 = vld [vmem:[%s994 + $0x44] sm:$0xf]
      %v1007 = vld [vmem:[%s994 + $0x48] sm:$0xff]
      %v1008 = vld [vmem:[%s994 + $0x50] sm:$0xf]
      %v1009 = vld [vmem:[%s994 + $0x54] sm:$0xff]
      %v1010 = vld [vmem:[%s994 + $0x5c] sm:$0xf]
      %v1011 = vld [vmem:[%s994 + $0x60] sm:$0xff]
      %v1012 = vld [vmem:[%s994 + $0x68] sm:$0xf]
      %v1013 = vld [vmem:[%s994 + $0x6c] sm:$0xff]
      %v1014 = vld [vmem:[%s994 + $0x74] sm:$0xf]
      %v1015 = vld [vmem:[%s994 + $0x78] sm:$0xff]
      %v1016 = vld [vmem:[%s994 + $0x80] sm:$0xf]
      %v1017 = vld [vmem:[%s994 + $0x84] sm:$0xff]
      %v1018 = vld [vmem:[%s994 + $0x8c] sm:$0xf]
      %v1019 = vld [vmem:[%s994 + $0x90] sm:$0xff]
      %v1020 = vld [vmem:[%s994 + $0x98] sm:$0xf]
      %v1021 = vld [vmem:[%s994 + $0x9c] sm:$0xff]
      %v1022 = vld [vmem:[%s994 + $0xa4] sm:$0xf]
      %v1023 = vld [vmem:[%s994 + $0xa8] sm:$0xff]
      %v1024 = vld [vmem:[%s994 + $0xb0] sm:$0xf]
      %v1025 = vld [vmem:[%s994 + $0xb4] sm:$0xff]
      %v1026 = vld [vmem:[%s994 + $0xbc] sm:$0xf]
      %v1027 = vld [vmem:[%s994 + $0xc0] sm:$0xff]
      %v1028 = vld [vmem:[%s994 + $0xc8] sm:$0xf]
      %v1029 = vld [vmem:[%s994 + $0xcc] sm:$0xff]
      %v1030 = vld [vmem:[%s994 + $0xd4] sm:$0xf]
      %v1031 = vld [vmem:[%s994 + $0xd8] sm:$0xff]
      %v1032 = vld [vmem:[%s994 + $0xe0] sm:$0xf]
      %v1033 = vld [vmem:[%s994 + $0xe4] sm:$0xff]
      %v1034 = vld [vmem:[%s994 + $0xec] sm:$0xf]
      %s1035 = scalar_lea.vmem %s1, 192
      %v1036 = vld [vmem:[%s1035] sm:$0xf]
      %v1037 = vld [vmem:[%s1035 + $0x4] sm:$0xf]
      %v1038 = vld [vmem:[%s1035 + $0x8] sm:$0xf]
      %v1039 = vld [vmem:[%s1035 + $0xc] sm:$0xf]
      %v1040 = vld [vmem:[%s1035 + $0x10] sm:$0xf]
      %v1041 = vld [vmem:[%s1035 + $0x14] sm:$0xf]
      %v1042 = vld [vmem:[%s1035 + $0x18] sm:$0xf]
      %v1043 = vld [vmem:[%s1035 + $0x1c] sm:$0xf]
      %v1044 = vld [vmem:[%s1035 + $0x20] sm:$0xf]
      %v1045 = vld [vmem:[%s1035 + $0x24] sm:$0xf]
      %v1046 = vld [vmem:[%s1035 + $0x28] sm:$0xf]
      %v1047 = vld [vmem:[%s1035 + $0x2c] sm:$0xf]
      %v1048 = vld [vmem:[%s1035 + $0x30] sm:$0xf]
      %v1049 = vld [vmem:[%s1035 + $0x34] sm:$0xf]
      %v1050 = vld [vmem:[%s1035 + $0x38] sm:$0xf]
      %v1051 = vld [vmem:[%s1035 + $0x3c] sm:$0xf]
      %v1052 = vld [vmem:[%s1035 + $0x40] sm:$0xf]
      %v1053 = vld [vmem:[%s1035 + $0x44] sm:$0xf]
      %v1054 = vld [vmem:[%s1035 + $0x48] sm:$0xf]
      %v1055 = vld [vmem:[%s1035 + $0x4c] sm:$0xf]
      %v1056 = vld [vmem:[%s1035 + $0x50] sm:$0xf]
      %v1057 = vld [vmem:[%s1035 + $0x54] sm:$0xf]
      %v1058 = vld [vmem:[%s1035 + $0x58] sm:$0xf]
      %v1059 = vld [vmem:[%s1035 + $0x5c] sm:$0xf]
      %v1060 = vld [vmem:[%s1035 + $0x60] sm:$0xf]
      %v1061 = vld [vmem:[%s1035 + $0x64] sm:$0xf]
      %v1062 = vld [vmem:[%s1035 + $0x68] sm:$0xf]
      %v1063 = vld [vmem:[%s1035 + $0x6c] sm:$0xf]
      %v1064 = vld [vmem:[%s1035 + $0x70] sm:$0xf]
      %v1065 = vld [vmem:[%s1035 + $0x74] sm:$0xf]
      %v1066 = vld [vmem:[%s1035 + $0x78] sm:$0xf]
      %v1067 = vld [vmem:[%s1035 + $0x7c] sm:$0xf]
      %v1068 = vld [vmem:[%s1035 + $0x80] sm:$0xf]
      %v1069 = vld [vmem:[%s1035 + $0x84] sm:$0xf]
      %v1070 = vld [vmem:[%s1035 + $0x88] sm:$0xf]
      %v1071 = vld [vmem:[%s1035 + $0x8c] sm:$0xf]
      %v1072 = vld [vmem:[%s1035 + $0x90] sm:$0xf]
      %v1073 = vld [vmem:[%s1035 + $0x94] sm:$0xf]
      %v1074 = vld [vmem:[%s1035 + $0x98] sm:$0xf]
      %v1075 = vld [vmem:[%s1035 + $0x9c] sm:$0xf]
      %v1076 = vld [vmem:[%s1035 + $0xa0] sm:$0xf]
      %v1077 = vld [vmem:[%s1035 + $0xa4] sm:$0xf]
      %v1078 = vld [vmem:[%s1035 + $0xa8] sm:$0xf]
      %v1079 = vld [vmem:[%s1035 + $0xac] sm:$0xf]
      %v1080 = vld [vmem:[%s1035 + $0xb0] sm:$0xf]
      %v1081 = vld [vmem:[%s1035 + $0xb4] sm:$0xf]
      %v1082 = vld [vmem:[%s1035 + $0xb8] sm:$0xf]
      %v1083 = vld [vmem:[%s1035 + $0xbc] sm:$0xf]
      %v1124 = vunpack.c.l.b16 %v995
      %v1125 = vunpack.c.h.b16 %v995
      %v1126 = vunpack.c.l.b16 %v996
      %v1127 = vunpack.c.l.b16 %v997
      %v1128 = vunpack.c.h.b16 %v997
      %v1129 = vunpack.c.l.b16 %v998
      %v1130 = vunpack.c.l.b16 %v999
      %v1131 = vunpack.c.h.b16 %v999
      %v1132 = vunpack.c.l.b16 %v1000
      %v1133 = vunpack.c.l.b16 %v1001
      %v1134 = vunpack.c.h.b16 %v1001
      %v1135 = vunpack.c.l.b16 %v1002
      %v1136 = vunpack.c.l.b16 %v1003
      %v1137 = vunpack.c.h.b16 %v1003
      %v1138 = vunpack.c.l.b16 %v1004
      %v1139 = vunpack.c.l.b16 %v1005
      %v1140 = vunpack.c.h.b16 %v1005
      %v1141 = vunpack.c.l.b16 %v1006
      %v1142 = vunpack.c.l.b16 %v1007
      %v1143 = vunpack.c.h.b16 %v1007
      %v1144 = vunpack.c.l.b16 %v1008
      %v1145 = vunpack.c.l.b16 %v1009
      %v1146 = vunpack.c.h.b16 %v1009
      %v1147 = vunpack.c.l.b16 %v1010
      %v1148 = vunpack.c.l.b16 %v1011
      %v1149 = vunpack.c.h.b16 %v1011
      %v1150 = vunpack.c.l.b16 %v1012
      %v1151 = vunpack.c.l.b16 %v1013
      %v1152 = vunpack.c.h.b16 %v1013
      %v1153 = vunpack.c.l.b16 %v1014
      %v1154 = vunpack.c.l.b16 %v1015
      %v1155 = vunpack.c.h.b16 %v1015
      %v1156 = vunpack.c.l.b16 %v1016
      %v1157 = vunpack.c.l.b16 %v1017
      %v1158 = vunpack.c.h.b16 %v1017
      %v1159 = vunpack.c.l.b16 %v1018
      %v1160 = vunpack.c.l.b16 %v1019
      %v1161 = vunpack.c.h.b16 %v1019
      %v1162 = vunpack.c.l.b16 %v1020
      %v1163 = vunpack.c.l.b16 %v1021
      %v1164 = vunpack.c.h.b16 %v1021
      %v1165 = vunpack.c.l.b16 %v1022
      %v1166 = vunpack.c.l.b16 %v1023
      %v1167 = vunpack.c.h.b16 %v1023
      %v1168 = vunpack.c.l.b16 %v1024
      %v1169 = vunpack.c.l.b16 %v1025
      %v1170 = vunpack.c.h.b16 %v1025
      %v1171 = vunpack.c.l.b16 %v1026
      %v1172 = vunpack.c.l.b16 %v1027
      %v1173 = vunpack.c.h.b16 %v1027
      %v1174 = vunpack.c.l.b16 %v1028
      %v1175 = vunpack.c.l.b16 %v1029
      %v1176 = vunpack.c.h.b16 %v1029
      %v1177 = vunpack.c.l.b16 %v1030
      %v1178 = vunpack.c.l.b16 %v1031
      %v1179 = vunpack.c.h.b16 %v1031
      %v1180 = vunpack.c.l.b16 %v1032
      %v1181 = vunpack.c.l.b16 %v1033
      %v1182 = vunpack.c.h.b16 %v1033
      %v1183 = vunpack.c.l.b16 %v1034
      %v1184 = vpack.c.b16 %v1127, %v1124
      %v1185 = vpack.c.b16 %v1128, %v1125
      %v1186 = vpack.c.b16 %v1129, %v1126
      %v1187 = vpack.c.b16 %v1133, %v1130
      %v1188 = vpack.c.b16 %v1134, %v1131
      %v1189 = vpack.c.b16 %v1135, %v1132
      %v1190 = vpack.c.b16 %v1139, %v1136
      %v1191 = vpack.c.b16 %v1140, %v1137
      %v1192 = vpack.c.b16 %v1141, %v1138
      %v1193 = vpack.c.b16 %v1145, %v1142
      %v1194 = vpack.c.b16 %v1146, %v1143
      %v1195 = vpack.c.b16 %v1147, %v1144
      %v1196 = vpack.c.b16 %v1151, %v1148
      %v1197 = vpack.c.b16 %v1152, %v1149
      %v1198 = vpack.c.b16 %v1153, %v1150
      %v1199 = vpack.c.b16 %v1157, %v1154
      %v1200 = vpack.c.b16 %v1158, %v1155
      %v1201 = vpack.c.b16 %v1159, %v1156
      %v1202 = vpack.c.b16 %v1163, %v1160
      %v1203 = vpack.c.b16 %v1164, %v1161
      %v1204 = vpack.c.b16 %v1165, %v1162
      %v1205 = vpack.c.b16 %v1169, %v1166
      %v1206 = vpack.c.b16 %v1170, %v1167
      %v1207 = vpack.c.b16 %v1171, %v1168
      %v1208 = vpack.c.b16 %v1175, %v1172
      %v1209 = vpack.c.b16 %v1176, %v1173
      %v1210 = vpack.c.b16 %v1177, %v1174
      %v1211 = vpack.c.b16 %v1181, %v1178
      %v1212 = vpack.c.b16 %v1182, %v1179
      %v1213 = vpack.c.b16 %v1183, %v1180
      %v1292 = vunpack.c.l.b16 %v1036
      %v1293 = vunpack.c.l.b16 %v1037
      %v1294 = vunpack.c.l.b16 %v1038
      %v1295 = vunpack.c.l.b16 %v1039
      %v1296 = vunpack.c.l.b16 %v1040
      %v1297 = vunpack.c.l.b16 %v1041
      %v1298 = vunpack.c.l.b16 %v1042
      %v1299 = vunpack.c.l.b16 %v1043
      %v1300 = vunpack.c.l.b16 %v1044
      %v1301 = vunpack.c.l.b16 %v1045
      %v1302 = vunpack.c.l.b16 %v1046
      %v1303 = vunpack.c.l.b16 %v1047
      %v1304 = vunpack.c.l.b16 %v1048
      %v1305 = vunpack.c.l.b16 %v1049
      %v1306 = vunpack.c.l.b16 %v1050
      %v1307 = vunpack.c.l.b16 %v1051
      %v1308 = vunpack.c.l.b16 %v1052
      %v1309 = vunpack.c.l.b16 %v1053
      %v1310 = vunpack.c.l.b16 %v1054
      %v1311 = vunpack.c.l.b16 %v1055
      %v1312 = vunpack.c.l.b16 %v1056
      %v1313 = vunpack.c.l.b16 %v1057
      %v1314 = vunpack.c.l.b16 %v1058
      %v1315 = vunpack.c.l.b16 %v1059
      %v1316 = vunpack.c.l.b16 %v1060
      %v1317 = vunpack.c.l.b16 %v1061
      %v1318 = vunpack.c.l.b16 %v1062
      %v1319 = vunpack.c.l.b16 %v1063
      %v1320 = vunpack.c.l.b16 %v1064
      %v1321 = vunpack.c.l.b16 %v1065
      %v1322 = vunpack.c.l.b16 %v1066
      %v1323 = vunpack.c.l.b16 %v1067
      %v1324 = vunpack.c.l.b16 %v1068
      %v1325 = vunpack.c.l.b16 %v1069
      %v1326 = vunpack.c.l.b16 %v1070
      %v1327 = vunpack.c.l.b16 %v1071
      %v1328 = vunpack.c.l.b16 %v1072
      %v1329 = vunpack.c.l.b16 %v1073
      %v1330 = vunpack.c.l.b16 %v1074
      %v1331 = vunpack.c.l.b16 %v1075
      %v1332 = vunpack.c.l.b16 %v1076
      %v1333 = vunpack.c.l.b16 %v1077
      %v1334 = vunpack.c.l.b16 %v1078
      %v1335 = vunpack.c.l.b16 %v1079
      %v1336 = vunpack.c.l.b16 %v1080
      %v1337 = vunpack.c.l.b16 %v1081
      %v1338 = vunpack.c.l.b16 %v1082
      %v1339 = vunpack.c.l.b16 %v1083
      %v1340 = vpack.c.b16 %v1293, %v1292
      %v1341 = vpack.c.b16 %v1295, %v1294
      %v1342 = vpack.c.b16 %v1297, %v1296
      %v1343 = vpack.c.b16 %v1299, %v1298
      %v1344 = vpack.c.b16 %v1301, %v1300
      %v1345 = vpack.c.b16 %v1303, %v1302
      %v1346 = vpack.c.b16 %v1305, %v1304
      %v1347 = vpack.c.b16 %v1307, %v1306
      %v1348 = vpack.c.b16 %v1309, %v1308
      %v1349 = vpack.c.b16 %v1311, %v1310
      %v1350 = vpack.c.b16 %v1313, %v1312
      %v1351 = vpack.c.b16 %v1315, %v1314
      %v1352 = vpack.c.b16 %v1317, %v1316
      %v1353 = vpack.c.b16 %v1319, %v1318
      %v1354 = vpack.c.b16 %v1321, %v1320
      %v1355 = vpack.c.b16 %v1323, %v1322
      %v1356 = vpack.c.b16 %v1325, %v1324
      %v1357 = vpack.c.b16 %v1327, %v1326
      %v1358 = vpack.c.b16 %v1329, %v1328
      %v1359 = vpack.c.b16 %v1331, %v1330
      %v1360 = vpack.c.b16 %v1333, %v1332
      %v1361 = vpack.c.b16 %v1335, %v1334
      %v1362 = vpack.c.b16 %v1337, %v1336
      %v1363 = vpack.c.b16 %v1339, %v1338
      %1388 = vmatpush.bf16.msra.mxu0 %v1347
      %1389 = vmatpush.bf16.msra.mxu0 %v1346
      %1390 = vmatpush.bf16.msra.mxu0 %v1345
      %1391 = vmatpush.bf16.msra.mxu0 %v1344
      %1392 = vmatpush.bf16.msra.mxu0 %v1343
      %1393 = vmatpush.bf16.msra.mxu0 %v1342
      %1394 = vmatpush.bf16.msra.mxu0 %v1341
      %1395 = vmatpush.bf16.msra.mxu0 %v1340
      %1396 = vmatmul.bf16.gmra.mxu0 %v1184
      %v1397 = vpop.f32.mrf.mxu0
      %v1398 = vadd.f32 0.0, %v1397
      %v1399 = vpop.f32.mrf.mxu0
      %v1400 = vadd.f32 0.0, %v1399
      %1401 = vmatmul.bf16.gmra.mxu0 %v1187
      %v1402 = vpop.f32.mrf.mxu0
      %v1403 = vadd.f32 0.0, %v1402
      %v1404 = vpop.f32.mrf.mxu0
      %v1405 = vadd.f32 0.0, %v1404
      %1406 = vmatmul.bf16.gmra.mxu0 %v1190
      %v1407 = vpop.f32.mrf.mxu0
      %v1408 = vadd.f32 0.0, %v1407
      %v1409 = vpop.f32.mrf.mxu0
      %v1410 = vadd.f32 0.0, %v1409
      %1411 = vmatmul.bf16.gmra.mxu0 %v1193
      %v1412 = vpop.f32.mrf.mxu0
      %v1413 = vadd.f32 0.0, %v1412
      %v1414 = vpop.f32.mrf.mxu0
      %v1415 = vadd.f32 0.0, %v1414
      %1416 = vmatmul.bf16.gmra.mxu0 %v1196
      %v1417 = vpop.f32.mrf.mxu0
      %v1418 = vadd.f32 0.0, %v1417
      %v1419 = vpop.f32.mrf.mxu0
      %v1420 = vadd.f32 0.0, %v1419
      %1421 = vmatmul.bf16.gmra.mxu0 %v1199
      %v1422 = vpop.f32.mrf.mxu0
      %v1423 = vadd.f32 0.0, %v1422
      %v1424 = vpop.f32.mrf.mxu0
      %v1425 = vadd.f32 0.0, %v1424
      %1426 = vmatmul.bf16.gmra.mxu0 %v1202
      %v1427 = vpop.f32.mrf.mxu0
      %v1428 = vadd.f32 0.0, %v1427
      %v1429 = vpop.f32.mrf.mxu0
      %v1430 = vadd.f32 0.0, %v1429
      %1431 = vmatmul.bf16.gmra.mxu0 %v1205
      %v1432 = vpop.f32.mrf.mxu0
      %v1433 = vadd.f32 0.0, %v1432
      %v1434 = vpop.f32.mrf.mxu0
      %v1435 = vadd.f32 0.0, %v1434
      %1436 = vmatmul.bf16.gmra.mxu0 %v1208
      %v1437 = vpop.f32.mrf.mxu0
      %v1438 = vadd.f32 0.0, %v1437
      %v1439 = vpop.f32.mrf.mxu0
      %v1440 = vadd.f32 0.0, %v1439
      %1441 = vmatmul.bf16.gmra.mxu0 %v1211
      %v1442 = vpop.f32.mrf.mxu0
      %v1443 = vadd.f32 0.0, %v1442
      %v1444 = vpop.f32.mrf.mxu0
      %v1445 = vadd.f32 0.0, %v1444
      %1446 = vdwg.mxu0
      %1447 = vmatpush.bf16.msra.mxu0 %v1355
      %1448 = vmatpush.bf16.msra.mxu0 %v1354
      %1449 = vmatpush.bf16.msra.mxu0 %v1353
      %1450 = vmatpush.bf16.msra.mxu0 %v1352
      %1451 = vmatpush.bf16.msra.mxu0 %v1351
      %1452 = vmatpush.bf16.msra.mxu0 %v1350
      %1453 = vmatpush.bf16.msra.mxu0 %v1349
      %1454 = vmatpush.bf16.msra.mxu0 %v1348
      %1455 = vmatmul.bf16.gmra.mxu0 %v1185
      %v1456 = vpop.f32.mrf.mxu0
      %v1457 = vadd.f32 %v1398, %v1456
      %v1458 = vpop.f32.mrf.mxu0
      %v1459 = vadd.f32 %v1400, %v1458
      %1460 = vmatmul.bf16.gmra.mxu0 %v1188
      %v1461 = vpop.f32.mrf.mxu0
      %v1462 = vadd.f32 %v1403, %v1461
      %v1463 = vpop.f32.mrf.mxu0
      %v1464 = vadd.f32 %v1405, %v1463
      %1465 = vmatmul.bf16.gmra.mxu0 %v1191
      %v1466 = vpop.f32.mrf.mxu0
      %v1467 = vadd.f32 %v1408, %v1466
      %v1468 = vpop.f32.mrf.mxu0
      %v1469 = vadd.f32 %v1410, %v1468
      %1470 = vmatmul.bf16.gmra.mxu0 %v1194
      %v1471 = vpop.f32.mrf.mxu0
      %v1472 = vadd.f32 %v1413, %v1471
      %v1473 = vpop.f32.mrf.mxu0
      %v1474 = vadd.f32 %v1415, %v1473
      %1475 = vmatmul.bf16.gmra.mxu0 %v1197
      %v1476 = vpop.f32.mrf.mxu0
      %v1477 = vadd.f32 %v1418, %v1476
      %v1478 = vpop.f32.mrf.mxu0
      %v1479 = vadd.f32 %v1420, %v1478
      %1480 = vmatmul.bf16.gmra.mxu0 %v1200
      %v1481 = vpop.f32.mrf.mxu0
      %v1482 = vadd.f32 %v1423, %v1481
      %v1483 = vpop.f32.mrf.mxu0
      %v1484 = vadd.f32 %v1425, %v1483
      %1485 = vmatmul.bf16.gmra.mxu0 %v1203
      %v1486 = vpop.f32.mrf.mxu0
      %v1487 = vadd.f32 %v1428, %v1486
      %v1488 = vpop.f32.mrf.mxu0
      %v1489 = vadd.f32 %v1430, %v1488
      %1490 = vmatmul.bf16.gmra.mxu0 %v1206
      %v1491 = vpop.f32.mrf.mxu0
      %v1492 = vadd.f32 %v1433, %v1491
      %v1493 = vpop.f32.mrf.mxu0
      %v1494 = vadd.f32 %v1435, %v1493
      %1495 = vmatmul.bf16.gmra.mxu0 %v1209
      %v1496 = vpop.f32.mrf.mxu0
      %v1497 = vadd.f32 %v1438, %v1496
      %v1498 = vpop.f32.mrf.mxu0
      %v1499 = vadd.f32 %v1440, %v1498
      %1500 = vmatmul.bf16.gmra.mxu0 %v1212
      %v1501 = vpop.f32.mrf.mxu0
      %v1502 = vadd.f32 %v1443, %v1501
      %v1503 = vpop.f32.mrf.mxu0
      %v1504 = vadd.f32 %v1445, %v1503
      %1505 = vdwg.mxu0
      %1506 = vmatpush.bf16.msra.mxu0 %v1363
      %1507 = vmatpush.bf16.msra.mxu0 %v1362
      %1508 = vmatpush.bf16.msra.mxu0 %v1361
      %1509 = vmatpush.bf16.msra.mxu0 %v1360
      %1510 = vmatpush.bf16.msra.mxu0 %v1359
      %1511 = vmatpush.bf16.msra.mxu0 %v1358
      %1512 = vmatpush.bf16.msra.mxu0 %v1357
      %1513 = vmatpush.bf16.msra.mxu0 %v1356
      %1514 = vmatmul.bf16.gmra.mxu0 %v1186
      %v1515 = vpop.f32.mrf.mxu0
      %v1516 = vadd.f32 %v1457, %v1515
      %v1517 = vpop.f32.mrf.mxu0
      %v1518 = vadd.f32 %v1459, %v1517
      %1519 = vmatmul.bf16.gmra.mxu0 %v1189
      %v1520 = vpop.f32.mrf.mxu0
      %v1521 = vadd.f32 %v1462, %v1520
      %v1522 = vpop.f32.mrf.mxu0
      %v1523 = vadd.f32 %v1464, %v1522
      %1524 = vmatmul.bf16.gmra.mxu0 %v1192
      %v1525 = vpop.f32.mrf.mxu0
      %v1526 = vadd.f32 %v1467, %v1525
      %v1527 = vpop.f32.mrf.mxu0
      %v1528 = vadd.f32 %v1469, %v1527
      %1529 = vmatmul.bf16.gmra.mxu0 %v1195
      %v1530 = vpop.f32.mrf.mxu0
      %v1531 = vadd.f32 %v1472, %v1530
      %v1532 = vpop.f32.mrf.mxu0
      %v1533 = vadd.f32 %v1474, %v1532
      %1534 = vmatmul.bf16.gmra.mxu0 %v1198
      %v1535 = vpop.f32.mrf.mxu0
      %v1536 = vadd.f32 %v1477, %v1535
      %v1537 = vpop.f32.mrf.mxu0
      %v1538 = vadd.f32 %v1479, %v1537
      %1539 = vmatmul.bf16.gmra.mxu0 %v1201
      %v1540 = vpop.f32.mrf.mxu0
      %v1541 = vadd.f32 %v1482, %v1540
      %v1542 = vpop.f32.mrf.mxu0
      %v1543 = vadd.f32 %v1484, %v1542
      %1544 = vmatmul.bf16.gmra.mxu0 %v1204
      %v1545 = vpop.f32.mrf.mxu0
      %v1546 = vadd.f32 %v1487, %v1545
      %v1547 = vpop.f32.mrf.mxu0
      %v1548 = vadd.f32 %v1489, %v1547
      %1549 = vmatmul.bf16.gmra.mxu0 %v1207
      %v1550 = vpop.f32.mrf.mxu0
      %v1551 = vadd.f32 %v1492, %v1550
      %v1552 = vpop.f32.mrf.mxu0
      %v1553 = vadd.f32 %v1494, %v1552
      %1554 = vmatmul.bf16.gmra.mxu0 %v1210
      %v1555 = vpop.f32.mrf.mxu0
      %v1556 = vadd.f32 %v1497, %v1555
      %v1557 = vpop.f32.mrf.mxu0
      %v1558 = vadd.f32 %v1499, %v1557
      %1559 = vmatmul.bf16.gmra.mxu0 %v1213
      %v1560 = vpop.f32.mrf.mxu0
      %v1561 = vadd.f32 %v1502, %v1560
      %v1562 = vpop.f32.mrf.mxu0
      %v1563 = vadd.f32 %v1504, %v1562
      %1564 = vdwg.mxu0
      %v1605 = vunpack.c.l.b16 %v906
      %v1606 = vunpack.c.h.b16 %v906
      %v1607 = vunpack.c.l.b16 %v907
      %v1608 = vunpack.c.l.b16 %v908
      %v1609 = vunpack.c.h.b16 %v908
      %v1610 = vunpack.c.l.b16 %v909
      %v1611 = vunpack.c.l.b16 %v910
      %v1612 = vunpack.c.h.b16 %v910
      %v1613 = vunpack.c.l.b16 %v911
      %v1614 = vunpack.c.l.b16 %v912
      %v1615 = vunpack.c.h.b16 %v912
      %v1616 = vunpack.c.l.b16 %v913
      %v1617 = vunpack.c.l.b16 %v914
      %v1618 = vunpack.c.h.b16 %v914
      %v1619 = vunpack.c.l.b16 %v915
      %v1620 = vunpack.c.l.b16 %v916
      %v1621 = vunpack.c.h.b16 %v916
      %v1622 = vunpack.c.l.b16 %v917
      %v1623 = vunpack.c.l.b16 %v918
      %v1624 = vunpack.c.h.b16 %v918
      %v1625 = vunpack.c.l.b16 %v919
      %v1626 = vunpack.c.l.b16 %v920
      %v1627 = vunpack.c.h.b16 %v920
      %v1628 = vunpack.c.l.b16 %v921
      %v1629 = vunpack.c.l.b16 %v922
      %v1630 = vunpack.c.h.b16 %v922
      %v1631 = vunpack.c.l.b16 %v923
      %v1632 = vunpack.c.l.b16 %v924
      %v1633 = vunpack.c.h.b16 %v924
      %v1634 = vunpack.c.l.b16 %v925
      %v1635 = vunpack.c.l.b16 %v926
      %v1636 = vunpack.c.h.b16 %v926
      %v1637 = vunpack.c.l.b16 %v927
      %v1638 = vunpack.c.l.b16 %v928
      %v1639 = vunpack.c.h.b16 %v928
      %v1640 = vunpack.c.l.b16 %v929
      %v1641 = vunpack.c.l.b16 %v930
      %v1642 = vunpack.c.h.b16 %v930
      %v1643 = vunpack.c.l.b16 %v931
      %v1644 = vunpack.c.l.b16 %v932
      %v1645 = vunpack.c.h.b16 %v932
      %v1646 = vunpack.c.l.b16 %v933
      %v1647 = vunpack.c.l.b16 %v934
      %v1648 = vunpack.c.h.b16 %v934
      %v1649 = vunpack.c.l.b16 %v935
      %v1650 = vunpack.c.l.b16 %v936
      %v1651 = vunpack.c.h.b16 %v936
      %v1652 = vunpack.c.l.b16 %v937
      %v1653 = vunpack.c.l.b16 %v938
      %v1654 = vunpack.c.h.b16 %v938
      %v1655 = vunpack.c.l.b16 %v939
      %v1656 = vunpack.c.l.b16 %v940
      %v1657 = vunpack.c.h.b16 %v940
      %v1658 = vunpack.c.l.b16 %v941
      %v1659 = vunpack.c.l.b16 %v942
      %v1660 = vunpack.c.h.b16 %v942
      %v1661 = vunpack.c.l.b16 %v943
      %v1662 = vunpack.c.l.b16 %v944
      %v1663 = vunpack.c.h.b16 %v944
      %v1664 = vunpack.c.l.b16 %v945
      %v1665 = vpack.c.b16 %v1608, %v1605
      %v1666 = vpack.c.b16 %v1609, %v1606
      %v1667 = vpack.c.b16 %v1610, %v1607
      %v1668 = vpack.c.b16 %v1614, %v1611
      %v1669 = vpack.c.b16 %v1615, %v1612
      %v1670 = vpack.c.b16 %v1616, %v1613
      %v1671 = vpack.c.b16 %v1620, %v1617
      %v1672 = vpack.c.b16 %v1621, %v1618
      %v1673 = vpack.c.b16 %v1622, %v1619
      %v1674 = vpack.c.b16 %v1626, %v1623
      %v1675 = vpack.c.b16 %v1627, %v1624
      %v1676 = vpack.c.b16 %v1628, %v1625
      %v1677 = vpack.c.b16 %v1632, %v1629
      %v1678 = vpack.c.b16 %v1633, %v1630
      %v1679 = vpack.c.b16 %v1634, %v1631
      %v1680 = vpack.c.b16 %v1638, %v1635
      %v1681 = vpack.c.b16 %v1639, %v1636
      %v1682 = vpack.c.b16 %v1640, %v1637
      %v1683 = vpack.c.b16 %v1644, %v1641
      %v1684 = vpack.c.b16 %v1645, %v1642
      %v1685 = vpack.c.b16 %v1646, %v1643
      %v1686 = vpack.c.b16 %v1650, %v1647
      %v1687 = vpack.c.b16 %v1651, %v1648
      %v1688 = vpack.c.b16 %v1652, %v1649
      %v1689 = vpack.c.b16 %v1656, %v1653
      %v1690 = vpack.c.b16 %v1657, %v1654
      %v1691 = vpack.c.b16 %v1658, %v1655
      %v1692 = vpack.c.b16 %v1662, %v1659
      %v1693 = vpack.c.b16 %v1663, %v1660
      %v1694 = vpack.c.b16 %v1664, %v1661
      %v1773 = vunpack.c.l.b16 %v946
      %v1774 = vunpack.c.l.b16 %v947
      %v1775 = vunpack.c.l.b16 %v948
      %v1776 = vunpack.c.l.b16 %v949
      %v1777 = vunpack.c.l.b16 %v950
      %v1778 = vunpack.c.l.b16 %v951
      %v1779 = vunpack.c.l.b16 %v952
      %v1780 = vunpack.c.l.b16 %v953
      %v1781 = vunpack.c.l.b16 %v954
      %v1782 = vunpack.c.l.b16 %v955
      %v1783 = vunpack.c.l.b16 %v956
      %v1784 = vunpack.c.l.b16 %v957
      %v1785 = vunpack.c.l.b16 %v958
      %v1786 = vunpack.c.l.b16 %v959
      %v1787 = vunpack.c.l.b16 %v960
      %v1788 = vunpack.c.l.b16 %v961
      %v1789 = vunpack.c.l.b16 %v962
      %v1790 = vunpack.c.l.b16 %v963
      %v1791 = vunpack.c.l.b16 %v964
      %v1792 = vunpack.c.l.b16 %v965
      %v1793 = vunpack.c.l.b16 %v966
      %v1794 = vunpack.c.l.b16 %v967
      %v1795 = vunpack.c.l.b16 %v968
      %v1796 = vunpack.c.l.b16 %v969
      %v1797 = vunpack.c.l.b16 %v970
      %v1798 = vunpack.c.l.b16 %v971
      %v1799 = vunpack.c.l.b16 %v972
      %v1800 = vunpack.c.l.b16 %v973
      %v1801 = vunpack.c.l.b16 %v974
      %v1802 = vunpack.c.l.b16 %v975
      %v1803 = vunpack.c.l.b16 %v976
      %v1804 = vunpack.c.l.b16 %v977
      %v1805 = vunpack.c.l.b16 %v978
      %v1806 = vunpack.c.l.b16 %v979
      %v1807 = vunpack.c.l.b16 %v980
      %v1808 = vunpack.c.l.b16 %v981
      %v1809 = vunpack.c.l.b16 %v982
      %v1810 = vunpack.c.l.b16 %v983
      %v1811 = vunpack.c.l.b16 %v984
      %v1812 = vunpack.c.l.b16 %v985
      %v1813 = vunpack.c.l.b16 %v986
      %v1814 = vunpack.c.l.b16 %v987
      %v1815 = vunpack.c.l.b16 %v988
      %v1816 = vunpack.c.l.b16 %v989
      %v1817 = vunpack.c.l.b16 %v990
      %v1818 = vunpack.c.l.b16 %v991
      %v1819 = vunpack.c.l.b16 %v992
      %v1820 = vunpack.c.l.b16 %v993
      %v1821 = vpack.c.b16 %v1774, %v1773
      %v1822 = vpack.c.b16 %v1776, %v1775
      %v1823 = vpack.c.b16 %v1778, %v1777
      %v1824 = vpack.c.b16 %v1780, %v1779
      %v1825 = vpack.c.b16 %v1782, %v1781
      %v1826 = vpack.c.b16 %v1784, %v1783
      %v1827 = vpack.c.b16 %v1786, %v1785
      %v1828 = vpack.c.b16 %v1788, %v1787
      %v1829 = vpack.c.b16 %v1790, %v1789
      %v1830 = vpack.c.b16 %v1792, %v1791
      %v1831 = vpack.c.b16 %v1794, %v1793
      %v1832 = vpack.c.b16 %v1796, %v1795
      %v1833 = vpack.c.b16 %v1798, %v1797
      %v1834 = vpack.c.b16 %v1800, %v1799
      %v1835 = vpack.c.b16 %v1802, %v1801
      %v1836 = vpack.c.b16 %v1804, %v1803
      %v1837 = vpack.c.b16 %v1806, %v1805
      %v1838 = vpack.c.b16 %v1808, %v1807
      %v1839 = vpack.c.b16 %v1810, %v1809
      %v1840 = vpack.c.b16 %v1812, %v1811
      %v1841 = vpack.c.b16 %v1814, %v1813
      %v1842 = vpack.c.b16 %v1816, %v1815
      %v1843 = vpack.c.b16 %v1818, %v1817
      %v1844 = vpack.c.b16 %v1820, %v1819
      %1869 = vmatpush.bf16.msra.mxu0 %v1828
      %1870 = vmatpush.bf16.msra.mxu0 %v1827
      %1871 = vmatpush.bf16.msra.mxu0 %v1826
      %1872 = vmatpush.bf16.msra.mxu0 %v1825
      %1873 = vmatpush.bf16.msra.mxu0 %v1824
      %1874 = vmatpush.bf16.msra.mxu0 %v1823
      %1875 = vmatpush.bf16.msra.mxu0 %v1822
      %1876 = vmatpush.bf16.msra.mxu0 %v1821
      %1877 = vmatmul.bf16.gmra.mxu0 %v1665
      %v1878 = vpop.f32.mrf.mxu0
      %v1879 = vadd.f32 %v1516, %v1878
      %v1880 = vpop.f32.mrf.mxu0
      %v1881 = vadd.f32 %v1518, %v1880
      %1882 = vmatmul.bf16.gmra.mxu0 %v1668
      %v1883 = vpop.f32.mrf.mxu0
      %v1884 = vadd.f32 %v1521, %v1883
      %v1885 = vpop.f32.mrf.mxu0
      %v1886 = vadd.f32 %v1523, %v1885
      %1887 = vmatmul.bf16.gmra.mxu0 %v1671
      %v1888 = vpop.f32.mrf.mxu0
      %v1889 = vadd.f32 %v1526, %v1888
      %v1890 = vpop.f32.mrf.mxu0
      %v1891 = vadd.f32 %v1528, %v1890
      %1892 = vmatmul.bf16.gmra.mxu0 %v1674
      %v1893 = vpop.f32.mrf.mxu0
      %v1894 = vadd.f32 %v1531, %v1893
      %v1895 = vpop.f32.mrf.mxu0
      %v1896 = vadd.f32 %v1533, %v1895
      %1897 = vmatmul.bf16.gmra.mxu0 %v1677
      %v1898 = vpop.f32.mrf.mxu0
      %v1899 = vadd.f32 %v1536, %v1898
      %v1900 = vpop.f32.mrf.mxu0
      %v1901 = vadd.f32 %v1538, %v1900
      %1902 = vmatmul.bf16.gmra.mxu0 %v1680
      %v1903 = vpop.f32.mrf.mxu0
      %v1904 = vadd.f32 %v1541, %v1903
      %v1905 = vpop.f32.mrf.mxu0
      %v1906 = vadd.f32 %v1543, %v1905
      %1907 = vmatmul.bf16.gmra.mxu0 %v1683
      %v1908 = vpop.f32.mrf.mxu0
      %v1909 = vadd.f32 %v1546, %v1908
      %v1910 = vpop.f32.mrf.mxu0
      %v1911 = vadd.f32 %v1548, %v1910
      %1912 = vmatmul.bf16.gmra.mxu0 %v1686
      %v1913 = vpop.f32.mrf.mxu0
      %v1914 = vadd.f32 %v1551, %v1913
      %v1915 = vpop.f32.mrf.mxu0
      %v1916 = vadd.f32 %v1553, %v1915
      %1917 = vmatmul.bf16.gmra.mxu0 %v1689
      %v1918 = vpop.f32.mrf.mxu0
      %v1919 = vadd.f32 %v1556, %v1918
      %v1920 = vpop.f32.mrf.mxu0
      %v1921 = vadd.f32 %v1558, %v1920
      %1922 = vmatmul.bf16.gmra.mxu0 %v1692
      %v1923 = vpop.f32.mrf.mxu0
      %v1924 = vadd.f32 %v1561, %v1923
      %v1925 = vpop.f32.mrf.mxu0
      %v1926 = vadd.f32 %v1563, %v1925
      %1927 = vdwg.mxu0
      %1928 = vmatpush.bf16.msra.mxu0 %v1836
      %1929 = vmatpush.bf16.msra.mxu0 %v1835
      %1930 = vmatpush.bf16.msra.mxu0 %v1834
      %1931 = vmatpush.bf16.msra.mxu0 %v1833
      %1932 = vmatpush.bf16.msra.mxu0 %v1832
      %1933 = vmatpush.bf16.msra.mxu0 %v1831
      %1934 = vmatpush.bf16.msra.mxu0 %v1830
      %1935 = vmatpush.bf16.msra.mxu0 %v1829
      %1936 = vmatmul.bf16.gmra.mxu0 %v1666
      %v1937 = vpop.f32.mrf.mxu0
      %v1938 = vadd.f32 %v1879, %v1937
      %v1939 = vpop.f32.mrf.mxu0
      %v1940 = vadd.f32 %v1881, %v1939
      %1941 = vmatmul.bf16.gmra.mxu0 %v1669
      %v1942 = vpop.f32.mrf.mxu0
      %v1943 = vadd.f32 %v1884, %v1942
      %v1944 = vpop.f32.mrf.mxu0
      %v1945 = vadd.f32 %v1886, %v1944
      %1946 = vmatmul.bf16.gmra.mxu0 %v1672
      %v1947 = vpop.f32.mrf.mxu0
      %v1948 = vadd.f32 %v1889, %v1947
      %v1949 = vpop.f32.mrf.mxu0
      %v1950 = vadd.f32 %v1891, %v1949
      %1951 = vmatmul.bf16.gmra.mxu0 %v1675
      %v1952 = vpop.f32.mrf.mxu0
      %v1953 = vadd.f32 %v1894, %v1952
      %v1954 = vpop.f32.mrf.mxu0
      %v1955 = vadd.f32 %v1896, %v1954
      %1956 = vmatmul.bf16.gmra.mxu0 %v1678
      %v1957 = vpop.f32.mrf.mxu0
      %v1958 = vadd.f32 %v1899, %v1957
      %v1959 = vpop.f32.mrf.mxu0
      %v1960 = vadd.f32 %v1901, %v1959
      %1961 = vmatmul.bf16.gmra.mxu0 %v1681
      %v1962 = vpop.f32.mrf.mxu0
      %v1963 = vadd.f32 %v1904, %v1962
      %v1964 = vpop.f32.mrf.mxu0
      %v1965 = vadd.f32 %v1906, %v1964
      %1966 = vmatmul.bf16.gmra.mxu0 %v1684
      %v1967 = vpop.f32.mrf.mxu0
      %v1968 = vadd.f32 %v1909, %v1967
      %v1969 = vpop.f32.mrf.mxu0
      %v1970 = vadd.f32 %v1911, %v1969
      %1971 = vmatmul.bf16.gmra.mxu0 %v1687
      %v1972 = vpop.f32.mrf.mxu0
      %v1973 = vadd.f32 %v1914, %v1972
      %v1974 = vpop.f32.mrf.mxu0
      %v1975 = vadd.f32 %v1916, %v1974
      %1976 = vmatmul.bf16.gmra.mxu0 %v1690
      %v1977 = vpop.f32.mrf.mxu0
      %v1978 = vadd.f32 %v1919, %v1977
      %v1979 = vpop.f32.mrf.mxu0
      %v1980 = vadd.f32 %v1921, %v1979
      %1981 = vmatmul.bf16.gmra.mxu0 %v1693
      %v1982 = vpop.f32.mrf.mxu0
      %v1983 = vadd.f32 %v1924, %v1982
      %v1984 = vpop.f32.mrf.mxu0
      %v1985 = vadd.f32 %v1926, %v1984
      %1986 = vdwg.mxu0
      %1987 = vmatpush.bf16.msra.mxu0 %v1844
      %1988 = vmatpush.bf16.msra.mxu0 %v1843
      %1989 = vmatpush.bf16.msra.mxu0 %v1842
      %1990 = vmatpush.bf16.msra.mxu0 %v1841
      %1991 = vmatpush.bf16.msra.mxu0 %v1840
      %1992 = vmatpush.bf16.msra.mxu0 %v1839
      %1993 = vmatpush.bf16.msra.mxu0 %v1838
      %1994 = vmatpush.bf16.msra.mxu0 %v1837
      %1995 = vmatmul.bf16.gmra.mxu0 %v1667
      %v1996 = vpop.f32.mrf.mxu0
      %v1997 = vadd.f32 %v1938, %v1996
      %v1998 = vpop.f32.mrf.mxu0
      %v1999 = vadd.f32 %v1940, %v1998
      %2000 = vmatmul.bf16.gmra.mxu0 %v1670
      %v2001 = vpop.f32.mrf.mxu0
      %v2002 = vadd.f32 %v1943, %v2001
      %v2003 = vpop.f32.mrf.mxu0
      %v2004 = vadd.f32 %v1945, %v2003
      %2005 = vmatmul.bf16.gmra.mxu0 %v1673
      %v2006 = vpop.f32.mrf.mxu0
      %v2007 = vadd.f32 %v1948, %v2006
      %v2008 = vpop.f32.mrf.mxu0
      %v2009 = vadd.f32 %v1950, %v2008
      %2010 = vmatmul.bf16.gmra.mxu0 %v1676
      %v2011 = vpop.f32.mrf.mxu0
      %v2012 = vadd.f32 %v1953, %v2011
      %v2013 = vpop.f32.mrf.mxu0
      %v2014 = vadd.f32 %v1955, %v2013
      %2015 = vmatmul.bf16.gmra.mxu0 %v1679
      %v2016 = vpop.f32.mrf.mxu0
      %v2017 = vadd.f32 %v1958, %v2016
      %v2018 = vpop.f32.mrf.mxu0
      %v2019 = vadd.f32 %v1960, %v2018
      %2020 = vmatmul.bf16.gmra.mxu0 %v1682
      %v2021 = vpop.f32.mrf.mxu0
      %v2022 = vadd.f32 %v1963, %v2021
      %v2023 = vpop.f32.mrf.mxu0
      %v2024 = vadd.f32 %v1965, %v2023
      %2025 = vmatmul.bf16.gmra.mxu0 %v1685
      %v2026 = vpop.f32.mrf.mxu0
      %v2027 = vadd.f32 %v1968, %v2026
      %v2028 = vpop.f32.mrf.mxu0
      %v2029 = vadd.f32 %v1970, %v2028
      %2030 = vmatmul.bf16.gmra.mxu0 %v1688
      %v2031 = vpop.f32.mrf.mxu0
      %v2032 = vadd.f32 %v1973, %v2031
      %v2033 = vpop.f32.mrf.mxu0
      %v2034 = vadd.f32 %v1975, %v2033
      %2035 = vmatmul.bf16.gmra.mxu0 %v1691
      %v2036 = vpop.f32.mrf.mxu0
      %v2037 = vadd.f32 %v1978, %v2036
      %v2038 = vpop.f32.mrf.mxu0
      %v2039 = vadd.f32 %v1980, %v2038
      %2040 = vmatmul.bf16.gmra.mxu0 %v1694
      %v2041 = vpop.f32.mrf.mxu0
      %v2042 = vadd.f32 %v1983, %v2041
      %v2043 = vpop.f32.mrf.mxu0
      %v2044 = vadd.f32 %v1985, %v2043
      %2045 = vdwg.mxu0
      %s2046 = scalar_lea.vmem [#allocation2], 48
      %v2047 = vld [vmem:[%s2046] sm:$0xff]
      %v2048 = vld [vmem:[%s2046 + $0x8] sm:$0xf]
      %v2049 = vld [vmem:[%s2046 + $0xc] sm:$0xff]
      %v2050 = vld [vmem:[%s2046 + $0x14] sm:$0xf]
      %v2051 = vld [vmem:[%s2046 + $0x18] sm:$0xff]
      %v2052 = vld [vmem:[%s2046 + $0x20] sm:$0xf]
      %v2053 = vld [vmem:[%s2046 + $0x24] sm:$0xff]
      %v2054 = vld [vmem:[%s2046 + $0x2c] sm:$0xf]
      %v2055 = vld [vmem:[%s2046 + $0x30] sm:$0xff]
      %v2056 = vld [vmem:[%s2046 + $0x38] sm:$0xf]
      %v2057 = vld [vmem:[%s2046 + $0x3c] sm:$0xff]
      %v2058 = vld [vmem:[%s2046 + $0x44] sm:$0xf]
      %v2059 = vld [vmem:[%s2046 + $0x48] sm:$0xff]
      %v2060 = vld [vmem:[%s2046 + $0x50] sm:$0xf]
      %v2061 = vld [vmem:[%s2046 + $0x54] sm:$0xff]
      %v2062 = vld [vmem:[%s2046 + $0x5c] sm:$0xf]
      %v2063 = vld [vmem:[%s2046 + $0x60] sm:$0xff]
      %v2064 = vld [vmem:[%s2046 + $0x68] sm:$0xf]
      %v2065 = vld [vmem:[%s2046 + $0x6c] sm:$0xff]
      %v2066 = vld [vmem:[%s2046 + $0x74] sm:$0xf]
      %v2067 = vld [vmem:[%s2046 + $0x78] sm:$0xff]
      %v2068 = vld [vmem:[%s2046 + $0x80] sm:$0xf]
      %v2069 = vld [vmem:[%s2046 + $0x84] sm:$0xff]
      %v2070 = vld [vmem:[%s2046 + $0x8c] sm:$0xf]
      %v2071 = vld [vmem:[%s2046 + $0x90] sm:$0xff]
      %v2072 = vld [vmem:[%s2046 + $0x98] sm:$0xf]
      %v2073 = vld [vmem:[%s2046 + $0x9c] sm:$0xff]
      %v2074 = vld [vmem:[%s2046 + $0xa4] sm:$0xf]
      %v2075 = vld [vmem:[%s2046 + $0xa8] sm:$0xff]
      %v2076 = vld [vmem:[%s2046 + $0xb0] sm:$0xf]
      %v2077 = vld [vmem:[%s2046 + $0xb4] sm:$0xff]
      %v2078 = vld [vmem:[%s2046 + $0xbc] sm:$0xf]
      %v2079 = vld [vmem:[%s2046 + $0xc0] sm:$0xff]
      %v2080 = vld [vmem:[%s2046 + $0xc8] sm:$0xf]
      %v2081 = vld [vmem:[%s2046 + $0xcc] sm:$0xff]
      %v2082 = vld [vmem:[%s2046 + $0xd4] sm:$0xf]
      %v2083 = vld [vmem:[%s2046 + $0xd8] sm:$0xff]
      %v2084 = vld [vmem:[%s2046 + $0xe0] sm:$0xf]
      %v2085 = vld [vmem:[%s2046 + $0xe4] sm:$0xff]
      %v2086 = vld [vmem:[%s2046 + $0xec] sm:$0xf]
      %s2087 = scalar_lea.vmem %s1, 384
      %v2088 = vld [vmem:[%s2087] sm:$0xf]
      %v2089 = vld [vmem:[%s2087 + $0x4] sm:$0xf]
      %v2090 = vld [vmem:[%s2087 + $0x8] sm:$0xf]
      %v2091 = vld [vmem:[%s2087 + $0xc] sm:$0xf]
      %v2092 = vld [vmem:[%s2087 + $0x10] sm:$0xf]
      %v2093 = vld [vmem:[%s2087 + $0x14] sm:$0xf]
      %v2094 = vld [vmem:[%s2087 + $0x18] sm:$0xf]
      %v2095 = vld [vmem:[%s2087 + $0x1c] sm:$0xf]
      %v2096 = vld [vmem:[%s2087 + $0x20] sm:$0xf]
      %v2097 = vld [vmem:[%s2087 + $0x24] sm:$0xf]
      %v2098 = vld [vmem:[%s2087 + $0x28] sm:$0xf]
      %v2099 = vld [vmem:[%s2087 + $0x2c] sm:$0xf]
      %v2100 = vld [vmem:[%s2087 + $0x30] sm:$0xf]
      %v2101 = vld [vmem:[%s2087 + $0x34] sm:$0xf]
      %v2102 = vld [vmem:[%s2087 + $0x38] sm:$0xf]
      %v2103 = vld [vmem:[%s2087 + $0x3c] sm:$0xf]
      %v2104 = vld [vmem:[%s2087 + $0x40] sm:$0xf]
      %v2105 = vld [vmem:[%s2087 + $0x44] sm:$0xf]
      %v2106 = vld [vmem:[%s2087 + $0x48] sm:$0xf]
      %v2107 = vld [vmem:[%s2087 + $0x4c] sm:$0xf]
      %v2108 = vld [vmem:[%s2087 + $0x50] sm:$0xf]
      %v2109 = vld [vmem:[%s2087 + $0x54] sm:$0xf]
      %v2110 = vld [vmem:[%s2087 + $0x58] sm:$0xf]
      %v2111 = vld [vmem:[%s2087 + $0x5c] sm:$0xf]
      %v2112 = vld [vmem:[%s2087 + $0x60] sm:$0xf]
      %v2113 = vld [vmem:[%s2087 + $0x64] sm:$0xf]
      %v2114 = vld [vmem:[%s2087 + $0x68] sm:$0xf]
      %v2115 = vld [vmem:[%s2087 + $0x6c] sm:$0xf]
      %v2116 = vld [vmem:[%s2087 + $0x70] sm:$0xf]
      %v2117 = vld [vmem:[%s2087 + $0x74] sm:$0xf]
      %v2118 = vld [vmem:[%s2087 + $0x78] sm:$0xf]
      %v2119 = vld [vmem:[%s2087 + $0x7c] sm:$0xf]
      %v2120 = vld [vmem:[%s2087 + $0x80] sm:$0xf]
      %v2121 = vld [vmem:[%s2087 + $0x84] sm:$0xf]
      %v2122 = vld [vmem:[%s2087 + $0x88] sm:$0xf]
      %v2123 = vld [vmem:[%s2087 + $0x8c] sm:$0xf]
      %v2124 = vld [vmem:[%s2087 + $0x90] sm:$0xf]
      %v2125 = vld [vmem:[%s2087 + $0x94] sm:$0xf]
      %v2126 = vld [vmem:[%s2087 + $0x98] sm:$0xf]
      %v2127 = vld [vmem:[%s2087 + $0x9c] sm:$0xf]
      %v2128 = vld [vmem:[%s2087 + $0xa0] sm:$0xf]
      %v2129 = vld [vmem:[%s2087 + $0xa4] sm:$0xf]
      %v2130 = vld [vmem:[%s2087 + $0xa8] sm:$0xf]
      %v2131 = vld [vmem:[%s2087 + $0xac] sm:$0xf]
      %v2132 = vld [vmem:[%s2087 + $0xb0] sm:$0xf]
      %v2133 = vld [vmem:[%s2087 + $0xb4] sm:$0xf]
      %v2134 = vld [vmem:[%s2087 + $0xb8] sm:$0xf]
      %v2135 = vld [vmem:[%s2087 + $0xbc] sm:$0xf]
      %v2176 = vunpack.c.l.b16 %v2047
      %v2177 = vunpack.c.h.b16 %v2047
      %v2178 = vunpack.c.l.b16 %v2048
      %v2179 = vunpack.c.l.b16 %v2049
      %v2180 = vunpack.c.h.b16 %v2049
      %v2181 = vunpack.c.l.b16 %v2050
      %v2182 = vunpack.c.l.b16 %v2051
      %v2183 = vunpack.c.h.b16 %v2051
      %v2184 = vunpack.c.l.b16 %v2052
      %v2185 = vunpack.c.l.b16 %v2053
      %v2186 = vunpack.c.h.b16 %v2053
      %v2187 = vunpack.c.l.b16 %v2054
      %v2188 = vunpack.c.l.b16 %v2055
      %v2189 = vunpack.c.h.b16 %v2055
      %v2190 = vunpack.c.l.b16 %v2056
      %v2191 = vunpack.c.l.b16 %v2057
      %v2192 = vunpack.c.h.b16 %v2057
      %v2193 = vunpack.c.l.b16 %v2058
      %v2194 = vunpack.c.l.b16 %v2059
      %v2195 = vunpack.c.h.b16 %v2059
      %v2196 = vunpack.c.l.b16 %v2060
      %v2197 = vunpack.c.l.b16 %v2061
      %v2198 = vunpack.c.h.b16 %v2061
      %v2199 = vunpack.c.l.b16 %v2062
      %v2200 = vunpack.c.l.b16 %v2063
      %v2201 = vunpack.c.h.b16 %v2063
      %v2202 = vunpack.c.l.b16 %v2064
      %v2203 = vunpack.c.l.b16 %v2065
      %v2204 = vunpack.c.h.b16 %v2065
      %v2205 = vunpack.c.l.b16 %v2066
      %v2206 = vunpack.c.l.b16 %v2067
      %v2207 = vunpack.c.h.b16 %v2067
      %v2208 = vunpack.c.l.b16 %v2068
      %v2209 = vunpack.c.l.b16 %v2069
      %v2210 = vunpack.c.h.b16 %v2069
      %v2211 = vunpack.c.l.b16 %v2070
      %v2212 = vunpack.c.l.b16 %v2071
      %v2213 = vunpack.c.h.b16 %v2071
      %v2214 = vunpack.c.l.b16 %v2072
      %v2215 = vunpack.c.l.b16 %v2073
      %v2216 = vunpack.c.h.b16 %v2073
      %v2217 = vunpack.c.l.b16 %v2074
      %v2218 = vunpack.c.l.b16 %v2075
      %v2219 = vunpack.c.h.b16 %v2075
      %v2220 = vunpack.c.l.b16 %v2076
      %v2221 = vunpack.c.l.b16 %v2077
      %v2222 = vunpack.c.h.b16 %v2077
      %v2223 = vunpack.c.l.b16 %v2078
      %v2224 = vunpack.c.l.b16 %v2079
      %v2225 = vunpack.c.h.b16 %v2079
      %v2226 = vunpack.c.l.b16 %v2080
      %v2227 = vunpack.c.l.b16 %v2081
      %v2228 = vunpack.c.h.b16 %v2081
      %v2229 = vunpack.c.l.b16 %v2082
      %v2230 = vunpack.c.l.b16 %v2083
      %v2231 = vunpack.c.h.b16 %v2083
      %v2232 = vunpack.c.l.b16 %v2084
      %v2233 = vunpack.c.l.b16 %v2085
      %v2234 = vunpack.c.h.b16 %v2085
      %v2235 = vunpack.c.l.b16 %v2086
      %v2236 = vpack.c.b16 %v2179, %v2176
      %v2237 = vpack.c.b16 %v2180, %v2177
      %v2238 = vpack.c.b16 %v2181, %v2178
      %v2239 = vpack.c.b16 %v2185, %v2182
      %v2240 = vpack.c.b16 %v2186, %v2183
      %v2241 = vpack.c.b16 %v2187, %v2184
      %v2242 = vpack.c.b16 %v2191, %v2188
      %v2243 = vpack.c.b16 %v2192, %v2189
      %v2244 = vpack.c.b16 %v2193, %v2190
      %v2245 = vpack.c.b16 %v2197, %v2194
      %v2246 = vpack.c.b16 %v2198, %v2195
      %v2247 = vpack.c.b16 %v2199, %v2196
      %v2248 = vpack.c.b16 %v2203, %v2200
      %v2249 = vpack.c.b16 %v2204, %v2201
      %v2250 = vpack.c.b16 %v2205, %v2202
      %v2251 = vpack.c.b16 %v2209, %v2206
      %v2252 = vpack.c.b16 %v2210, %v2207
      %v2253 = vpack.c.b16 %v2211, %v2208
      %v2254 = vpack.c.b16 %v2215, %v2212
      %v2255 = vpack.c.b16 %v2216, %v2213
      %v2256 = vpack.c.b16 %v2217, %v2214
      %v2257 = vpack.c.b16 %v2221, %v2218
      %v2258 = vpack.c.b16 %v2222, %v2219
      %v2259 = vpack.c.b16 %v2223, %v2220
      %v2260 = vpack.c.b16 %v2227, %v2224
      %v2261 = vpack.c.b16 %v2228, %v2225
      %v2262 = vpack.c.b16 %v2229, %v2226
      %v2263 = vpack.c.b16 %v2233, %v2230
      %v2264 = vpack.c.b16 %v2234, %v2231
      %v2265 = vpack.c.b16 %v2235, %v2232
      %v2344 = vunpack.c.l.b16 %v2088
      %v2345 = vunpack.c.l.b16 %v2089
      %v2346 = vunpack.c.l.b16 %v2090
      %v2347 = vunpack.c.l.b16 %v2091
      %v2348 = vunpack.c.l.b16 %v2092
      %v2349 = vunpack.c.l.b16 %v2093
      %v2350 = vunpack.c.l.b16 %v2094
      %v2351 = vunpack.c.l.b16 %v2095
      %v2352 = vunpack.c.l.b16 %v2096
      %v2353 = vunpack.c.l.b16 %v2097
      %v2354 = vunpack.c.l.b16 %v2098
      %v2355 = vunpack.c.l.b16 %v2099
      %v2356 = vunpack.c.l.b16 %v2100
      %v2357 = vunpack.c.l.b16 %v2101
      %v2358 = vunpack.c.l.b16 %v2102
      %v2359 = vunpack.c.l.b16 %v2103
      %v2360 = vunpack.c.l.b16 %v2104
      %v2361 = vunpack.c.l.b16 %v2105
      %v2362 = vunpack.c.l.b16 %v2106
      %v2363 = vunpack.c.l.b16 %v2107
      %v2364 = vunpack.c.l.b16 %v2108
      %v2365 = vunpack.c.l.b16 %v2109
      %v2366 = vunpack.c.l.b16 %v2110
      %v2367 = vunpack.c.l.b16 %v2111
      %v2368 = vunpack.c.l.b16 %v2112
      %v2369 = vunpack.c.l.b16 %v2113
      %v2370 = vunpack.c.l.b16 %v2114
      %v2371 = vunpack.c.l.b16 %v2115
      %v2372 = vunpack.c.l.b16 %v2116
      %v2373 = vunpack.c.l.b16 %v2117
      %v2374 = vunpack.c.l.b16 %v2118
      %v2375 = vunpack.c.l.b16 %v2119
      %v2376 = vunpack.c.l.b16 %v2120
      %v2377 = vunpack.c.l.b16 %v2121
      %v2378 = vunpack.c.l.b16 %v2122
      %v2379 = vunpack.c.l.b16 %v2123
      %v2380 = vunpack.c.l.b16 %v2124
      %v2381 = vunpack.c.l.b16 %v2125
      %v2382 = vunpack.c.l.b16 %v2126
      %v2383 = vunpack.c.l.b16 %v2127
      %v2384 = vunpack.c.l.b16 %v2128
      %v2385 = vunpack.c.l.b16 %v2129
      %v2386 = vunpack.c.l.b16 %v2130
      %v2387 = vunpack.c.l.b16 %v2131
      %v2388 = vunpack.c.l.b16 %v2132
      %v2389 = vunpack.c.l.b16 %v2133
      %v2390 = vunpack.c.l.b16 %v2134
      %v2391 = vunpack.c.l.b16 %v2135
      %v2392 = vpack.c.b16 %v2345, %v2344
      %v2393 = vpack.c.b16 %v2347, %v2346
      %v2394 = vpack.c.b16 %v2349, %v2348
      %v2395 = vpack.c.b16 %v2351, %v2350
      %v2396 = vpack.c.b16 %v2353, %v2352
      %v2397 = vpack.c.b16 %v2355, %v2354
      %v2398 = vpack.c.b16 %v2357, %v2356
      %v2399 = vpack.c.b16 %v2359, %v2358
      %v2400 = vpack.c.b16 %v2361, %v2360
      %v2401 = vpack.c.b16 %v2363, %v2362
      %v2402 = vpack.c.b16 %v2365, %v2364
      %v2403 = vpack.c.b16 %v2367, %v2366
      %v2404 = vpack.c.b16 %v2369, %v2368
      %v2405 = vpack.c.b16 %v2371, %v2370
      %v2406 = vpack.c.b16 %v2373, %v2372
      %v2407 = vpack.c.b16 %v2375, %v2374
      %v2408 = vpack.c.b16 %v2377, %v2376
      %v2409 = vpack.c.b16 %v2379, %v2378
      %v2410 = vpack.c.b16 %v2381, %v2380
      %v2411 = vpack.c.b16 %v2383, %v2382
      %v2412 = vpack.c.b16 %v2385, %v2384
      %v2413 = vpack.c.b16 %v2387, %v2386
      %v2414 = vpack.c.b16 %v2389, %v2388
      %v2415 = vpack.c.b16 %v2391, %v2390
      %2440 = vmatpush.bf16.msra.mxu0 %v2399
      %2441 = vmatpush.bf16.msra.mxu0 %v2398
      %2442 = vmatpush.bf16.msra.mxu0 %v2397
      %2443 = vmatpush.bf16.msra.mxu0 %v2396
      %2444 = vmatpush.bf16.msra.mxu0 %v2395
      %2445 = vmatpush.bf16.msra.mxu0 %v2394
      %2446 = vmatpush.bf16.msra.mxu0 %v2393
      %2447 = vmatpush.bf16.msra.mxu0 %v2392
      %2448 = vmatmul.bf16.gmra.mxu0 %v2236
      %v2449 = vpop.f32.mrf.mxu0
      %v2450 = vadd.f32 0.0, %v2449
      %v2451 = vpop.f32.mrf.mxu0
      %v2452 = vadd.f32 0.0, %v2451
      %2453 = vmatmul.bf16.gmra.mxu0 %v2239
      %v2454 = vpop.f32.mrf.mxu0
      %v2455 = vadd.f32 0.0, %v2454
      %v2456 = vpop.f32.mrf.mxu0
      %v2457 = vadd.f32 0.0, %v2456
      %2458 = vmatmul.bf16.gmra.mxu0 %v2242
      %v2459 = vpop.f32.mrf.mxu0
      %v2460 = vadd.f32 0.0, %v2459
      %v2461 = vpop.f32.mrf.mxu0
      %v2462 = vadd.f32 0.0, %v2461
      %2463 = vmatmul.bf16.gmra.mxu0 %v2245
      %v2464 = vpop.f32.mrf.mxu0
      %v2465 = vadd.f32 0.0, %v2464
      %v2466 = vpop.f32.mrf.mxu0
      %v2467 = vadd.f32 0.0, %v2466
      %2468 = vmatmul.bf16.gmra.mxu0 %v2248
      %v2469 = vpop.f32.mrf.mxu0
      %v2470 = vadd.f32 0.0, %v2469
      %v2471 = vpop.f32.mrf.mxu0
      %v2472 = vadd.f32 0.0, %v2471
      %2473 = vmatmul.bf16.gmra.mxu0 %v2251
      %v2474 = vpop.f32.mrf.mxu0
      %v2475 = vadd.f32 0.0, %v2474
      %v2476 = vpop.f32.mrf.mxu0
      %v2477 = vadd.f32 0.0, %v2476
      %2478 = vmatmul.bf16.gmra.mxu0 %v2254
      %v2479 = vpop.f32.mrf.mxu0
      %v2480 = vadd.f32 0.0, %v2479
      %v2481 = vpop.f32.mrf.mxu0
      %v2482 = vadd.f32 0.0, %v2481
      %2483 = vmatmul.bf16.gmra.mxu0 %v2257
      %v2484 = vpop.f32.mrf.mxu0
      %v2485 = vadd.f32 0.0, %v2484
      %v2486 = vpop.f32.mrf.mxu0
      %v2487 = vadd.f32 0.0, %v2486
      %2488 = vmatmul.bf16.gmra.mxu0 %v2260
      %v2489 = vpop.f32.mrf.mxu0
      %v2490 = vadd.f32 0.0, %v2489
      %v2491 = vpop.f32.mrf.mxu0
      %v2492 = vadd.f32 0.0, %v2491
      %2493 = vmatmul.bf16.gmra.mxu0 %v2263
      %v2494 = vpop.f32.mrf.mxu0
      %v2495 = vadd.f32 0.0, %v2494
      %v2496 = vpop.f32.mrf.mxu0
      %v2497 = vadd.f32 0.0, %v2496
      %2498 = vdwg.mxu0
      %2499 = vmatpush.bf16.msra.mxu0 %v2407
      %2500 = vmatpush.bf16.msra.mxu0 %v2406
      %2501 = vmatpush.bf16.msra.mxu0 %v2405
      %2502 = vmatpush.bf16.msra.mxu0 %v2404
      %2503 = vmatpush.bf16.msra.mxu0 %v2403
      %2504 = vmatpush.bf16.msra.mxu0 %v2402
      %2505 = vmatpush.bf16.msra.mxu0 %v2401
      %2506 = vmatpush.bf16.msra.mxu0 %v2400
      %2507 = vmatmul.bf16.gmra.mxu0 %v2237
      %v2508 = vpop.f32.mrf.mxu0
      %v2509 = vadd.f32 %v2450, %v2508
      %v2510 = vpop.f32.mrf.mxu0
      %v2511 = vadd.f32 %v2452, %v2510
      %2512 = vmatmul.bf16.gmra.mxu0 %v2240
      %v2513 = vpop.f32.mrf.mxu0
      %v2514 = vadd.f32 %v2455, %v2513
      %v2515 = vpop.f32.mrf.mxu0
      %v2516 = vadd.f32 %v2457, %v2515
      %2517 = vmatmul.bf16.gmra.mxu0 %v2243
      %v2518 = vpop.f32.mrf.mxu0
      %v2519 = vadd.f32 %v2460, %v2518
      %v2520 = vpop.f32.mrf.mxu0
      %v2521 = vadd.f32 %v2462, %v2520
      %2522 = vmatmul.bf16.gmra.mxu0 %v2246
      %v2523 = vpop.f32.mrf.mxu0
      %v2524 = vadd.f32 %v2465, %v2523
      %v2525 = vpop.f32.mrf.mxu0
      %v2526 = vadd.f32 %v2467, %v2525
      %2527 = vmatmul.bf16.gmra.mxu0 %v2249
      %v2528 = vpop.f32.mrf.mxu0
      %v2529 = vadd.f32 %v2470, %v2528
      %v2530 = vpop.f32.mrf.mxu0
      %v2531 = vadd.f32 %v2472, %v2530
      %2532 = vmatmul.bf16.gmra.mxu0 %v2252
      %v2533 = vpop.f32.mrf.mxu0
      %v2534 = vadd.f32 %v2475, %v2533
      %v2535 = vpop.f32.mrf.mxu0
      %v2536 = vadd.f32 %v2477, %v2535
      %2537 = vmatmul.bf16.gmra.mxu0 %v2255
      %v2538 = vpop.f32.mrf.mxu0
      %v2539 = vadd.f32 %v2480, %v2538
      %v2540 = vpop.f32.mrf.mxu0
      %v2541 = vadd.f32 %v2482, %v2540
      %2542 = vmatmul.bf16.gmra.mxu0 %v2258
      %v2543 = vpop.f32.mrf.mxu0
      %v2544 = vadd.f32 %v2485, %v2543
      %v2545 = vpop.f32.mrf.mxu0
      %v2546 = vadd.f32 %v2487, %v2545
      %2547 = vmatmul.bf16.gmra.mxu0 %v2261
      %v2548 = vpop.f32.mrf.mxu0
      %v2549 = vadd.f32 %v2490, %v2548
      %v2550 = vpop.f32.mrf.mxu0
      %v2551 = vadd.f32 %v2492, %v2550
      %2552 = vmatmul.bf16.gmra.mxu0 %v2264
      %v2553 = vpop.f32.mrf.mxu0
      %v2554 = vadd.f32 %v2495, %v2553
      %v2555 = vpop.f32.mrf.mxu0
      %v2556 = vadd.f32 %v2497, %v2555
      %2557 = vdwg.mxu0
      %2558 = vmatpush.bf16.msra.mxu0 %v2415
      %2559 = vmatpush.bf16.msra.mxu0 %v2414
      %2560 = vmatpush.bf16.msra.mxu0 %v2413
      %2561 = vmatpush.bf16.msra.mxu0 %v2412
      %2562 = vmatpush.bf16.msra.mxu0 %v2411
      %2563 = vmatpush.bf16.msra.mxu0 %v2410
      %2564 = vmatpush.bf16.msra.mxu0 %v2409
      %2565 = vmatpush.bf16.msra.mxu0 %v2408
      %2566 = vmatmul.bf16.gmra.mxu0 %v2238
      %v2567 = vpop.f32.mrf.mxu0
      %v2568 = vadd.f32 %v2509, %v2567
      %v2569 = vpop.f32.mrf.mxu0
      %v2570 = vadd.f32 %v2511, %v2569
      %2571 = vmatmul.bf16.gmra.mxu0 %v2241
      %v2572 = vpop.f32.mrf.mxu0
      %v2573 = vadd.f32 %v2514, %v2572
      %v2574 = vpop.f32.mrf.mxu0
      %v2575 = vadd.f32 %v2516, %v2574
      %2576 = vmatmul.bf16.gmra.mxu0 %v2244
      %v2577 = vpop.f32.mrf.mxu0
      %v2578 = vadd.f32 %v2519, %v2577
      %v2579 = vpop.f32.mrf.mxu0
      %v2580 = vadd.f32 %v2521, %v2579
      %2581 = vmatmul.bf16.gmra.mxu0 %v2247
      %v2582 = vpop.f32.mrf.mxu0
      %v2583 = vadd.f32 %v2524, %v2582
      %v2584 = vpop.f32.mrf.mxu0
      %v2585 = vadd.f32 %v2526, %v2584
      %2586 = vmatmul.bf16.gmra.mxu0 %v2250
      %v2587 = vpop.f32.mrf.mxu0
      %v2588 = vadd.f32 %v2529, %v2587
      %v2589 = vpop.f32.mrf.mxu0
      %v2590 = vadd.f32 %v2531, %v2589
      %2591 = vmatmul.bf16.gmra.mxu0 %v2253
      %v2592 = vpop.f32.mrf.mxu0
      %v2593 = vadd.f32 %v2534, %v2592
      %v2594 = vpop.f32.mrf.mxu0
      %v2595 = vadd.f32 %v2536, %v2594
      %2596 = vmatmul.bf16.gmra.mxu0 %v2256
      %v2597 = vpop.f32.mrf.mxu0
      %v2598 = vadd.f32 %v2539, %v2597
      %v2599 = vpop.f32.mrf.mxu0
      %v2600 = vadd.f32 %v2541, %v2599
      %2601 = vmatmul.bf16.gmra.mxu0 %v2259
      %v2602 = vpop.f32.mrf.mxu0
      %v2603 = vadd.f32 %v2544, %v2602
      %v2604 = vpop.f32.mrf.mxu0
      %v2605 = vadd.f32 %v2546, %v2604
      %2606 = vmatmul.bf16.gmra.mxu0 %v2262
      %v2607 = vpop.f32.mrf.mxu0
      %v2608 = vadd.f32 %v2549, %v2607
      %v2609 = vpop.f32.mrf.mxu0
      %v2610 = vadd.f32 %v2551, %v2609
      %2611 = vmatmul.bf16.gmra.mxu0 %v2265
      %v2612 = vpop.f32.mrf.mxu0
      %v2613 = vadd.f32 %v2554, %v2612
      %v2614 = vpop.f32.mrf.mxu0
      %v2615 = vadd.f32 %v2556, %v2614
      %2616 = vdwg.mxu0
      %v2617 = vadd.f32 %v1997, %v2568
      %v2618 = vadd.f32 %v1999, %v2570
      %v2619 = vadd.f32 %v2002, %v2573
      %v2620 = vadd.f32 %v2004, %v2575
      %v2621 = vadd.f32 %v2007, %v2578
      %v2622 = vadd.f32 %v2009, %v2580
      %v2623 = vadd.f32 %v2012, %v2583
      %v2624 = vadd.f32 %v2014, %v2585
      %v2625 = vadd.f32 %v2017, %v2588
      %v2626 = vadd.f32 %v2019, %v2590
      %v2627 = vadd.f32 %v2022, %v2593
      %v2628 = vadd.f32 %v2024, %v2595
      %v2629 = vadd.f32 %v2027, %v2598
      %v2630 = vadd.f32 %v2029, %v2600
      %v2631 = vadd.f32 %v2032, %v2603
      %v2632 = vadd.f32 %v2034, %v2605
      %v2633 = vadd.f32 %v2037, %v2608
      %v2634 = vadd.f32 %v2039, %v2610
      %v2635 = vadd.f32 %v2042, %v2613
      %v2636 = vadd.f32 %v2044, %v2615
      %v2637 = vld [vmem:[%s2] sm:$0x1]
      %v2639 = vperm.slane %v2637, 0
      %v2641 = vadd.f32 %v2617, %v2639
      %v2642 = vadd.f32 %v2618, %v2639
      %v2643 = vadd.f32 %v2619, %v2639
      %v2644 = vadd.f32 %v2620, %v2639
      %v2645 = vadd.f32 %v2621, %v2639
      %v2646 = vadd.f32 %v2622, %v2639
      %v2647 = vadd.f32 %v2623, %v2639
      %v2648 = vadd.f32 %v2624, %v2639
      %v2649 = vadd.f32 %v2625, %v2639
      %v2650 = vadd.f32 %v2626, %v2639
      %v2651 = vadd.f32 %v2627, %v2639
      %v2652 = vadd.f32 %v2628, %v2639
      %v2653 = vadd.f32 %v2629, %v2639
      %v2654 = vadd.f32 %v2630, %v2639
      %v2655 = vadd.f32 %v2631, %v2639
      %v2656 = vadd.f32 %v2632, %v2639
      %v2657 = vadd.f32 %v2633, %v2639
      %v2658 = vadd.f32 %v2634, %v2639
      %v2659 = vadd.f32 %v2635, %v2639
      %v2660 = vadd.f32 %v2636, %v2639
      %v2661 = vmax.f32 %v2641, 0.0
      %v2662 = vmax.f32 %v2642, 0.0
      %v2663 = vmax.f32 %v2643, 0.0
      %v2664 = vmax.f32 %v2644, 0.0
      %v2665 = vmax.f32 %v2645, 0.0
      %v2666 = vmax.f32 %v2646, 0.0
      %v2667 = vmax.f32 %v2647, 0.0
      %v2668 = vmax.f32 %v2648, 0.0
      %v2669 = vmax.f32 %v2649, 0.0
      %v2670 = vmax.f32 %v2650, 0.0
      %v2671 = vmax.f32 %v2651, 0.0
      %v2672 = vmax.f32 %v2652, 0.0
      %v2673 = vmax.f32 %v2653, 0.0
      %v2674 = vmax.f32 %v2654, 0.0
      %v2675 = vmax.f32 %v2655, 0.0
      %v2676 = vmax.f32 %v2656, 0.0
      %v2677 = vmax.f32 %v2657, 0.0
      %v2678 = vmax.f32 %v2658, 0.0
      %v2679 = vmax.f32 %v2659, 0.0
      %v2680 = vmax.f32 %v2660, 0.0
      %v2681 = vlaneseq
      %v2682 = vshrl.u32 %v2681, 7
      %v2683 = vadd.s32 %v2682, 8
      %vm2684 = vcmp.ge.s32.totalorder %v2682, 16
      %vm2685 = vcmp.ge.s32.totalorder %v2683, 16
      %p2686 = scmp.eq.s32.totalorder %s21, 0
      %s2687 = scalar_select %p2686, 1, 0
      %v2688 = vstv %s2687
      %vm2689 = vcmp.eq.s32.totalorder %v2688, 1
      %v2690 = vsel %vm2684, 1, 0
      %v2691 = vsel %vm2685, 1, 0
      %vm2692 = vcmp.eq.s32.totalorder %v2690, 1
      %vm2693 = vcmp.eq.s32.totalorder %v2691, 1
      %v2694 = vsel %vm2689, 1, 0
      %vm2695 = vcmp.eq.s32.totalorder %v2694, 1
      %vm2696 = vmor %vm2692, %vm2695
      %vm2697 = vmor %vm2693, %vm2695
      %vm2698 = vmor %vm2692, 0
      %vm2699 = vmor %vm2693, 0
      %p2700 = scmp.eq.s32.totalorder %s21, 1
      %s2701 = scalar_select %p2700, 1, 0
      %v2702 = vstv %s2701
      %vm2703 = vcmp.eq.s32.totalorder %v2702, 1
      %v2704 = vsel %vm2703, 1, 0
      %vm2705 = vcmp.eq.s32.totalorder %v2704, 1
      %vm2706 = vmor %vm2696, 0
      %vm2707 = vmor %vm2697, 0
      %vm2708 = vmor %vm2698, 0
      %vm2709 = vmor %vm2699, 0
      %vm2710 = vmor %vm2698, %vm2705
      %vm2711 = vmor %vm2699, %vm2705
      %v2712 = vsel %vm2706, 1, 0
      %v2713 = vsel %vm2707, 1, 0
      %v2714 = vsel %vm2708, 1, 0
      %v2715 = vsel %vm2709, 1, 0
      %v2716 = vsel %vm2710, 1, 0
      %v2717 = vsel %vm2711, 1, 0
      %vm2718 = vcmp.eq.s32.totalorder %v2712, 1
      %vm2719 = vcmp.eq.s32.totalorder %v2713, 1
      %vm2720 = vcmp.eq.s32.totalorder %v2714, 1
      %vm2721 = vcmp.eq.s32.totalorder %v2715, 1
      %vm2722 = vcmp.eq.s32.totalorder %v2716, 1
      %vm2723 = vcmp.eq.s32.totalorder %v2717, 1
      %v2724 = vsel %vm2718, 0.0, %v2661
      %v2725 = vsel %vm2719, 0.0, %v2662
      %v2726 = vsel %vm2720, 0.0, %v2663
      %v2727 = vsel %vm2721, 0.0, %v2664
      %v2728 = vsel %vm2720, 0.0, %v2665
      %v2729 = vsel %vm2721, 0.0, %v2666
      %v2730 = vsel %vm2720, 0.0, %v2667
      %v2731 = vsel %vm2721, 0.0, %v2668
      %v2732 = vsel %vm2720, 0.0, %v2669
      %v2733 = vsel %vm2721, 0.0, %v2670
      %v2734 = vsel %vm2720, 0.0, %v2671
      %v2735 = vsel %vm2721, 0.0, %v2672
      %v2736 = vsel %vm2720, 0.0, %v2673
      %v2737 = vsel %vm2721, 0.0, %v2674
      %v2738 = vsel %vm2720, 0.0, %v2675
      %v2739 = vsel %vm2721, 0.0, %v2676
      %v2740 = vsel %vm2720, 0.0, %v2677
      %v2741 = vsel %vm2721, 0.0, %v2678
      %v2742 = vsel %vm2722, 0.0, %v2679
      %v2743 = vsel %vm2723, 0.0, %v2680
      %2744 = vst [vmem:[#allocation3] sm:$0xff] 0.0
      %2745 = vst [vmem:[#allocation3 + $0x20] sm:$0xff] 0.0
      %2746 = vst [vmem:[#allocation3 + $0x40] sm:$0xff] 0.0
      %2747 = vst [vmem:[#allocation3 + $0x60] sm:$0xff] 0.0
      %2748 = vst [vmem:[#allocation3 + $0x80] sm:$0xff] 0.0
      %2749 = vst [vmem:[#allocation3 + $0xa0] sm:$0xff] 0.0
      %2750 = vst [vmem:[#allocation3 + $0xc0] sm:$0xff] 0.0
      %2751 = vst [vmem:[#allocation3 + $0xe0] sm:$0xff] 0.0
      %2752 = vst [vmem:[#allocation3 + $0x100] sm:$0xff] 0.0
      %2753 = vst [vmem:[#allocation3 + $0x120] sm:$0xff] 0.0
      %2754 = vst [vmem:[#allocation3 + $0x8] sm:$0xff] %v2724
      %2755 = vst [vmem:[#allocation3 + $0x10] sm:$0xff] %v2725
      %2756 = vst [vmem:[#allocation3 + $0x28] sm:$0xff] %v2726
      %2757 = vst [vmem:[#allocation3 + $0x30] sm:$0xff] %v2727
      %2758 = vst [vmem:[#allocation3 + $0x48] sm:$0xff] %v2728
      %2759 = vst [vmem:[#allocation3 + $0x50] sm:$0xff] %v2729
      %2760 = vst [vmem:[#allocation3 + $0x68] sm:$0xff] %v2730
      %2761 = vst [vmem:[#allocation3 + $0x70] sm:$0xff] %v2731
      %2762 = vst [vmem:[#allocation3 + $0x88] sm:$0xff] %v2732
      %2763 = vst [vmem:[#allocation3 + $0x90] sm:$0xff] %v2733
      %2764 = vst [vmem:[#allocation3 + $0xa8] sm:$0xff] %v2734
      %2765 = vst [vmem:[#allocation3 + $0xb0] sm:$0xff] %v2735
      %2766 = vst [vmem:[#allocation3 + $0xc8] sm:$0xff] %v2736
      %2767 = vst [vmem:[#allocation3 + $0xd0] sm:$0xff] %v2737
      %2768 = vst [vmem:[#allocation3 + $0xe8] sm:$0xff] %v2738
      %2769 = vst [vmem:[#allocation3 + $0xf0] sm:$0xff] %v2739
      %2770 = vst [vmem:[#allocation3 + $0x108] sm:$0xff] %v2740
      %2771 = vst [vmem:[#allocation3 + $0x110] sm:$0xff] %v2741
      %2772 = vst [vmem:[#allocation3 + $0x128] sm:$0xff] %v2742
      %2773 = vst [vmem:[#allocation3 + $0x130] sm:$0xff] %v2743
      %2774 = vst [vmem:[#allocation3 + $0x18] sm:$0xff] 0.0
      %2775 = vst [vmem:[#allocation3 + $0x38] sm:$0xff] 0.0
      %2776 = vst [vmem:[#allocation3 + $0x58] sm:$0xff] 0.0
      %2777 = vst [vmem:[#allocation3 + $0x78] sm:$0xff] 0.0
      %2778 = vst [vmem:[#allocation3 + $0x98] sm:$0xff] 0.0
      %2779 = vst [vmem:[#allocation3 + $0xb8] sm:$0xff] 0.0
      %2780 = vst [vmem:[#allocation3 + $0xd8] sm:$0xff] 0.0
      %2781 = vst [vmem:[#allocation3 + $0xf8] sm:$0xff] 0.0
      %2782 = vst [vmem:[#allocation3 + $0x118] sm:$0xff] 0.0
      %2783 = vst [vmem:[#allocation3 + $0x138] sm:$0xff] 0.0
      %v2784 = vld [vmem:[#allocation3] sm:$0xff]
      %v2785 = vld [vmem:[#allocation3 + $0x8] sm:$0xff]
      %v2786 = vld [vmem:[#allocation3 + $0x10] sm:$0xff]
      %v2787 = vld [vmem:[#allocation3 + $0x18] sm:$0xff]
      %v2788 = vld [vmem:[#allocation3 + $0x20] sm:$0xff]
      %v2789 = vld [vmem:[#allocation3 + $0x28] sm:$0xff]
      %v2790 = vld [vmem:[#allocation3 + $0x30] sm:$0xff]
      %v2791 = vld [vmem:[#allocation3 + $0x38] sm:$0xff]
      %v2792 = vld [vmem:[#allocation3 + $0x40] sm:$0xff]
      %v2793 = vld [vmem:[#allocation3 + $0x48] sm:$0xff]
      %v2794 = vld [vmem:[#allocation3 + $0x50] sm:$0xff]
      %v2795 = vld [vmem:[#allocation3 + $0x58] sm:$0xff]
      %v2796 = vld [vmem:[#allocation3 + $0x60] sm:$0xff]
      %v2797 = vld [vmem:[#allocation3 + $0x68] sm:$0xff]
      %v2798 = vld [vmem:[#allocation3 + $0x70] sm:$0xff]
      %v2799 = vld [vmem:[#allocation3 + $0x78] sm:$0xff]
      %v2800 = vld [vmem:[#allocation3 + $0x80] sm:$0xff]
      %v2801 = vld [vmem:[#allocation3 + $0x88] sm:$0xff]
      %v2802 = vld [vmem:[#allocation3 + $0x90] sm:$0xff]
      %v2803 = vld [vmem:[#allocation3 + $0x98] sm:$0xff]
      %v2804 = vld [vmem:[#allocation3 + $0xa0] sm:$0xff]
      %v2805 = vld [vmem:[#allocation3 + $0xa8] sm:$0xff]
      %v2806 = vld [vmem:[#allocation3 + $0xb0] sm:$0xff]
      %v2807 = vld [vmem:[#allocation3 + $0xb8] sm:$0xff]
      %v2808 = vld [vmem:[#allocation3 + $0xc0] sm:$0xff]
      %v2809 = vld [vmem:[#allocation3 + $0xc8] sm:$0xff]
      %v2810 = vld [vmem:[#allocation3 + $0xd0] sm:$0xff]
      %v2811 = vld [vmem:[#allocation3 + $0xd8] sm:$0xff]
      %v2812 = vld [vmem:[#allocation3 + $0xe0] sm:$0xff]
      %v2813 = vld [vmem:[#allocation3 + $0xe8] sm:$0xff]
      %v2814 = vld [vmem:[#allocation3 + $0xf0] sm:$0xff]
      %v2815 = vld [vmem:[#allocation3 + $0xf8] sm:$0xff]
      %v2816 = vld [vmem:[#allocation3 + $0x100] sm:$0xff]
      %v2817 = vld [vmem:[#allocation3 + $0x108] sm:$0xff]
      %v2818 = vld [vmem:[#allocation3 + $0x110] sm:$0xff]
      %v2819 = vld [vmem:[#allocation3 + $0x118] sm:$0xff]
      %v2820 = vld [vmem:[#allocation3 + $0x120] sm:$0xff]
      %v2821 = vld [vmem:[#allocation3 + $0x128] sm:$0xff]
      %v2822 = vld [vmem:[#allocation3 + $0x130] sm:$0xff]
      %v2823 = vld [vmem:[#allocation3 + $0x138] sm:$0xff]
      %v2824 = vpack.c.bf16 %v2784, %v2784
      %v2825 = vpack.c.bf16 %v2785, %v2785
      %v2826 = vpack.c.bf16 %v2786, %v2786
      %v2827 = vpack.c.bf16 %v2788, %v2788
      %v2828 = vpack.c.bf16 %v2789, %v2789
      %v2829 = vpack.c.bf16 %v2790, %v2790
      %v2830 = vpack.c.bf16 %v2792, %v2792
      %v2831 = vpack.c.bf16 %v2793, %v2793
      %v2832 = vpack.c.bf16 %v2794, %v2794
      %v2833 = vpack.c.bf16 %v2796, %v2796
      %v2834 = vpack.c.bf16 %v2797, %v2797
      %v2835 = vpack.c.bf16 %v2798, %v2798
      %v2836 = vpack.c.bf16 %v2800, %v2800
      %v2837 = vpack.c.bf16 %v2801, %v2801
      %v2838 = vpack.c.bf16 %v2802, %v2802
      %v2839 = vpack.c.bf16 %v2804, %v2804
      %v2840 = vpack.c.bf16 %v2805, %v2805
      %v2841 = vpack.c.bf16 %v2806, %v2806
      %v2842 = vpack.c.bf16 %v2808, %v2808
      %v2843 = vpack.c.bf16 %v2809, %v2809
      %v2844 = vpack.c.bf16 %v2810, %v2810
      %v2845 = vpack.c.bf16 %v2812, %v2812
      %v2846 = vpack.c.bf16 %v2813, %v2813
      %v2847 = vpack.c.bf16 %v2814, %v2814
      %v2848 = vpack.c.bf16 %v2816, %v2816
      %v2849 = vpack.c.bf16 %v2817, %v2817
      %v2850 = vpack.c.bf16 %v2818, %v2818
      %v2851 = vpack.c.bf16 %v2820, %v2820
      %v2852 = vpack.c.bf16 %v2821, %v2821
      %v2853 = vpack.c.bf16 %v2822, %v2822
      %vm2854 = vsmask.f32 256
      %vm2855 = vsmask.f32 4368
      %vm2856 = vmor %vm2854, %vm2855
      %v2858 = vshrl.u32 %v2824, 16
      %v2860 = vrot.slane %v2858, 7
      %v2861 = vrot.slane %v2860, 4
      %v2863 = vshrl.u32 %v2825, 16
      %v2865 = vrot.slane %v2863, 7
      %v2866 = vshll.u32 %v2825, 16
      %v2868 = vor.u32 %v2865, %v2866
      %v2869 = vsel %vm2856, %v2861, %v2868
      %v2870 = vrot.slane %v2865, 4
      %v2872 = vshrl.u32 %v2826, 16
      %v2874 = vrot.slane %v2872, 7
      %v2875 = vshll.u32 %v2826, 16
      %v2877 = vor.u32 %v2874, %v2875
      %v2878 = vsel %vm2856, %v2870, %v2877
      %v2880 = vshrl.u32 %v2827, 16
      %v2882 = vrot.slane %v2880, 7
      %v2883 = vrot.slane %v2882, 4
      %v2885 = vshrl.u32 %v2828, 16
      %v2887 = vrot.slane %v2885, 7
      %v2888 = vshll.u32 %v2828, 16
      %v2890 = vor.u32 %v2887, %v2888
      %v2891 = vsel %vm2856, %v2883, %v2890
      %v2892 = vrot.slane %v2887, 4
      %v2894 = vshrl.u32 %v2829, 16
      %v2896 = vrot.slane %v2894, 7
      %v2897 = vshll.u32 %v2829, 16
      %v2899 = vor.u32 %v2896, %v2897
      %v2900 = vsel %vm2856, %v2892, %v2899
      %v2902 = vshrl.u32 %v2830, 16
      %v2904 = vrot.slane %v2902, 7
      %v2905 = vrot.slane %v2904, 4
      %v2907 = vshrl.u32 %v2831, 16
      %v2909 = vrot.slane %v2907, 7
      %v2910 = vshll.u32 %v2831, 16
      %v2912 = vor.u32 %v2909, %v2910
      %v2913 = vsel %vm2856, %v2905, %v2912
      %v2914 = vrot.slane %v2909, 4
      %v2916 = vshrl.u32 %v2832, 16
      %v2918 = vrot.slane %v2916, 7
      %v2919 = vshll.u32 %v2832, 16
      %v2921 = vor.u32 %v2918, %v2919
      %v2922 = vsel %vm2856, %v2914, %v2921
      %v2924 = vshrl.u32 %v2833, 16
      %v2926 = vrot.slane %v2924, 7
      %v2927 = vrot.slane %v2926, 4
      %v2929 = vshrl.u32 %v2834, 16
      %v2931 = vrot.slane %v2929, 7
      %v2932 = vshll.u32 %v2834, 16
      %v2934 = vor.u32 %v2931, %v2932
      %v2935 = vsel %vm2856, %v2927, %v2934
      %v2936 = vrot.slane %v2931, 4
      %v2938 = vshrl.u32 %v2835, 16
      %v2940 = vrot.slane %v2938, 7
      %v2941 = vshll.u32 %v2835, 16
      %v2943 = vor.u32 %v2940, %v2941
      %v2944 = vsel %vm2856, %v2936, %v2943
      %v2946 = vshrl.u32 %v2836, 16
      %v2948 = vrot.slane %v2946, 7
      %v2949 = vrot.slane %v2948, 4
      %v2951 = vshrl.u32 %v2837, 16
      %v2953 = vrot.slane %v2951, 7
      %v2954 = vshll.u32 %v2837, 16
      %v2956 = vor.u32 %v2953, %v2954
      %v2957 = vsel %vm2856, %v2949, %v2956
      %v2958 = vrot.slane %v2953, 4
      %v2960 = vshrl.u32 %v2838, 16
      %v2962 = vrot.slane %v2960, 7
      %v2963 = vshll.u32 %v2838, 16
      %v2965 = vor.u32 %v2962, %v2963
      %v2966 = vsel %vm2856, %v2958, %v2965
      %v2968 = vshrl.u32 %v2839, 16
      %v2970 = vrot.slane %v2968, 7
      %v2971 = vrot.slane %v2970, 4
      %v2973 = vshrl.u32 %v2840, 16
      %v2975 = vrot.slane %v2973, 7
      %v2976 = vshll.u32 %v2840, 16
      %v2978 = vor.u32 %v2975, %v2976
      %v2979 = vsel %vm2856, %v2971, %v2978
      %v2980 = vrot.slane %v2975, 4
      %v2982 = vshrl.u32 %v2841, 16
      %v2984 = vrot.slane %v2982, 7
      %v2985 = vshll.u32 %v2841, 16
      %v2987 = vor.u32 %v2984, %v2985
      %v2988 = vsel %vm2856, %v2980, %v2987
      %v2990 = vshrl.u32 %v2842, 16
      %v2992 = vrot.slane %v2990, 7
      %v2993 = vrot.slane %v2992, 4
      %v2995 = vshrl.u32 %v2843, 16
      %v2997 = vrot.slane %v2995, 7
      %v2998 = vshll.u32 %v2843, 16
      %v3000 = vor.u32 %v2997, %v2998
      %v3001 = vsel %vm2856, %v2993, %v3000
      %v3002 = vrot.slane %v2997, 4
      %v3004 = vshrl.u32 %v2844, 16
      %v3006 = vrot.slane %v3004, 7
      %v3007 = vshll.u32 %v2844, 16
      %v3009 = vor.u32 %v3006, %v3007
      %v3010 = vsel %vm2856, %v3002, %v3009
      %v3012 = vshrl.u32 %v2845, 16
      %v3014 = vrot.slane %v3012, 7
      %v3015 = vrot.slane %v3014, 4
      %v3017 = vshrl.u32 %v2846, 16
      %v3019 = vrot.slane %v3017, 7
      %v3020 = vshll.u32 %v2846, 16
      %v3022 = vor.u32 %v3019, %v3020
      %v3023 = vsel %vm2856, %v3015, %v3022
      %v3024 = vrot.slane %v3019, 4
      %v3026 = vshrl.u32 %v2847, 16
      %v3028 = vrot.slane %v3026, 7
      %v3029 = vshll.u32 %v2847, 16
      %v3031 = vor.u32 %v3028, %v3029
      %v3032 = vsel %vm2856, %v3024, %v3031
      %v3034 = vshrl.u32 %v2848, 16
      %v3036 = vrot.slane %v3034, 7
      %v3037 = vrot.slane %v3036, 4
      %v3039 = vshrl.u32 %v2849, 16
      %v3041 = vrot.slane %v3039, 7
      %v3042 = vshll.u32 %v2849, 16
      %v3044 = vor.u32 %v3041, %v3042
      %v3045 = vsel %vm2856, %v3037, %v3044
      %v3046 = vrot.slane %v3041, 4
      %v3048 = vshrl.u32 %v2850, 16
      %v3050 = vrot.slane %v3048, 7
      %v3051 = vshll.u32 %v2850, 16
      %v3053 = vor.u32 %v3050, %v3051
      %v3054 = vsel %vm2856, %v3046, %v3053
      %v3056 = vshrl.u32 %v2851, 16
      %v3058 = vrot.slane %v3056, 7
      %v3059 = vrot.slane %v3058, 4
      %v3061 = vshrl.u32 %v2852, 16
      %v3063 = vrot.slane %v3061, 7
      %v3064 = vshll.u32 %v2852, 16
      %v3066 = vor.u32 %v3063, %v3064
      %v3067 = vsel %vm2856, %v3059, %v3066
      %v3068 = vrot.slane %v3063, 4
      %v3070 = vshrl.u32 %v2853, 16
      %v3072 = vrot.slane %v3070, 7
      %v3073 = vshll.u32 %v2853, 16
      %v3075 = vor.u32 %v3072, %v3073
      %v3076 = vsel %vm2856, %v3068, %v3075
      %3097 = vst [vmem:[#allocation4] sm:$0xf] %v2869
      %3098 = vst [vmem:[#allocation4 + $0xc] sm:$0xf] %v2878
      %3099 = vst [vmem:[#allocation4 + $0x18] sm:$0xf] %v2891
      %3100 = vst [vmem:[#allocation4 + $0x24] sm:$0xf] %v2900
      %3101 = vst [vmem:[#allocation4 + $0x30] sm:$0xf] %v2913
      %3102 = vst [vmem:[#allocation4 + $0x3c] sm:$0xf] %v2922
      %3103 = vst [vmem:[#allocation4 + $0x48] sm:$0xf] %v2935
      %3104 = vst [vmem:[#allocation4 + $0x54] sm:$0xf] %v2944
      %3105 = vst [vmem:[#allocation4 + $0x60] sm:$0xf] %v2957
      %3106 = vst [vmem:[#allocation4 + $0x6c] sm:$0xf] %v2966
      %3107 = vst [vmem:[#allocation4 + $0x78] sm:$0xf] %v2979
      %3108 = vst [vmem:[#allocation4 + $0x84] sm:$0xf] %v2988
      %3109 = vst [vmem:[#allocation4 + $0x90] sm:$0xf] %v3001
      %3110 = vst [vmem:[#allocation4 + $0x9c] sm:$0xf] %v3010
      %3111 = vst [vmem:[#allocation4 + $0xa8] sm:$0xf] %v3023
      %3112 = vst [vmem:[#allocation4 + $0xb4] sm:$0xf] %v3032
      %3113 = vst [vmem:[#allocation4 + $0xc0] sm:$0xf] %v3045
      %3114 = vst [vmem:[#allocation4 + $0xcc] sm:$0xf] %v3054
      %3115 = vst [vmem:[#allocation4 + $0xd8] sm:$0xf] %v3067
      %3116 = vst [vmem:[#allocation4 + $0xe4] sm:$0xf] %v3076
      %3117 = vst [vmem:[#allocation4 + $0x4] sm:$0xf] %v2825
      %3118 = vst [vmem:[#allocation4 + $0x10] sm:$0xf] %v2826
      %3119 = vst [vmem:[#allocation4 + $0x1c] sm:$0xf] %v2828
      %3120 = vst [vmem:[#allocation4 + $0x28] sm:$0xf] %v2829
      %3121 = vst [vmem:[#allocation4 + $0x34] sm:$0xf] %v2831
      %3122 = vst [vmem:[#allocation4 + $0x40] sm:$0xf] %v2832
      %3123 = vst [vmem:[#allocation4 + $0x4c] sm:$0xf] %v2834
      %3124 = vst [vmem:[#allocation4 + $0x58] sm:$0xf] %v2835
      %3125 = vst [vmem:[#allocation4 + $0x64] sm:$0xf] %v2837
      %3126 = vst [vmem:[#allocation4 + $0x70] sm:$0xf] %v2838
      %3127 = vst [vmem:[#allocation4 + $0x7c] sm:$0xf] %v2840
      %3128 = vst [vmem:[#allocation4 + $0x88] sm:$0xf] %v2841
      %3129 = vst [vmem:[#allocation4 + $0x94] sm:$0xf] %v2843
      %3130 = vst [vmem:[#allocation4 + $0xa0] sm:$0xf] %v2844
      %3131 = vst [vmem:[#allocation4 + $0xac] sm:$0xf] %v2846
      %3132 = vst [vmem:[#allocation4 + $0xb8] sm:$0xf] %v2847
      %3133 = vst [vmem:[#allocation4 + $0xc4] sm:$0xf] %v2849
      %3134 = vst [vmem:[#allocation4 + $0xd0] sm:$0xf] %v2850
      %3135 = vst [vmem:[#allocation4 + $0xdc] sm:$0xf] %v2852
      %3136 = vst [vmem:[#allocation4 + $0xe8] sm:$0xf] %v2853
      %v3137 = vpack.c.bf16 %v2787, %v2787
      %v3138 = vpack.c.bf16 %v2791, %v2791
      %v3139 = vpack.c.bf16 %v2795, %v2795
      %v3140 = vpack.c.bf16 %v2799, %v2799
      %v3141 = vpack.c.bf16 %v2803, %v2803
      %v3142 = vpack.c.bf16 %v2807, %v2807
      %v3143 = vpack.c.bf16 %v2811, %v2811
      %v3144 = vpack.c.bf16 %v2815, %v2815
      %v3145 = vpack.c.bf16 %v2819, %v2819
      %v3146 = vpack.c.bf16 %v2823, %v2823
      %v3147 = vrot.slane %v2863, 4
      %v3148 = vrot.slane %v2866, 5
      %v3149 = vor.u32 %v3147, %v3148
      %v3150 = vrot.slane %v3149, 4
      %v3151 = vrot.slane %v2875, 5
      %v3152 = vsel %vm398, %v3150, %v3151
      %v3153 = vrot.slane %v2872, 4
      %v3154 = vor.u32 %v3153, %v3151
      %v3155 = vrot.slane %v3154, 4
      %v3157 = vshll.u32 %v3137, 16
      %v3159 = vrot.slane %v3157, 5
      %v3160 = vsel %vm398, %v3155, %v3159
      %v3161 = vrot.slane %v2885, 4
      %v3162 = vrot.slane %v2888, 5
      %v3163 = vor.u32 %v3161, %v3162
      %v3164 = vrot.slane %v3163, 4
      %v3165 = vrot.slane %v2897, 5
      %v3166 = vsel %vm398, %v3164, %v3165
      %v3167 = vrot.slane %v2894, 4
      %v3168 = vor.u32 %v3167, %v3165
      %v3169 = vrot.slane %v3168, 4
      %v3171 = vshll.u32 %v3138, 16
      %v3173 = vrot.slane %v3171, 5
      %v3174 = vsel %vm398, %v3169, %v3173
      %v3175 = vrot.slane %v2907, 4
      %v3176 = vrot.slane %v2910, 5
      %v3177 = vor.u32 %v3175, %v3176
      %v3178 = vrot.slane %v3177, 4
      %v3179 = vrot.slane %v2919, 5
      %v3180 = vsel %vm398, %v3178, %v3179
      %v3181 = vrot.slane %v2916, 4
      %v3182 = vor.u32 %v3181, %v3179
      %v3183 = vrot.slane %v3182, 4
      %v3185 = vshll.u32 %v3139, 16
      %v3187 = vrot.slane %v3185, 5
      %v3188 = vsel %vm398, %v3183, %v3187
      %v3189 = vrot.slane %v2929, 4
      %v3190 = vrot.slane %v2932, 5
      %v3191 = vor.u32 %v3189, %v3190
      %v3192 = vrot.slane %v3191, 4
      %v3193 = vrot.slane %v2941, 5
      %v3194 = vsel %vm398, %v3192, %v3193
      %v3195 = vrot.slane %v2938, 4
      %v3196 = vor.u32 %v3195, %v3193
      %v3197 = vrot.slane %v3196, 4
      %v3199 = vshll.u32 %v3140, 16
      %v3201 = vrot.slane %v3199, 5
      %v3202 = vsel %vm398, %v3197, %v3201
      %v3203 = vrot.slane %v2951, 4
      %v3204 = vrot.slane %v2954, 5
      %v3205 = vor.u32 %v3203, %v3204
      %v3206 = vrot.slane %v3205, 4
      %v3207 = vrot.slane %v2963, 5
      %v3208 = vsel %vm398, %v3206, %v3207
      %v3209 = vrot.slane %v2960, 4
      %v3210 = vor.u32 %v3209, %v3207
      %v3211 = vrot.slane %v3210, 4
      %v3213 = vshll.u32 %v3141, 16
      %v3215 = vrot.slane %v3213, 5
      %v3216 = vsel %vm398, %v3211, %v3215
      %v3217 = vrot.slane %v2973, 4
      %v3218 = vrot.slane %v2976, 5
      %v3219 = vor.u32 %v3217, %v3218
      %v3220 = vrot.slane %v3219, 4
      %v3221 = vrot.slane %v2985, 5
      %v3222 = vsel %vm398, %v3220, %v3221
      %v3223 = vrot.slane %v2982, 4
      %v3224 = vor.u32 %v3223, %v3221
      %v3225 = vrot.slane %v3224, 4
      %v3227 = vshll.u32 %v3142, 16
      %v3229 = vrot.slane %v3227, 5
      %v3230 = vsel %vm398, %v3225, %v3229
      %v3231 = vrot.slane %v2995, 4
      %v3232 = vrot.slane %v2998, 5
      %v3233 = vor.u32 %v3231, %v3232
      %v3234 = vrot.slane %v3233, 4
      %v3235 = vrot.slane %v3007, 5
      %v3236 = vsel %vm398, %v3234, %v3235
      %v3237 = vrot.slane %v3004, 4
      %v3238 = vor.u32 %v3237, %v3235
      %v3239 = vrot.slane %v3238, 4
      %v3241 = vshll.u32 %v3143, 16
      %v3243 = vrot.slane %v3241, 5
      %v3244 = vsel %vm398, %v3239, %v3243
      %v3245 = vrot.slane %v3017, 4
      %v3246 = vrot.slane %v3020, 5
      %v3247 = vor.u32 %v3245, %v3246
      %v3248 = vrot.slane %v3247, 4
      %v3249 = vrot.slane %v3029, 5
      %v3250 = vsel %vm398, %v3248, %v3249
      %v3251 = vrot.slane %v3026, 4
      %v3252 = vor.u32 %v3251, %v3249
      %v3253 = vrot.slane %v3252, 4
      %v3255 = vshll.u32 %v3144, 16
      %v3257 = vrot.slane %v3255, 5
      %v3258 = vsel %vm398, %v3253, %v3257
      %v3259 = vrot.slane %v3039, 4
      %v3260 = vrot.slane %v3042, 5
      %v3261 = vor.u32 %v3259, %v3260
      %v3262 = vrot.slane %v3261, 4
      %v3263 = vrot.slane %v3051, 5
      %v3264 = vsel %vm398, %v3262, %v3263
      %v3265 = vrot.slane %v3048, 4
      %v3266 = vor.u32 %v3265, %v3263
      %v3267 = vrot.slane %v3266, 4
      %v3269 = vshll.u32 %v3145, 16
      %v3271 = vrot.slane %v3269, 5
      %v3272 = vsel %vm398, %v3267, %v3271
      %v3273 = vrot.slane %v3061, 4
      %v3274 = vrot.slane %v3064, 5
      %v3275 = vor.u32 %v3273, %v3274
      %v3276 = vrot.slane %v3275, 4
      %v3277 = vrot.slane %v3073, 5
      %v3278 = vsel %vm398, %v3276, %v3277
      %v3279 = vrot.slane %v3070, 4
      %v3280 = vor.u32 %v3279, %v3277
      %v3281 = vrot.slane %v3280, 4
      %v3283 = vshll.u32 %v3146, 16
      %v3285 = vrot.slane %v3283, 5
      %v3286 = vsel %vm398, %v3281, %v3285
      %3307 = vst [vmem:[#allocation4 + $0x8] sm:$0xf] %v3152
      %3308 = vst [vmem:[#allocation4 + $0x14] sm:$0xf] %v3160
      %3309 = vst [vmem:[#allocation4 + $0x20] sm:$0xf] %v3166
      %3310 = vst [vmem:[#allocation4 + $0x2c] sm:$0xf] %v3174
      %3311 = vst [vmem:[#allocation4 + $0x38] sm:$0xf] %v3180
      %3312 = vst [vmem:[#allocation4 + $0x44] sm:$0xf] %v3188
      %3313 = vst [vmem:[#allocation4 + $0x50] sm:$0xf] %v3194
      %3314 = vst [vmem:[#allocation4 + $0x5c] sm:$0xf] %v3202
      %3315 = vst [vmem:[#allocation4 + $0x68] sm:$0xf] %v3208
      %3316 = vst [vmem:[#allocation4 + $0x74] sm:$0xf] %v3216
      %3317 = vst [vmem:[#allocation4 + $0x80] sm:$0xf] %v3222
      %3318 = vst [vmem:[#allocation4 + $0x8c] sm:$0xf] %v3230
      %3319 = vst [vmem:[#allocation4 + $0x98] sm:$0xf] %v3236
      %3320 = vst [vmem:[#allocation4 + $0xa4] sm:$0xf] %v3244
      %3321 = vst [vmem:[#allocation4 + $0xb0] sm:$0xf] %v3250
      %3322 = vst [vmem:[#allocation4 + $0xbc] sm:$0xf] %v3258
      %3323 = vst [vmem:[#allocation4 + $0xc8] sm:$0xf] %v3264
      %3324 = vst [vmem:[#allocation4 + $0xd4] sm:$0xf] %v3272
      %3325 = vst [vmem:[#allocation4 + $0xe0] sm:$0xf] %v3278
      %3326 = vst [vmem:[#allocation4 + $0xec] sm:$0xf] %v3286
      %v3327 = vld [vmem:[#allocation4] sm:$0xff]
      %v3328 = vld [vmem:[#allocation4 + $0x8] sm:$0xf]
      %v3329 = vld [vmem:[#allocation4 + $0xc] sm:$0xff]
      %v3330 = vld [vmem:[#allocation4 + $0x14] sm:$0xf]
      %v3331 = vld [vmem:[#allocation4 + $0x18] sm:$0xff]
      %v3332 = vld [vmem:[#allocation4 + $0x20] sm:$0xf]
      %v3333 = vld [vmem:[#allocation4 + $0x24] sm:$0xff]
      %v3334 = vld [vmem:[#allocation4 + $0x2c] sm:$0xf]
      %v3335 = vld [vmem:[#allocation4 + $0x30] sm:$0xff]
      %v3336 = vld [vmem:[#allocation4 + $0x38] sm:$0xf]
      %v3337 = vld [vmem:[#allocation4 + $0x3c] sm:$0xff]
      %v3338 = vld [vmem:[#allocation4 + $0x44] sm:$0xf]
      %v3339 = vld [vmem:[#allocation4 + $0x48] sm:$0xff]
      %v3340 = vld [vmem:[#allocation4 + $0x50] sm:$0xf]
      %v3341 = vld [vmem:[#allocation4 + $0x54] sm:$0xff]
      %v3342 = vld [vmem:[#allocation4 + $0x5c] sm:$0xf]
      %v3343 = vld [vmem:[#allocation4 + $0x60] sm:$0xff]
      %v3344 = vld [vmem:[#allocation4 + $0x68] sm:$0xf]
      %v3345 = vld [vmem:[#allocation4 + $0x6c] sm:$0xff]
      %v3346 = vld [vmem:[#allocation4 + $0x74] sm:$0xf]
      %v3347 = vld [vmem:[#allocation4 + $0x78] sm:$0xff]
      %v3348 = vld [vmem:[#allocation4 + $0x80] sm:$0xf]
      %v3349 = vld [vmem:[#allocation4 + $0x84] sm:$0xff]
      %v3350 = vld [vmem:[#allocation4 + $0x8c] sm:$0xf]
      %v3351 = vld [vmem:[#allocation4 + $0x90] sm:$0xff]
      %v3352 = vld [vmem:[#allocation4 + $0x98] sm:$0xf]
      %v3353 = vld [vmem:[#allocation4 + $0x9c] sm:$0xff]
      %v3354 = vld [vmem:[#allocation4 + $0xa4] sm:$0xf]
      %v3355 = vld [vmem:[#allocation4 + $0xa8] sm:$0xff]
      %v3356 = vld [vmem:[#allocation4 + $0xb0] sm:$0xf]
      %v3357 = vld [vmem:[#allocation4 + $0xb4] sm:$0xff]
      %v3358 = vld [vmem:[#allocation4 + $0xbc] sm:$0xf]
      %v3359 = vld [vmem:[%s3] sm:$0xf]
      %v3360 = vld [vmem:[%s3 + $0x4] sm:$0xf]
      %v3361 = vld [vmem:[%s3 + $0x8] sm:$0xf]
      %v3362 = vld [vmem:[%s3 + $0xc] sm:$0xf]
      %v3363 = vld [vmem:[%s3 + $0x10] sm:$0xf]
      %v3364 = vld [vmem:[%s3 + $0x14] sm:$0xf]
      %v3365 = vld [vmem:[%s3 + $0x18] sm:$0xf]
      %v3366 = vld [vmem:[%s3 + $0x1c] sm:$0xf]
      %v3367 = vld [vmem:[%s3 + $0x20] sm:$0xf]
      %v3368 = vld [vmem:[%s3 + $0x24] sm:$0xf]
      %v3369 = vld [vmem:[%s3 + $0x28] sm:$0xf]
      %v3370 = vld [vmem:[%s3 + $0x2c] sm:$0xf]
      %v3371 = vld [vmem:[%s3 + $0x30] sm:$0xf]
      %v3372 = vld [vmem:[%s3 + $0x34] sm:$0xf]
      %v3373 = vld [vmem:[%s3 + $0x38] sm:$0xf]
      %v3374 = vld [vmem:[%s3 + $0x3c] sm:$0xf]
      %v3375 = vld [vmem:[%s3 + $0x40] sm:$0xf]
      %v3376 = vld [vmem:[%s3 + $0x44] sm:$0xf]
      %v3377 = vld [vmem:[%s3 + $0x48] sm:$0xf]
      %v3378 = vld [vmem:[%s3 + $0x4c] sm:$0xf]
      %v3379 = vld [vmem:[%s3 + $0x50] sm:$0xf]
      %v3380 = vld [vmem:[%s3 + $0x54] sm:$0xf]
      %v3381 = vld [vmem:[%s3 + $0x58] sm:$0xf]
      %v3382 = vld [vmem:[%s3 + $0x5c] sm:$0xf]
      %v3383 = vld [vmem:[%s3 + $0x60] sm:$0xf]
      %v3384 = vld [vmem:[%s3 + $0x64] sm:$0xf]
      %v3385 = vld [vmem:[%s3 + $0x68] sm:$0xf]
      %v3386 = vld [vmem:[%s3 + $0x6c] sm:$0xf]
      %v3387 = vld [vmem:[%s3 + $0x70] sm:$0xf]
      %v3388 = vld [vmem:[%s3 + $0x74] sm:$0xf]
      %v3389 = vld [vmem:[%s3 + $0x78] sm:$0xf]
      %v3390 = vld [vmem:[%s3 + $0x7c] sm:$0xf]
      %v3391 = vld [vmem:[%s3 + $0x80] sm:$0xf]
      %v3392 = vld [vmem:[%s3 + $0x84] sm:$0xf]
      %v3393 = vld [vmem:[%s3 + $0x88] sm:$0xf]
      %v3394 = vld [vmem:[%s3 + $0x8c] sm:$0xf]
      %v3395 = vld [vmem:[%s3 + $0x90] sm:$0xf]
      %v3396 = vld [vmem:[%s3 + $0x94] sm:$0xf]
      %v3397 = vld [vmem:[%s3 + $0x98] sm:$0xf]
      %v3398 = vld [vmem:[%s3 + $0x9c] sm:$0xf]
      %v3399 = vld [vmem:[%s3 + $0xa0] sm:$0xf]
      %v3400 = vld [vmem:[%s3 + $0xa4] sm:$0xf]
      %v3401 = vld [vmem:[%s3 + $0xa8] sm:$0xf]
      %v3402 = vld [vmem:[%s3 + $0xac] sm:$0xf]
      %v3403 = vld [vmem:[%s3 + $0xb0] sm:$0xf]
      %v3404 = vld [vmem:[%s3 + $0xb4] sm:$0xf]
      %v3405 = vld [vmem:[%s3 + $0xb8] sm:$0xf]
      %v3406 = vld [vmem:[%s3 + $0xbc] sm:$0xf]
      %s3407 = scalar_lea.vmem [#allocation4], 24
      %v3408 = vld [vmem:[%s3407] sm:$0xff]
      %v3409 = vld [vmem:[%s3407 + $0x8] sm:$0xf]
      %v3410 = vld [vmem:[%s3407 + $0xc] sm:$0xff]
      %v3411 = vld [vmem:[%s3407 + $0x14] sm:$0xf]
      %v3412 = vld [vmem:[%s3407 + $0x18] sm:$0xff]
      %v3413 = vld [vmem:[%s3407 + $0x20] sm:$0xf]
      %v3414 = vld [vmem:[%s3407 + $0x24] sm:$0xff]
      %v3415 = vld [vmem:[%s3407 + $0x2c] sm:$0xf]
      %v3416 = vld [vmem:[%s3407 + $0x30] sm:$0xff]
      %v3417 = vld [vmem:[%s3407 + $0x38] sm:$0xf]
      %v3418 = vld [vmem:[%s3407 + $0x3c] sm:$0xff]
      %v3419 = vld [vmem:[%s3407 + $0x44] sm:$0xf]
      %v3420 = vld [vmem:[%s3407 + $0x48] sm:$0xff]
      %v3421 = vld [vmem:[%s3407 + $0x50] sm:$0xf]
      %v3422 = vld [vmem:[%s3407 + $0x54] sm:$0xff]
      %v3423 = vld [vmem:[%s3407 + $0x5c] sm:$0xf]
      %v3424 = vld [vmem:[%s3407 + $0x60] sm:$0xff]
      %v3425 = vld [vmem:[%s3407 + $0x68] sm:$0xf]
      %v3426 = vld [vmem:[%s3407 + $0x6c] sm:$0xff]
      %v3427 = vld [vmem:[%s3407 + $0x74] sm:$0xf]
      %v3428 = vld [vmem:[%s3407 + $0x78] sm:$0xff]
      %v3429 = vld [vmem:[%s3407 + $0x80] sm:$0xf]
      %v3430 = vld [vmem:[%s3407 + $0x84] sm:$0xff]
      %v3431 = vld [vmem:[%s3407 + $0x8c] sm:$0xf]
      %v3432 = vld [vmem:[%s3407 + $0x90] sm:$0xff]
      %v3433 = vld [vmem:[%s3407 + $0x98] sm:$0xf]
      %v3434 = vld [vmem:[%s3407 + $0x9c] sm:$0xff]
      %v3435 = vld [vmem:[%s3407 + $0xa4] sm:$0xf]
      %v3436 = vld [vmem:[%s3407 + $0xa8] sm:$0xff]
      %v3437 = vld [vmem:[%s3407 + $0xb0] sm:$0xf]
      %v3438 = vld [vmem:[%s3407 + $0xb4] sm:$0xff]
      %v3439 = vld [vmem:[%s3407 + $0xbc] sm:$0xf]
      %s3440 = scalar_lea.vmem %s3, 192
      %v3441 = vld [vmem:[%s3440] sm:$0xf]
      %v3442 = vld [vmem:[%s3440 + $0x4] sm:$0xf]
      %v3443 = vld [vmem:[%s3440 + $0x8] sm:$0xf]
      %v3444 = vld [vmem:[%s3440 + $0xc] sm:$0xf]
      %v3445 = vld [vmem:[%s3440 + $0x10] sm:$0xf]
      %v3446 = vld [vmem:[%s3440 + $0x14] sm:$0xf]
      %v3447 = vld [vmem:[%s3440 + $0x18] sm:$0xf]
      %v3448 = vld [vmem:[%s3440 + $0x1c] sm:$0xf]
      %v3449 = vld [vmem:[%s3440 + $0x20] sm:$0xf]
      %v3450 = vld [vmem:[%s3440 + $0x24] sm:$0xf]
      %v3451 = vld [vmem:[%s3440 + $0x28] sm:$0xf]
      %v3452 = vld [vmem:[%s3440 + $0x2c] sm:$0xf]
      %v3453 = vld [vmem:[%s3440 + $0x30] sm:$0xf]
      %v3454 = vld [vmem:[%s3440 + $0x34] sm:$0xf]
      %v3455 = vld [vmem:[%s3440 + $0x38] sm:$0xf]
      %v3456 = vld [vmem:[%s3440 + $0x3c] sm:$0xf]
      %v3457 = vld [vmem:[%s3440 + $0x40] sm:$0xf]
      %v3458 = vld [vmem:[%s3440 + $0x44] sm:$0xf]
      %v3459 = vld [vmem:[%s3440 + $0x48] sm:$0xf]
      %v3460 = vld [vmem:[%s3440 + $0x4c] sm:$0xf]
      %v3461 = vld [vmem:[%s3440 + $0x50] sm:$0xf]
      %v3462 = vld [vmem:[%s3440 + $0x54] sm:$0xf]
      %v3463 = vld [vmem:[%s3440 + $0x58] sm:$0xf]
      %v3464 = vld [vmem:[%s3440 + $0x5c] sm:$0xf]
      %v3465 = vld [vmem:[%s3440 + $0x60] sm:$0xf]
      %v3466 = vld [vmem:[%s3440 + $0x64] sm:$0xf]
      %v3467 = vld [vmem:[%s3440 + $0x68] sm:$0xf]
      %v3468 = vld [vmem:[%s3440 + $0x6c] sm:$0xf]
      %v3469 = vld [vmem:[%s3440 + $0x70] sm:$0xf]
      %v3470 = vld [vmem:[%s3440 + $0x74] sm:$0xf]
      %v3471 = vld [vmem:[%s3440 + $0x78] sm:$0xf]
      %v3472 = vld [vmem:[%s3440 + $0x7c] sm:$0xf]
      %v3473 = vld [vmem:[%s3440 + $0x80] sm:$0xf]
      %v3474 = vld [vmem:[%s3440 + $0x84] sm:$0xf]
      %v3475 = vld [vmem:[%s3440 + $0x88] sm:$0xf]
      %v3476 = vld [vmem:[%s3440 + $0x8c] sm:$0xf]
      %v3477 = vld [vmem:[%s3440 + $0x90] sm:$0xf]
      %v3478 = vld [vmem:[%s3440 + $0x94] sm:$0xf]
      %v3479 = vld [vmem:[%s3440 + $0x98] sm:$0xf]
      %v3480 = vld [vmem:[%s3440 + $0x9c] sm:$0xf]
      %v3481 = vld [vmem:[%s3440 + $0xa0] sm:$0xf]
      %v3482 = vld [vmem:[%s3440 + $0xa4] sm:$0xf]
      %v3483 = vld [vmem:[%s3440 + $0xa8] sm:$0xf]
      %v3484 = vld [vmem:[%s3440 + $0xac] sm:$0xf]
      %v3485 = vld [vmem:[%s3440 + $0xb0] sm:$0xf]
      %v3486 = vld [vmem:[%s3440 + $0xb4] sm:$0xf]
      %v3487 = vld [vmem:[%s3440 + $0xb8] sm:$0xf]
      %v3488 = vld [vmem:[%s3440 + $0xbc] sm:$0xf]
      %v3521 = vunpack.c.l.b16 %v3408
      %v3522 = vunpack.c.h.b16 %v3408
      %v3523 = vunpack.c.l.b16 %v3409
      %v3524 = vunpack.c.l.b16 %v3410
      %v3525 = vunpack.c.h.b16 %v3410
      %v3526 = vunpack.c.l.b16 %v3411
      %v3527 = vunpack.c.l.b16 %v3412
      %v3528 = vunpack.c.h.b16 %v3412
      %v3529 = vunpack.c.l.b16 %v3413
      %v3530 = vunpack.c.l.b16 %v3414
      %v3531 = vunpack.c.h.b16 %v3414
      %v3532 = vunpack.c.l.b16 %v3415
      %v3533 = vunpack.c.l.b16 %v3416
      %v3534 = vunpack.c.h.b16 %v3416
      %v3535 = vunpack.c.l.b16 %v3417
      %v3536 = vunpack.c.l.b16 %v3418
      %v3537 = vunpack.c.h.b16 %v3418
      %v3538 = vunpack.c.l.b16 %v3419
      %v3539 = vunpack.c.l.b16 %v3420
      %v3540 = vunpack.c.h.b16 %v3420
      %v3541 = vunpack.c.l.b16 %v3421
      %v3542 = vunpack.c.l.b16 %v3422
      %v3543 = vunpack.c.h.b16 %v3422
      %v3544 = vunpack.c.l.b16 %v3423
      %v3545 = vunpack.c.l.b16 %v3424
      %v3546 = vunpack.c.h.b16 %v3424
      %v3547 = vunpack.c.l.b16 %v3425
      %v3548 = vunpack.c.l.b16 %v3426
      %v3549 = vunpack.c.h.b16 %v3426
      %v3550 = vunpack.c.l.b16 %v3427
      %v3551 = vunpack.c.l.b16 %v3428
      %v3552 = vunpack.c.h.b16 %v3428
      %v3553 = vunpack.c.l.b16 %v3429
      %v3554 = vunpack.c.l.b16 %v3430
      %v3555 = vunpack.c.h.b16 %v3430
      %v3556 = vunpack.c.l.b16 %v3431
      %v3557 = vunpack.c.l.b16 %v3432
      %v3558 = vunpack.c.h.b16 %v3432
      %v3559 = vunpack.c.l.b16 %v3433
      %v3560 = vunpack.c.l.b16 %v3434
      %v3561 = vunpack.c.h.b16 %v3434
      %v3562 = vunpack.c.l.b16 %v3435
      %v3563 = vunpack.c.l.b16 %v3436
      %v3564 = vunpack.c.h.b16 %v3436
      %v3565 = vunpack.c.l.b16 %v3437
      %v3566 = vunpack.c.l.b16 %v3438
      %v3567 = vunpack.c.h.b16 %v3438
      %v3568 = vunpack.c.l.b16 %v3439
      %v3569 = vpack.c.b16 %v3524, %v3521
      %v3570 = vpack.c.b16 %v3525, %v3522
      %v3571 = vpack.c.b16 %v3526, %v3523
      %v3572 = vpack.c.b16 %v3530, %v3527
      %v3573 = vpack.c.b16 %v3531, %v3528
      %v3574 = vpack.c.b16 %v3532, %v3529
      %v3575 = vpack.c.b16 %v3536, %v3533
      %v3576 = vpack.c.b16 %v3537, %v3534
      %v3577 = vpack.c.b16 %v3538, %v3535
      %v3578 = vpack.c.b16 %v3542, %v3539
      %v3579 = vpack.c.b16 %v3543, %v3540
      %v3580 = vpack.c.b16 %v3544, %v3541
      %v3581 = vpack.c.b16 %v3548, %v3545
      %v3582 = vpack.c.b16 %v3549, %v3546
      %v3583 = vpack.c.b16 %v3550, %v3547
      %v3584 = vpack.c.b16 %v3554, %v3551
      %v3585 = vpack.c.b16 %v3555, %v3552
      %v3586 = vpack.c.b16 %v3556, %v3553
      %v3587 = vpack.c.b16 %v3560, %v3557
      %v3588 = vpack.c.b16 %v3561, %v3558
      %v3589 = vpack.c.b16 %v3562, %v3559
      %v3590 = vpack.c.b16 %v3566, %v3563
      %v3591 = vpack.c.b16 %v3567, %v3564
      %v3592 = vpack.c.b16 %v3568, %v3565
      %v3665 = vunpack.c.l.b16 %v3441
      %v3666 = vunpack.c.l.b16 %v3442
      %v3667 = vunpack.c.l.b16 %v3443
      %v3668 = vunpack.c.l.b16 %v3444
      %v3669 = vunpack.c.l.b16 %v3445
      %v3670 = vunpack.c.l.b16 %v3446
      %v3671 = vunpack.c.l.b16 %v3447
      %v3672 = vunpack.c.l.b16 %v3448
      %v3673 = vunpack.c.l.b16 %v3449
      %v3674 = vunpack.c.l.b16 %v3450
      %v3675 = vunpack.c.l.b16 %v3451
      %v3676 = vunpack.c.l.b16 %v3452
      %v3677 = vunpack.c.l.b16 %v3453
      %v3678 = vunpack.c.l.b16 %v3454
      %v3679 = vunpack.c.l.b16 %v3455
      %v3680 = vunpack.c.l.b16 %v3456
      %v3681 = vunpack.c.l.b16 %v3457
      %v3682 = vunpack.c.l.b16 %v3458
      %v3683 = vunpack.c.l.b16 %v3459
      %v3684 = vunpack.c.l.b16 %v3460
      %v3685 = vunpack.c.l.b16 %v3461
      %v3686 = vunpack.c.l.b16 %v3462
      %v3687 = vunpack.c.l.b16 %v3463
      %v3688 = vunpack.c.l.b16 %v3464
      %v3689 = vunpack.c.l.b16 %v3465
      %v3690 = vunpack.c.l.b16 %v3466
      %v3691 = vunpack.c.l.b16 %v3467
      %v3692 = vunpack.c.l.b16 %v3468
      %v3693 = vunpack.c.l.b16 %v3469
      %v3694 = vunpack.c.l.b16 %v3470
      %v3695 = vunpack.c.l.b16 %v3471
      %v3696 = vunpack.c.l.b16 %v3472
      %v3697 = vunpack.c.l.b16 %v3473
      %v3698 = vunpack.c.l.b16 %v3474
      %v3699 = vunpack.c.l.b16 %v3475
      %v3700 = vunpack.c.l.b16 %v3476
      %v3701 = vunpack.c.l.b16 %v3477
      %v3702 = vunpack.c.l.b16 %v3478
      %v3703 = vunpack.c.l.b16 %v3479
      %v3704 = vunpack.c.l.b16 %v3480
      %v3705 = vunpack.c.l.b16 %v3481
      %v3706 = vunpack.c.l.b16 %v3482
      %v3707 = vunpack.c.l.b16 %v3483
      %v3708 = vunpack.c.l.b16 %v3484
      %v3709 = vunpack.c.l.b16 %v3485
      %v3710 = vunpack.c.l.b16 %v3486
      %v3711 = vunpack.c.l.b16 %v3487
      %v3712 = vunpack.c.l.b16 %v3488
      %v3713 = vpack.c.b16 %v3666, %v3665
      %v3714 = vpack.c.b16 %v3668, %v3667
      %v3715 = vpack.c.b16 %v3670, %v3669
      %v3716 = vpack.c.b16 %v3672, %v3671
      %v3717 = vpack.c.b16 %v3674, %v3673
      %v3718 = vpack.c.b16 %v3676, %v3675
      %v3719 = vpack.c.b16 %v3678, %v3677
      %v3720 = vpack.c.b16 %v3680, %v3679
      %v3721 = vpack.c.b16 %v3682, %v3681
      %v3722 = vpack.c.b16 %v3684, %v3683
      %v3723 = vpack.c.b16 %v3686, %v3685
      %v3724 = vpack.c.b16 %v3688, %v3687
      %v3725 = vpack.c.b16 %v3690, %v3689
      %v3726 = vpack.c.b16 %v3692, %v3691
      %v3727 = vpack.c.b16 %v3694, %v3693
      %v3728 = vpack.c.b16 %v3696, %v3695
      %v3729 = vpack.c.b16 %v3698, %v3697
      %v3730 = vpack.c.b16 %v3700, %v3699
      %v3731 = vpack.c.b16 %v3702, %v3701
      %v3732 = vpack.c.b16 %v3704, %v3703
      %v3733 = vpack.c.b16 %v3706, %v3705
      %v3734 = vpack.c.b16 %v3708, %v3707
      %v3735 = vpack.c.b16 %v3710, %v3709
      %v3736 = vpack.c.b16 %v3712, %v3711
      %3761 = vmatpush.bf16.msra.mxu0 %v3720
      %3762 = vmatpush.bf16.msra.mxu0 %v3719
      %3763 = vmatpush.bf16.msra.mxu0 %v3718
      %3764 = vmatpush.bf16.msra.mxu0 %v3717
      %3765 = vmatpush.bf16.msra.mxu0 %v3716
      %3766 = vmatpush.bf16.msra.mxu0 %v3715
      %3767 = vmatpush.bf16.msra.mxu0 %v3714
      %3768 = vmatpush.bf16.msra.mxu0 %v3713
      %3769 = vmatmul.bf16.gmra.mxu0 %v3569
      %v3770 = vpop.f32.mrf.mxu0
      %v3771 = vadd.f32 0.0, %v3770
      %v3772 = vpop.f32.mrf.mxu0
      %v3773 = vadd.f32 0.0, %v3772
      %3774 = vmatmul.bf16.gmra.mxu0 %v3572
      %v3775 = vpop.f32.mrf.mxu0
      %v3776 = vadd.f32 0.0, %v3775
      %v3777 = vpop.f32.mrf.mxu0
      %v3778 = vadd.f32 0.0, %v3777
      %3779 = vmatmul.bf16.gmra.mxu0 %v3575
      %v3780 = vpop.f32.mrf.mxu0
      %v3781 = vadd.f32 0.0, %v3780
      %v3782 = vpop.f32.mrf.mxu0
      %v3783 = vadd.f32 0.0, %v3782
      %3784 = vmatmul.bf16.gmra.mxu0 %v3578
      %v3785 = vpop.f32.mrf.mxu0
      %v3786 = vadd.f32 0.0, %v3785
      %v3787 = vpop.f32.mrf.mxu0
      %v3788 = vadd.f32 0.0, %v3787
      %3789 = vmatmul.bf16.gmra.mxu0 %v3581
      %v3790 = vpop.f32.mrf.mxu0
      %v3791 = vadd.f32 0.0, %v3790
      %v3792 = vpop.f32.mrf.mxu0
      %v3793 = vadd.f32 0.0, %v3792
      %3794 = vmatmul.bf16.gmra.mxu0 %v3584
      %v3795 = vpop.f32.mrf.mxu0
      %v3796 = vadd.f32 0.0, %v3795
      %v3797 = vpop.f32.mrf.mxu0
      %v3798 = vadd.f32 0.0, %v3797
      %3799 = vmatmul.bf16.gmra.mxu0 %v3587
      %v3800 = vpop.f32.mrf.mxu0
      %v3801 = vadd.f32 0.0, %v3800
      %v3802 = vpop.f32.mrf.mxu0
      %v3803 = vadd.f32 0.0, %v3802
      %3804 = vmatmul.bf16.gmra.mxu0 %v3590
      %v3805 = vpop.f32.mrf.mxu0
      %v3806 = vadd.f32 0.0, %v3805
      %v3807 = vpop.f32.mrf.mxu0
      %v3808 = vadd.f32 0.0, %v3807
      %3809 = vdwg.mxu0
      %3810 = vmatpush.bf16.msra.mxu0 %v3728
      %3811 = vmatpush.bf16.msra.mxu0 %v3727
      %3812 = vmatpush.bf16.msra.mxu0 %v3726
      %3813 = vmatpush.bf16.msra.mxu0 %v3725
      %3814 = vmatpush.bf16.msra.mxu0 %v3724
      %3815 = vmatpush.bf16.msra.mxu0 %v3723
      %3816 = vmatpush.bf16.msra.mxu0 %v3722
      %3817 = vmatpush.bf16.msra.mxu0 %v3721
      %3818 = vmatmul.bf16.gmra.mxu0 %v3570
      %v3819 = vpop.f32.mrf.mxu0
      %v3820 = vadd.f32 %v3771, %v3819
      %v3821 = vpop.f32.mrf.mxu0
      %v3822 = vadd.f32 %v3773, %v3821
      %3823 = vmatmul.bf16.gmra.mxu0 %v3573
      %v3824 = vpop.f32.mrf.mxu0
      %v3825 = vadd.f32 %v3776, %v3824
      %v3826 = vpop.f32.mrf.mxu0
      %v3827 = vadd.f32 %v3778, %v3826
      %3828 = vmatmul.bf16.gmra.mxu0 %v3576
      %v3829 = vpop.f32.mrf.mxu0
      %v3830 = vadd.f32 %v3781, %v3829
      %v3831 = vpop.f32.mrf.mxu0
      %v3832 = vadd.f32 %v3783, %v3831
      %3833 = vmatmul.bf16.gmra.mxu0 %v3579
      %v3834 = vpop.f32.mrf.mxu0
      %v3835 = vadd.f32 %v3786, %v3834
      %v3836 = vpop.f32.mrf.mxu0
      %v3837 = vadd.f32 %v3788, %v3836
      %3838 = vmatmul.bf16.gmra.mxu0 %v3582
      %v3839 = vpop.f32.mrf.mxu0
      %v3840 = vadd.f32 %v3791, %v3839
      %v3841 = vpop.f32.mrf.mxu0
      %v3842 = vadd.f32 %v3793, %v3841
      %3843 = vmatmul.bf16.gmra.mxu0 %v3585
      %v3844 = vpop.f32.mrf.mxu0
      %v3845 = vadd.f32 %v3796, %v3844
      %v3846 = vpop.f32.mrf.mxu0
      %v3847 = vadd.f32 %v3798, %v3846
      %3848 = vmatmul.bf16.gmra.mxu0 %v3588
      %v3849 = vpop.f32.mrf.mxu0
      %v3850 = vadd.f32 %v3801, %v3849
      %v3851 = vpop.f32.mrf.mxu0
      %v3852 = vadd.f32 %v3803, %v3851
      %3853 = vmatmul.bf16.gmra.mxu0 %v3591
      %v3854 = vpop.f32.mrf.mxu0
      %v3855 = vadd.f32 %v3806, %v3854
      %v3856 = vpop.f32.mrf.mxu0
      %v3857 = vadd.f32 %v3808, %v3856
      %3858 = vdwg.mxu0
      %3859 = vmatpush.bf16.msra.mxu0 %v3736
      %3860 = vmatpush.bf16.msra.mxu0 %v3735
      %3861 = vmatpush.bf16.msra.mxu0 %v3734
      %3862 = vmatpush.bf16.msra.mxu0 %v3733
      %3863 = vmatpush.bf16.msra.mxu0 %v3732
      %3864 = vmatpush.bf16.msra.mxu0 %v3731
      %3865 = vmatpush.bf16.msra.mxu0 %v3730
      %3866 = vmatpush.bf16.msra.mxu0 %v3729
      %3867 = vmatmul.bf16.gmra.mxu0 %v3571
      %v3868 = vpop.f32.mrf.mxu0
      %v3869 = vadd.f32 %v3820, %v3868
      %v3870 = vpop.f32.mrf.mxu0
      %v3871 = vadd.f32 %v3822, %v3870
      %3872 = vmatmul.bf16.gmra.mxu0 %v3574
      %v3873 = vpop.f32.mrf.mxu0
      %v3874 = vadd.f32 %v3825, %v3873
      %v3875 = vpop.f32.mrf.mxu0
      %v3876 = vadd.f32 %v3827, %v3875
      %3877 = vmatmul.bf16.gmra.mxu0 %v3577
      %v3878 = vpop.f32.mrf.mxu0
      %v3879 = vadd.f32 %v3830, %v3878
      %v3880 = vpop.f32.mrf.mxu0
      %v3881 = vadd.f32 %v3832, %v3880
      %3882 = vmatmul.bf16.gmra.mxu0 %v3580
      %v3883 = vpop.f32.mrf.mxu0
      %v3884 = vadd.f32 %v3835, %v3883
      %v3885 = vpop.f32.mrf.mxu0
      %v3886 = vadd.f32 %v3837, %v3885
      %3887 = vmatmul.bf16.gmra.mxu0 %v3583
      %v3888 = vpop.f32.mrf.mxu0
      %v3889 = vadd.f32 %v3840, %v3888
      %v3890 = vpop.f32.mrf.mxu0
      %v3891 = vadd.f32 %v3842, %v3890
      %3892 = vmatmul.bf16.gmra.mxu0 %v3586
      %v3893 = vpop.f32.mrf.mxu0
      %v3894 = vadd.f32 %v3845, %v3893
      %v3895 = vpop.f32.mrf.mxu0
      %v3896 = vadd.f32 %v3847, %v3895
      %3897 = vmatmul.bf16.gmra.mxu0 %v3589
      %v3898 = vpop.f32.mrf.mxu0
      %v3899 = vadd.f32 %v3850, %v3898
      %v3900 = vpop.f32.mrf.mxu0
      %v3901 = vadd.f32 %v3852, %v3900
      %3902 = vmatmul.bf16.gmra.mxu0 %v3592
      %v3903 = vpop.f32.mrf.mxu0
      %v3904 = vadd.f32 %v3855, %v3903
      %v3905 = vpop.f32.mrf.mxu0
      %v3906 = vadd.f32 %v3857, %v3905
      %3907 = vdwg.mxu0
      %v3940 = vunpack.c.l.b16 %v3327
      %v3941 = vunpack.c.h.b16 %v3327
      %v3942 = vunpack.c.l.b16 %v3328
      %v3943 = vunpack.c.l.b16 %v3329
      %v3944 = vunpack.c.h.b16 %v3329
      %v3945 = vunpack.c.l.b16 %v3330
      %v3946 = vunpack.c.l.b16 %v3331
      %v3947 = vunpack.c.h.b16 %v3331
      %v3948 = vunpack.c.l.b16 %v3332
      %v3949 = vunpack.c.l.b16 %v3333
      %v3950 = vunpack.c.h.b16 %v3333
      %v3951 = vunpack.c.l.b16 %v3334
      %v3952 = vunpack.c.l.b16 %v3335
      %v3953 = vunpack.c.h.b16 %v3335
      %v3954 = vunpack.c.l.b16 %v3336
      %v3955 = vunpack.c.l.b16 %v3337
      %v3956 = vunpack.c.h.b16 %v3337
      %v3957 = vunpack.c.l.b16 %v3338
      %v3958 = vunpack.c.l.b16 %v3339
      %v3959 = vunpack.c.h.b16 %v3339
      %v3960 = vunpack.c.l.b16 %v3340
      %v3961 = vunpack.c.l.b16 %v3341
      %v3962 = vunpack.c.h.b16 %v3341
      %v3963 = vunpack.c.l.b16 %v3342
      %v3964 = vunpack.c.l.b16 %v3343
      %v3965 = vunpack.c.h.b16 %v3343
      %v3966 = vunpack.c.l.b16 %v3344
      %v3967 = vunpack.c.l.b16 %v3345
      %v3968 = vunpack.c.h.b16 %v3345
      %v3969 = vunpack.c.l.b16 %v3346
      %v3970 = vunpack.c.l.b16 %v3347
      %v3971 = vunpack.c.h.b16 %v3347
      %v3972 = vunpack.c.l.b16 %v3348
      %v3973 = vunpack.c.l.b16 %v3349
      %v3974 = vunpack.c.h.b16 %v3349
      %v3975 = vunpack.c.l.b16 %v3350
      %v3976 = vunpack.c.l.b16 %v3351
      %v3977 = vunpack.c.h.b16 %v3351
      %v3978 = vunpack.c.l.b16 %v3352
      %v3979 = vunpack.c.l.b16 %v3353
      %v3980 = vunpack.c.h.b16 %v3353
      %v3981 = vunpack.c.l.b16 %v3354
      %v3982 = vunpack.c.l.b16 %v3355
      %v3983 = vunpack.c.h.b16 %v3355
      %v3984 = vunpack.c.l.b16 %v3356
      %v3985 = vunpack.c.l.b16 %v3357
      %v3986 = vunpack.c.h.b16 %v3357
      %v3987 = vunpack.c.l.b16 %v3358
      %v3988 = vpack.c.b16 %v3943, %v3940
      %v3989 = vpack.c.b16 %v3944, %v3941
      %v3990 = vpack.c.b16 %v3945, %v3942
      %v3991 = vpack.c.b16 %v3949, %v3946
      %v3992 = vpack.c.b16 %v3950, %v3947
      %v3993 = vpack.c.b16 %v3951, %v3948
      %v3994 = vpack.c.b16 %v3955, %v3952
      %v3995 = vpack.c.b16 %v3956, %v3953
      %v3996 = vpack.c.b16 %v3957, %v3954
      %v3997 = vpack.c.b16 %v3961, %v3958
      %v3998 = vpack.c.b16 %v3962, %v3959
      %v3999 = vpack.c.b16 %v3963, %v3960
      %v4000 = vpack.c.b16 %v3967, %v3964
      %v4001 = vpack.c.b16 %v3968, %v3965
      %v4002 = vpack.c.b16 %v3969, %v3966
      %v4003 = vpack.c.b16 %v3973, %v3970
      %v4004 = vpack.c.b16 %v3974, %v3971
      %v4005 = vpack.c.b16 %v3975, %v3972
      %v4006 = vpack.c.b16 %v3979, %v3976
      %v4007 = vpack.c.b16 %v3980, %v3977
      %v4008 = vpack.c.b16 %v3981, %v3978
      %v4009 = vpack.c.b16 %v3985, %v3982
      %v4010 = vpack.c.b16 %v3986, %v3983
      %v4011 = vpack.c.b16 %v3987, %v3984
      %v4084 = vunpack.c.l.b16 %v3359
      %v4085 = vunpack.c.l.b16 %v3360
      %v4086 = vunpack.c.l.b16 %v3361
      %v4087 = vunpack.c.l.b16 %v3362
      %v4088 = vunpack.c.l.b16 %v3363
      %v4089 = vunpack.c.l.b16 %v3364
      %v4090 = vunpack.c.l.b16 %v3365
      %v4091 = vunpack.c.l.b16 %v3366
      %v4092 = vunpack.c.l.b16 %v3367
      %v4093 = vunpack.c.l.b16 %v3368
      %v4094 = vunpack.c.l.b16 %v3369
      %v4095 = vunpack.c.l.b16 %v3370
      %v4096 = vunpack.c.l.b16 %v3371
      %v4097 = vunpack.c.l.b16 %v3372
      %v4098 = vunpack.c.l.b16 %v3373
      %v4099 = vunpack.c.l.b16 %v3374
      %v4100 = vunpack.c.l.b16 %v3375
      %v4101 = vunpack.c.l.b16 %v3376
      %v4102 = vunpack.c.l.b16 %v3377
      %v4103 = vunpack.c.l.b16 %v3378
      %v4104 = vunpack.c.l.b16 %v3379
      %v4105 = vunpack.c.l.b16 %v3380
      %v4106 = vunpack.c.l.b16 %v3381
      %v4107 = vunpack.c.l.b16 %v3382
      %v4108 = vunpack.c.l.b16 %v3383
      %v4109 = vunpack.c.l.b16 %v3384
      %v4110 = vunpack.c.l.b16 %v3385
      %v4111 = vunpack.c.l.b16 %v3386
      %v4112 = vunpack.c.l.b16 %v3387
      %v4113 = vunpack.c.l.b16 %v3388
      %v4114 = vunpack.c.l.b16 %v3389
      %v4115 = vunpack.c.l.b16 %v3390
      %v4116 = vunpack.c.l.b16 %v3391
      %v4117 = vunpack.c.l.b16 %v3392
      %v4118 = vunpack.c.l.b16 %v3393
      %v4119 = vunpack.c.l.b16 %v3394
      %v4120 = vunpack.c.l.b16 %v3395
      %v4121 = vunpack.c.l.b16 %v3396
      %v4122 = vunpack.c.l.b16 %v3397
      %v4123 = vunpack.c.l.b16 %v3398
      %v4124 = vunpack.c.l.b16 %v3399
      %v4125 = vunpack.c.l.b16 %v3400
      %v4126 = vunpack.c.l.b16 %v3401
      %v4127 = vunpack.c.l.b16 %v3402
      %v4128 = vunpack.c.l.b16 %v3403
      %v4129 = vunpack.c.l.b16 %v3404
      %v4130 = vunpack.c.l.b16 %v3405
      %v4131 = vunpack.c.l.b16 %v3406
      %v4132 = vpack.c.b16 %v4085, %v4084
      %v4133 = vpack.c.b16 %v4087, %v4086
      %v4134 = vpack.c.b16 %v4089, %v4088
      %v4135 = vpack.c.b16 %v4091, %v4090
      %v4136 = vpack.c.b16 %v4093, %v4092
      %v4137 = vpack.c.b16 %v4095, %v4094
      %v4138 = vpack.c.b16 %v4097, %v4096
      %v4139 = vpack.c.b16 %v4099, %v4098
      %v4140 = vpack.c.b16 %v4101, %v4100
      %v4141 = vpack.c.b16 %v4103, %v4102
      %v4142 = vpack.c.b16 %v4105, %v4104
      %v4143 = vpack.c.b16 %v4107, %v4106
      %v4144 = vpack.c.b16 %v4109, %v4108
      %v4145 = vpack.c.b16 %v4111, %v4110
      %v4146 = vpack.c.b16 %v4113, %v4112
      %v4147 = vpack.c.b16 %v4115, %v4114
      %v4148 = vpack.c.b16 %v4117, %v4116
      %v4149 = vpack.c.b16 %v4119, %v4118
      %v4150 = vpack.c.b16 %v4121, %v4120
      %v4151 = vpack.c.b16 %v4123, %v4122
      %v4152 = vpack.c.b16 %v4125, %v4124
      %v4153 = vpack.c.b16 %v4127, %v4126
      %v4154 = vpack.c.b16 %v4129, %v4128
      %v4155 = vpack.c.b16 %v4131, %v4130
      %4180 = vmatpush.bf16.msra.mxu0 %v4139
      %4181 = vmatpush.bf16.msra.mxu0 %v4138
      %4182 = vmatpush.bf16.msra.mxu0 %v4137
      %4183 = vmatpush.bf16.msra.mxu0 %v4136
      %4184 = vmatpush.bf16.msra.mxu0 %v4135
      %4185 = vmatpush.bf16.msra.mxu0 %v4134
      %4186 = vmatpush.bf16.msra.mxu0 %v4133
      %4187 = vmatpush.bf16.msra.mxu0 %v4132
      %4188 = vmatmul.bf16.gmra.mxu0 %v3988
      %v4189 = vpop.f32.mrf.mxu0
      %v4190 = vadd.f32 %v3869, %v4189
      %v4191 = vpop.f32.mrf.mxu0
      %v4192 = vadd.f32 %v3871, %v4191
      %4193 = vmatmul.bf16.gmra.mxu0 %v3991
      %v4194 = vpop.f32.mrf.mxu0
      %v4195 = vadd.f32 %v3874, %v4194
      %v4196 = vpop.f32.mrf.mxu0
      %v4197 = vadd.f32 %v3876, %v4196
      %4198 = vmatmul.bf16.gmra.mxu0 %v3994
      %v4199 = vpop.f32.mrf.mxu0
      %v4200 = vadd.f32 %v3879, %v4199
      %v4201 = vpop.f32.mrf.mxu0
      %v4202 = vadd.f32 %v3881, %v4201
      %4203 = vmatmul.bf16.gmra.mxu0 %v3997
      %v4204 = vpop.f32.mrf.mxu0
      %v4205 = vadd.f32 %v3884, %v4204
      %v4206 = vpop.f32.mrf.mxu0
      %v4207 = vadd.f32 %v3886, %v4206
      %4208 = vmatmul.bf16.gmra.mxu0 %v4000
      %v4209 = vpop.f32.mrf.mxu0
      %v4210 = vadd.f32 %v3889, %v4209
      %v4211 = vpop.f32.mrf.mxu0
      %v4212 = vadd.f32 %v3891, %v4211
      %4213 = vmatmul.bf16.gmra.mxu0 %v4003
      %v4214 = vpop.f32.mrf.mxu0
      %v4215 = vadd.f32 %v3894, %v4214
      %v4216 = vpop.f32.mrf.mxu0
      %v4217 = vadd.f32 %v3896, %v4216
      %4218 = vmatmul.bf16.gmra.mxu0 %v4006
      %v4219 = vpop.f32.mrf.mxu0
      %v4220 = vadd.f32 %v3899, %v4219
      %v4221 = vpop.f32.mrf.mxu0
      %v4222 = vadd.f32 %v3901, %v4221
      %4223 = vmatmul.bf16.gmra.mxu0 %v4009
      %v4224 = vpop.f32.mrf.mxu0
      %v4225 = vadd.f32 %v3904, %v4224
      %v4226 = vpop.f32.mrf.mxu0
      %v4227 = vadd.f32 %v3906, %v4226
      %4228 = vdwg.mxu0
      %4229 = vmatpush.bf16.msra.mxu0 %v4147
      %4230 = vmatpush.bf16.msra.mxu0 %v4146
      %4231 = vmatpush.bf16.msra.mxu0 %v4145
      %4232 = vmatpush.bf16.msra.mxu0 %v4144
      %4233 = vmatpush.bf16.msra.mxu0 %v4143
      %4234 = vmatpush.bf16.msra.mxu0 %v4142
      %4235 = vmatpush.bf16.msra.mxu0 %v4141
      %4236 = vmatpush.bf16.msra.mxu0 %v4140
      %4237 = vmatmul.bf16.gmra.mxu0 %v3989
      %v4238 = vpop.f32.mrf.mxu0
      %v4239 = vadd.f32 %v4190, %v4238
      %v4240 = vpop.f32.mrf.mxu0
      %v4241 = vadd.f32 %v4192, %v4240
      %4242 = vmatmul.bf16.gmra.mxu0 %v3992
      %v4243 = vpop.f32.mrf.mxu0
      %v4244 = vadd.f32 %v4195, %v4243
      %v4245 = vpop.f32.mrf.mxu0
      %v4246 = vadd.f32 %v4197, %v4245
      %4247 = vmatmul.bf16.gmra.mxu0 %v3995
      %v4248 = vpop.f32.mrf.mxu0
      %v4249 = vadd.f32 %v4200, %v4248
      %v4250 = vpop.f32.mrf.mxu0
      %v4251 = vadd.f32 %v4202, %v4250
      %4252 = vmatmul.bf16.gmra.mxu0 %v3998
      %v4253 = vpop.f32.mrf.mxu0
      %v4254 = vadd.f32 %v4205, %v4253
      %v4255 = vpop.f32.mrf.mxu0
      %v4256 = vadd.f32 %v4207, %v4255
      %4257 = vmatmul.bf16.gmra.mxu0 %v4001
      %v4258 = vpop.f32.mrf.mxu0
      %v4259 = vadd.f32 %v4210, %v4258
      %v4260 = vpop.f32.mrf.mxu0
      %v4261 = vadd.f32 %v4212, %v4260
      %4262 = vmatmul.bf16.gmra.mxu0 %v4004
      %v4263 = vpop.f32.mrf.mxu0
      %v4264 = vadd.f32 %v4215, %v4263
      %v4265 = vpop.f32.mrf.mxu0
      %v4266 = vadd.f32 %v4217, %v4265
      %4267 = vmatmul.bf16.gmra.mxu0 %v4007
      %v4268 = vpop.f32.mrf.mxu0
      %v4269 = vadd.f32 %v4220, %v4268
      %v4270 = vpop.f32.mrf.mxu0
      %v4271 = vadd.f32 %v4222, %v4270
      %4272 = vmatmul.bf16.gmra.mxu0 %v4010
      %v4273 = vpop.f32.mrf.mxu0
      %v4274 = vadd.f32 %v4225, %v4273
      %v4275 = vpop.f32.mrf.mxu0
      %v4276 = vadd.f32 %v4227, %v4275
      %4277 = vdwg.mxu0
      %4278 = vmatpush.bf16.msra.mxu0 %v4155
      %4279 = vmatpush.bf16.msra.mxu0 %v4154
      %4280 = vmatpush.bf16.msra.mxu0 %v4153
      %4281 = vmatpush.bf16.msra.mxu0 %v4152
      %4282 = vmatpush.bf16.msra.mxu0 %v4151
      %4283 = vmatpush.bf16.msra.mxu0 %v4150
      %4284 = vmatpush.bf16.msra.mxu0 %v4149
      %4285 = vmatpush.bf16.msra.mxu0 %v4148
      %4286 = vmatmul.bf16.gmra.mxu0 %v3990
      %v4287 = vpop.f32.mrf.mxu0
      %v4288 = vadd.f32 %v4239, %v4287
      %v4289 = vpop.f32.mrf.mxu0
      %v4290 = vadd.f32 %v4241, %v4289
      %4291 = vmatmul.bf16.gmra.mxu0 %v3993
      %v4292 = vpop.f32.mrf.mxu0
      %v4293 = vadd.f32 %v4244, %v4292
      %v4294 = vpop.f32.mrf.mxu0
      %v4295 = vadd.f32 %v4246, %v4294
      %4296 = vmatmul.bf16.gmra.mxu0 %v3996
      %v4297 = vpop.f32.mrf.mxu0
      %v4298 = vadd.f32 %v4249, %v4297
      %v4299 = vpop.f32.mrf.mxu0
      %v4300 = vadd.f32 %v4251, %v4299
      %4301 = vmatmul.bf16.gmra.mxu0 %v3999
      %v4302 = vpop.f32.mrf.mxu0
      %v4303 = vadd.f32 %v4254, %v4302
      %v4304 = vpop.f32.mrf.mxu0
      %v4305 = vadd.f32 %v4256, %v4304
      %4306 = vmatmul.bf16.gmra.mxu0 %v4002
      %v4307 = vpop.f32.mrf.mxu0
      %v4308 = vadd.f32 %v4259, %v4307
      %v4309 = vpop.f32.mrf.mxu0
      %v4310 = vadd.f32 %v4261, %v4309
      %4311 = vmatmul.bf16.gmra.mxu0 %v4005
      %v4312 = vpop.f32.mrf.mxu0
      %v4313 = vadd.f32 %v4264, %v4312
      %v4314 = vpop.f32.mrf.mxu0
      %v4315 = vadd.f32 %v4266, %v4314
      %4316 = vmatmul.bf16.gmra.mxu0 %v4008
      %v4317 = vpop.f32.mrf.mxu0
      %v4318 = vadd.f32 %v4269, %v4317
      %v4319 = vpop.f32.mrf.mxu0
      %v4320 = vadd.f32 %v4271, %v4319
      %4321 = vmatmul.bf16.gmra.mxu0 %v4011
      %v4322 = vpop.f32.mrf.mxu0
      %v4323 = vadd.f32 %v4274, %v4322
      %v4324 = vpop.f32.mrf.mxu0
      %v4325 = vadd.f32 %v4276, %v4324
      %4326 = vdwg.mxu0
      %s4327 = scalar_lea.vmem [#allocation4], 48
      %v4328 = vld [vmem:[%s4327] sm:$0xff]
      %v4329 = vld [vmem:[%s4327 + $0x8] sm:$0xf]
      %v4330 = vld [vmem:[%s4327 + $0xc] sm:$0xff]
      %v4331 = vld [vmem:[%s4327 + $0x14] sm:$0xf]
      %v4332 = vld [vmem:[%s4327 + $0x18] sm:$0xff]
      %v4333 = vld [vmem:[%s4327 + $0x20] sm:$0xf]
      %v4334 = vld [vmem:[%s4327 + $0x24] sm:$0xff]
      %v4335 = vld [vmem:[%s4327 + $0x2c] sm:$0xf]
      %v4336 = vld [vmem:[%s4327 + $0x30] sm:$0xff]
      %v4337 = vld [vmem:[%s4327 + $0x38] sm:$0xf]
      %v4338 = vld [vmem:[%s4327 + $0x3c] sm:$0xff]
      %v4339 = vld [vmem:[%s4327 + $0x44] sm:$0xf]
      %v4340 = vld [vmem:[%s4327 + $0x48] sm:$0xff]
      %v4341 = vld [vmem:[%s4327 + $0x50] sm:$0xf]
      %v4342 = vld [vmem:[%s4327 + $0x54] sm:$0xff]
      %v4343 = vld [vmem:[%s4327 + $0x5c] sm:$0xf]
      %v4344 = vld [vmem:[%s4327 + $0x60] sm:$0xff]
      %v4345 = vld [vmem:[%s4327 + $0x68] sm:$0xf]
      %v4346 = vld [vmem:[%s4327 + $0x6c] sm:$0xff]
      %v4347 = vld [vmem:[%s4327 + $0x74] sm:$0xf]
      %v4348 = vld [vmem:[%s4327 + $0x78] sm:$0xff]
      %v4349 = vld [vmem:[%s4327 + $0x80] sm:$0xf]
      %v4350 = vld [vmem:[%s4327 + $0x84] sm:$0xff]
      %v4351 = vld [vmem:[%s4327 + $0x8c] sm:$0xf]
      %v4352 = vld [vmem:[%s4327 + $0x90] sm:$0xff]
      %v4353 = vld [vmem:[%s4327 + $0x98] sm:$0xf]
      %v4354 = vld [vmem:[%s4327 + $0x9c] sm:$0xff]
      %v4355 = vld [vmem:[%s4327 + $0xa4] sm:$0xf]
      %v4356 = vld [vmem:[%s4327 + $0xa8] sm:$0xff]
      %v4357 = vld [vmem:[%s4327 + $0xb0] sm:$0xf]
      %v4358 = vld [vmem:[%s4327 + $0xb4] sm:$0xff]
      %v4359 = vld [vmem:[%s4327 + $0xbc] sm:$0xf]
      %s4360 = scalar_lea.vmem %s3, 384
      %v4361 = vld [vmem:[%s4360] sm:$0xf]
      %v4362 = vld [vmem:[%s4360 + $0x4] sm:$0xf]
      %v4363 = vld [vmem:[%s4360 + $0x8] sm:$0xf]
      %v4364 = vld [vmem:[%s4360 + $0xc] sm:$0xf]
      %v4365 = vld [vmem:[%s4360 + $0x10] sm:$0xf]
      %v4366 = vld [vmem:[%s4360 + $0x14] sm:$0xf]
      %v4367 = vld [vmem:[%s4360 + $0x18] sm:$0xf]
      %v4368 = vld [vmem:[%s4360 + $0x1c] sm:$0xf]
      %v4369 = vld [vmem:[%s4360 + $0x20] sm:$0xf]
      %v4370 = vld [vmem:[%s4360 + $0x24] sm:$0xf]
      %v4371 = vld [vmem:[%s4360 + $0x28] sm:$0xf]
      %v4372 = vld [vmem:[%s4360 + $0x2c] sm:$0xf]
      %v4373 = vld [vmem:[%s4360 + $0x30] sm:$0xf]
      %v4374 = vld [vmem:[%s4360 + $0x34] sm:$0xf]
      %v4375 = vld [vmem:[%s4360 + $0x38] sm:$0xf]
      %v4376 = vld [vmem:[%s4360 + $0x3c] sm:$0xf]
      %v4377 = vld [vmem:[%s4360 + $0x40] sm:$0xf]
      %v4378 = vld [vmem:[%s4360 + $0x44] sm:$0xf]
      %v4379 = vld [vmem:[%s4360 + $0x48] sm:$0xf]
      %v4380 = vld [vmem:[%s4360 + $0x4c] sm:$0xf]
      %v4381 = vld [vmem:[%s4360 + $0x50] sm:$0xf]
      %v4382 = vld [vmem:[%s4360 + $0x54] sm:$0xf]
      %v4383 = vld [vmem:[%s4360 + $0x58] sm:$0xf]
      %v4384 = vld [vmem:[%s4360 + $0x5c] sm:$0xf]
      %v4385 = vld [vmem:[%s4360 + $0x60] sm:$0xf]
      %v4386 = vld [vmem:[%s4360 + $0x64] sm:$0xf]
      %v4387 = vld [vmem:[%s4360 + $0x68] sm:$0xf]
      %v4388 = vld [vmem:[%s4360 + $0x6c] sm:$0xf]
      %v4389 = vld [vmem:[%s4360 + $0x70] sm:$0xf]
      %v4390 = vld [vmem:[%s4360 + $0x74] sm:$0xf]
      %v4391 = vld [vmem:[%s4360 + $0x78] sm:$0xf]
      %v4392 = vld [vmem:[%s4360 + $0x7c] sm:$0xf]
      %v4393 = vld [vmem:[%s4360 + $0x80] sm:$0xf]
      %v4394 = vld [vmem:[%s4360 + $0x84] sm:$0xf]
      %v4395 = vld [vmem:[%s4360 + $0x88] sm:$0xf]
      %v4396 = vld [vmem:[%s4360 + $0x8c] sm:$0xf]
      %v4397 = vld [vmem:[%s4360 + $0x90] sm:$0xf]
      %v4398 = vld [vmem:[%s4360 + $0x94] sm:$0xf]
      %v4399 = vld [vmem:[%s4360 + $0x98] sm:$0xf]
      %v4400 = vld [vmem:[%s4360 + $0x9c] sm:$0xf]
      %v4401 = vld [vmem:[%s4360 + $0xa0] sm:$0xf]
      %v4402 = vld [vmem:[%s4360 + $0xa4] sm:$0xf]
      %v4403 = vld [vmem:[%s4360 + $0xa8] sm:$0xf]
      %v4404 = vld [vmem:[%s4360 + $0xac] sm:$0xf]
      %v4405 = vld [vmem:[%s4360 + $0xb0] sm:$0xf]
      %v4406 = vld [vmem:[%s4360 + $0xb4] sm:$0xf]
      %v4407 = vld [vmem:[%s4360 + $0xb8] sm:$0xf]
      %v4408 = vld [vmem:[%s4360 + $0xbc] sm:$0xf]
      %v4441 = vunpack.c.l.b16 %v4328
      %v4442 = vunpack.c.h.b16 %v4328
      %v4443 = vunpack.c.l.b16 %v4329
      %v4444 = vunpack.c.l.b16 %v4330
      %v4445 = vunpack.c.h.b16 %v4330
      %v4446 = vunpack.c.l.b16 %v4331
      %v4447 = vunpack.c.l.b16 %v4332
      %v4448 = vunpack.c.h.b16 %v4332
      %v4449 = vunpack.c.l.b16 %v4333
      %v4450 = vunpack.c.l.b16 %v4334
      %v4451 = vunpack.c.h.b16 %v4334
      %v4452 = vunpack.c.l.b16 %v4335
      %v4453 = vunpack.c.l.b16 %v4336
      %v4454 = vunpack.c.h.b16 %v4336
      %v4455 = vunpack.c.l.b16 %v4337
      %v4456 = vunpack.c.l.b16 %v4338
      %v4457 = vunpack.c.h.b16 %v4338
      %v4458 = vunpack.c.l.b16 %v4339
      %v4459 = vunpack.c.l.b16 %v4340
      %v4460 = vunpack.c.h.b16 %v4340
      %v4461 = vunpack.c.l.b16 %v4341
      %v4462 = vunpack.c.l.b16 %v4342
      %v4463 = vunpack.c.h.b16 %v4342
      %v4464 = vunpack.c.l.b16 %v4343
      %v4465 = vunpack.c.l.b16 %v4344
      %v4466 = vunpack.c.h.b16 %v4344
      %v4467 = vunpack.c.l.b16 %v4345
      %v4468 = vunpack.c.l.b16 %v4346
      %v4469 = vunpack.c.h.b16 %v4346
      %v4470 = vunpack.c.l.b16 %v4347
      %v4471 = vunpack.c.l.b16 %v4348
      %v4472 = vunpack.c.h.b16 %v4348
      %v4473 = vunpack.c.l.b16 %v4349
      %v4474 = vunpack.c.l.b16 %v4350
      %v4475 = vunpack.c.h.b16 %v4350
      %v4476 = vunpack.c.l.b16 %v4351
      %v4477 = vunpack.c.l.b16 %v4352
      %v4478 = vunpack.c.h.b16 %v4352
      %v4479 = vunpack.c.l.b16 %v4353
      %v4480 = vunpack.c.l.b16 %v4354
      %v4481 = vunpack.c.h.b16 %v4354
      %v4482 = vunpack.c.l.b16 %v4355
      %v4483 = vunpack.c.l.b16 %v4356
      %v4484 = vunpack.c.h.b16 %v4356
      %v4485 = vunpack.c.l.b16 %v4357
      %v4486 = vunpack.c.l.b16 %v4358
      %v4487 = vunpack.c.h.b16 %v4358
      %v4488 = vunpack.c.l.b16 %v4359
      %v4489 = vpack.c.b16 %v4444, %v4441
      %v4490 = vpack.c.b16 %v4445, %v4442
      %v4491 = vpack.c.b16 %v4446, %v4443
      %v4492 = vpack.c.b16 %v4450, %v4447
      %v4493 = vpack.c.b16 %v4451, %v4448
      %v4494 = vpack.c.b16 %v4452, %v4449
      %v4495 = vpack.c.b16 %v4456, %v4453
      %v4496 = vpack.c.b16 %v4457, %v4454
      %v4497 = vpack.c.b16 %v4458, %v4455
      %v4498 = vpack.c.b16 %v4462, %v4459
      %v4499 = vpack.c.b16 %v4463, %v4460
      %v4500 = vpack.c.b16 %v4464, %v4461
      %v4501 = vpack.c.b16 %v4468, %v4465
      %v4502 = vpack.c.b16 %v4469, %v4466
      %v4503 = vpack.c.b16 %v4470, %v4467
      %v4504 = vpack.c.b16 %v4474, %v4471
      %v4505 = vpack.c.b16 %v4475, %v4472
      %v4506 = vpack.c.b16 %v4476, %v4473
      %v4507 = vpack.c.b16 %v4480, %v4477
      %v4508 = vpack.c.b16 %v4481, %v4478
      %v4509 = vpack.c.b16 %v4482, %v4479
      %v4510 = vpack.c.b16 %v4486, %v4483
      %v4511 = vpack.c.b16 %v4487, %v4484
      %v4512 = vpack.c.b16 %v4488, %v4485
      %v4585 = vunpack.c.l.b16 %v4361
      %v4586 = vunpack.c.l.b16 %v4362
      %v4587 = vunpack.c.l.b16 %v4363
      %v4588 = vunpack.c.l.b16 %v4364
      %v4589 = vunpack.c.l.b16 %v4365
      %v4590 = vunpack.c.l.b16 %v4366
      %v4591 = vunpack.c.l.b16 %v4367
      %v4592 = vunpack.c.l.b16 %v4368
      %v4593 = vunpack.c.l.b16 %v4369
      %v4594 = vunpack.c.l.b16 %v4370
      %v4595 = vunpack.c.l.b16 %v4371
      %v4596 = vunpack.c.l.b16 %v4372
      %v4597 = vunpack.c.l.b16 %v4373
      %v4598 = vunpack.c.l.b16 %v4374
      %v4599 = vunpack.c.l.b16 %v4375
      %v4600 = vunpack.c.l.b16 %v4376
      %v4601 = vunpack.c.l.b16 %v4377
      %v4602 = vunpack.c.l.b16 %v4378
      %v4603 = vunpack.c.l.b16 %v4379
      %v4604 = vunpack.c.l.b16 %v4380
      %v4605 = vunpack.c.l.b16 %v4381
      %v4606 = vunpack.c.l.b16 %v4382
      %v4607 = vunpack.c.l.b16 %v4383
      %v4608 = vunpack.c.l.b16 %v4384
      %v4609 = vunpack.c.l.b16 %v4385
      %v4610 = vunpack.c.l.b16 %v4386
      %v4611 = vunpack.c.l.b16 %v4387
      %v4612 = vunpack.c.l.b16 %v4388
      %v4613 = vunpack.c.l.b16 %v4389
      %v4614 = vunpack.c.l.b16 %v4390
      %v4615 = vunpack.c.l.b16 %v4391
      %v4616 = vunpack.c.l.b16 %v4392
      %v4617 = vunpack.c.l.b16 %v4393
      %v4618 = vunpack.c.l.b16 %v4394
      %v4619 = vunpack.c.l.b16 %v4395
      %v4620 = vunpack.c.l.b16 %v4396
      %v4621 = vunpack.c.l.b16 %v4397
      %v4622 = vunpack.c.l.b16 %v4398
      %v4623 = vunpack.c.l.b16 %v4399
      %v4624 = vunpack.c.l.b16 %v4400
      %v4625 = vunpack.c.l.b16 %v4401
      %v4626 = vunpack.c.l.b16 %v4402
      %v4627 = vunpack.c.l.b16 %v4403
      %v4628 = vunpack.c.l.b16 %v4404
      %v4629 = vunpack.c.l.b16 %v4405
      %v4630 = vunpack.c.l.b16 %v4406
      %v4631 = vunpack.c.l.b16 %v4407
      %v4632 = vunpack.c.l.b16 %v4408
      %v4633 = vpack.c.b16 %v4586, %v4585
      %v4634 = vpack.c.b16 %v4588, %v4587
      %v4635 = vpack.c.b16 %v4590, %v4589
      %v4636 = vpack.c.b16 %v4592, %v4591
      %v4637 = vpack.c.b16 %v4594, %v4593
      %v4638 = vpack.c.b16 %v4596, %v4595
      %v4639 = vpack.c.b16 %v4598, %v4597
      %v4640 = vpack.c.b16 %v4600, %v4599
      %v4641 = vpack.c.b16 %v4602, %v4601
      %v4642 = vpack.c.b16 %v4604, %v4603
      %v4643 = vpack.c.b16 %v4606, %v4605
      %v4644 = vpack.c.b16 %v4608, %v4607
      %v4645 = vpack.c.b16 %v4610, %v4609
      %v4646 = vpack.c.b16 %v4612, %v4611
      %v4647 = vpack.c.b16 %v4614, %v4613
      %v4648 = vpack.c.b16 %v4616, %v4615
      %v4649 = vpack.c.b16 %v4618, %v4617
      %v4650 = vpack.c.b16 %v4620, %v4619
      %v4651 = vpack.c.b16 %v4622, %v4621
      %v4652 = vpack.c.b16 %v4624, %v4623
      %v4653 = vpack.c.b16 %v4626, %v4625
      %v4654 = vpack.c.b16 %v4628, %v4627
      %v4655 = vpack.c.b16 %v4630, %v4629
      %v4656 = vpack.c.b16 %v4632, %v4631
      %4681 = vmatpush.bf16.msra.mxu0 %v4640
      %4682 = vmatpush.bf16.msra.mxu0 %v4639
      %4683 = vmatpush.bf16.msra.mxu0 %v4638
      %4684 = vmatpush.bf16.msra.mxu0 %v4637
      %4685 = vmatpush.bf16.msra.mxu0 %v4636
      %4686 = vmatpush.bf16.msra.mxu0 %v4635
      %4687 = vmatpush.bf16.msra.mxu0 %v4634
      %4688 = vmatpush.bf16.msra.mxu0 %v4633
      %4689 = vmatmul.bf16.gmra.mxu0 %v4489
      %v4690 = vpop.f32.mrf.mxu0
      %v4691 = vadd.f32 0.0, %v4690
      %v4692 = vpop.f32.mrf.mxu0
      %v4693 = vadd.f32 0.0, %v4692
      %4694 = vmatmul.bf16.gmra.mxu0 %v4492
      %v4695 = vpop.f32.mrf.mxu0
      %v4696 = vadd.f32 0.0, %v4695
      %v4697 = vpop.f32.mrf.mxu0
      %v4698 = vadd.f32 0.0, %v4697
      %4699 = vmatmul.bf16.gmra.mxu0 %v4495
      %v4700 = vpop.f32.mrf.mxu0
      %v4701 = vadd.f32 0.0, %v4700
      %v4702 = vpop.f32.mrf.mxu0
      %v4703 = vadd.f32 0.0, %v4702
      %4704 = vmatmul.bf16.gmra.mxu0 %v4498
      %v4705 = vpop.f32.mrf.mxu0
      %v4706 = vadd.f32 0.0, %v4705
      %v4707 = vpop.f32.mrf.mxu0
      %v4708 = vadd.f32 0.0, %v4707
      %4709 = vmatmul.bf16.gmra.mxu0 %v4501
      %v4710 = vpop.f32.mrf.mxu0
      %v4711 = vadd.f32 0.0, %v4710
      %v4712 = vpop.f32.mrf.mxu0
      %v4713 = vadd.f32 0.0, %v4712
      %4714 = vmatmul.bf16.gmra.mxu0 %v4504
      %v4715 = vpop.f32.mrf.mxu0
      %v4716 = vadd.f32 0.0, %v4715
      %v4717 = vpop.f32.mrf.mxu0
      %v4718 = vadd.f32 0.0, %v4717
      %4719 = vmatmul.bf16.gmra.mxu0 %v4507
      %v4720 = vpop.f32.mrf.mxu0
      %v4721 = vadd.f32 0.0, %v4720
      %v4722 = vpop.f32.mrf.mxu0
      %v4723 = vadd.f32 0.0, %v4722
      %4724 = vmatmul.bf16.gmra.mxu0 %v4510
      %v4725 = vpop.f32.mrf.mxu0
      %v4726 = vadd.f32 0.0, %v4725
      %v4727 = vpop.f32.mrf.mxu0
      %v4728 = vadd.f32 0.0, %v4727
      %4729 = vdwg.mxu0
      %4730 = vmatpush.bf16.msra.mxu0 %v4648
      %4731 = vmatpush.bf16.msra.mxu0 %v4647
      %4732 = vmatpush.bf16.msra.mxu0 %v4646
      %4733 = vmatpush.bf16.msra.mxu0 %v4645
      %4734 = vmatpush.bf16.msra.mxu0 %v4644
      %4735 = vmatpush.bf16.msra.mxu0 %v4643
      %4736 = vmatpush.bf16.msra.mxu0 %v4642
      %4737 = vmatpush.bf16.msra.mxu0 %v4641
      %4738 = vmatmul.bf16.gmra.mxu0 %v4490
      %v4739 = vpop.f32.mrf.mxu0
      %v4740 = vadd.f32 %v4691, %v4739
      %v4741 = vpop.f32.mrf.mxu0
      %v4742 = vadd.f32 %v4693, %v4741
      %4743 = vmatmul.bf16.gmra.mxu0 %v4493
      %v4744 = vpop.f32.mrf.mxu0
      %v4745 = vadd.f32 %v4696, %v4744
      %v4746 = vpop.f32.mrf.mxu0
      %v4747 = vadd.f32 %v4698, %v4746
      %4748 = vmatmul.bf16.gmra.mxu0 %v4496
      %v4749 = vpop.f32.mrf.mxu0
      %v4750 = vadd.f32 %v4701, %v4749
      %v4751 = vpop.f32.mrf.mxu0
      %v4752 = vadd.f32 %v4703, %v4751
      %4753 = vmatmul.bf16.gmra.mxu0 %v4499
      %v4754 = vpop.f32.mrf.mxu0
      %v4755 = vadd.f32 %v4706, %v4754
      %v4756 = vpop.f32.mrf.mxu0
      %v4757 = vadd.f32 %v4708, %v4756
      %4758 = vmatmul.bf16.gmra.mxu0 %v4502
      %v4759 = vpop.f32.mrf.mxu0
      %v4760 = vadd.f32 %v4711, %v4759
      %v4761 = vpop.f32.mrf.mxu0
      %v4762 = vadd.f32 %v4713, %v4761
      %4763 = vmatmul.bf16.gmra.mxu0 %v4505
      %v4764 = vpop.f32.mrf.mxu0
      %v4765 = vadd.f32 %v4716, %v4764
      %v4766 = vpop.f32.mrf.mxu0
      %v4767 = vadd.f32 %v4718, %v4766
      %4768 = vmatmul.bf16.gmra.mxu0 %v4508
      %v4769 = vpop.f32.mrf.mxu0
      %v4770 = vadd.f32 %v4721, %v4769
      %v4771 = vpop.f32.mrf.mxu0
      %v4772 = vadd.f32 %v4723, %v4771
      %4773 = vmatmul.bf16.gmra.mxu0 %v4511
      %v4774 = vpop.f32.mrf.mxu0
      %v4775 = vadd.f32 %v4726, %v4774
      %v4776 = vpop.f32.mrf.mxu0
      %v4777 = vadd.f32 %v4728, %v4776
      %4778 = vdwg.mxu0
      %4779 = vmatpush.bf16.msra.mxu0 %v4656
      %4780 = vmatpush.bf16.msra.mxu0 %v4655
      %4781 = vmatpush.bf16.msra.mxu0 %v4654
      %4782 = vmatpush.bf16.msra.mxu0 %v4653
      %4783 = vmatpush.bf16.msra.mxu0 %v4652
      %4784 = vmatpush.bf16.msra.mxu0 %v4651
      %4785 = vmatpush.bf16.msra.mxu0 %v4650
      %4786 = vmatpush.bf16.msra.mxu0 %v4649
      %4787 = vmatmul.bf16.gmra.mxu0 %v4491
      %v4788 = vpop.f32.mrf.mxu0
      %v4789 = vadd.f32 %v4740, %v4788
      %v4790 = vpop.f32.mrf.mxu0
      %v4791 = vadd.f32 %v4742, %v4790
      %4792 = vmatmul.bf16.gmra.mxu0 %v4494
      %v4793 = vpop.f32.mrf.mxu0
      %v4794 = vadd.f32 %v4745, %v4793
      %v4795 = vpop.f32.mrf.mxu0
      %v4796 = vadd.f32 %v4747, %v4795
      %4797 = vmatmul.bf16.gmra.mxu0 %v4497
      %v4798 = vpop.f32.mrf.mxu0
      %v4799 = vadd.f32 %v4750, %v4798
      %v4800 = vpop.f32.mrf.mxu0
      %v4801 = vadd.f32 %v4752, %v4800
      %4802 = vmatmul.bf16.gmra.mxu0 %v4500
      %v4803 = vpop.f32.mrf.mxu0
      %v4804 = vadd.f32 %v4755, %v4803
      %v4805 = vpop.f32.mrf.mxu0
      %v4806 = vadd.f32 %v4757, %v4805
      %4807 = vmatmul.bf16.gmra.mxu0 %v4503
      %v4808 = vpop.f32.mrf.mxu0
      %v4809 = vadd.f32 %v4760, %v4808
      %v4810 = vpop.f32.mrf.mxu0
      %v4811 = vadd.f32 %v4762, %v4810
      %4812 = vmatmul.bf16.gmra.mxu0 %v4506
      %v4813 = vpop.f32.mrf.mxu0
      %v4814 = vadd.f32 %v4765, %v4813
      %v4815 = vpop.f32.mrf.mxu0
      %v4816 = vadd.f32 %v4767, %v4815
      %4817 = vmatmul.bf16.gmra.mxu0 %v4509
      %v4818 = vpop.f32.mrf.mxu0
      %v4819 = vadd.f32 %v4770, %v4818
      %v4820 = vpop.f32.mrf.mxu0
      %v4821 = vadd.f32 %v4772, %v4820
      %4822 = vmatmul.bf16.gmra.mxu0 %v4512
      %v4823 = vpop.f32.mrf.mxu0
      %v4824 = vadd.f32 %v4775, %v4823
      %v4825 = vpop.f32.mrf.mxu0
      %v4826 = vadd.f32 %v4777, %v4825
      %4827 = vdwg.mxu0
      %v4828 = vadd.f32 %v4288, %v4789
      %v4829 = vadd.f32 %v4290, %v4791
      %v4830 = vadd.f32 %v4293, %v4794
      %v4831 = vadd.f32 %v4295, %v4796
      %v4832 = vadd.f32 %v4298, %v4799
      %v4833 = vadd.f32 %v4300, %v4801
      %v4834 = vadd.f32 %v4303, %v4804
      %v4835 = vadd.f32 %v4305, %v4806
      %v4836 = vadd.f32 %v4308, %v4809
      %v4837 = vadd.f32 %v4310, %v4811
      %v4838 = vadd.f32 %v4313, %v4814
      %v4839 = vadd.f32 %v4315, %v4816
      %v4840 = vadd.f32 %v4318, %v4819
      %v4841 = vadd.f32 %v4320, %v4821
      %v4842 = vadd.f32 %v4323, %v4824
      %v4843 = vadd.f32 %v4325, %v4826
      %v4844 = vld [vmem:[%s4] sm:$0x1]
      %v4846 = vperm.slane %v4844, 0
      %v4848 = vadd.f32 %v4828, %v4846
      %v4849 = vadd.f32 %v4829, %v4846
      %v4850 = vadd.f32 %v4830, %v4846
      %v4851 = vadd.f32 %v4831, %v4846
      %v4852 = vadd.f32 %v4832, %v4846
      %v4853 = vadd.f32 %v4833, %v4846
      %v4854 = vadd.f32 %v4834, %v4846
      %v4855 = vadd.f32 %v4835, %v4846
      %v4856 = vadd.f32 %v4836, %v4846
      %v4857 = vadd.f32 %v4837, %v4846
      %v4858 = vadd.f32 %v4838, %v4846
      %v4859 = vadd.f32 %v4839, %v4846
      %v4860 = vadd.f32 %v4840, %v4846
      %v4861 = vadd.f32 %v4841, %v4846
      %v4862 = vadd.f32 %v4842, %v4846
      %v4863 = vadd.f32 %v4843, %v4846
      %v4864 = vmax.f32 %v4848, 0.0
      %v4865 = vmax.f32 %v4849, 0.0
      %v4866 = vmax.f32 %v4850, 0.0
      %v4867 = vmax.f32 %v4851, 0.0
      %v4868 = vmax.f32 %v4852, 0.0
      %v4869 = vmax.f32 %v4853, 0.0
      %v4870 = vmax.f32 %v4854, 0.0
      %v4871 = vmax.f32 %v4855, 0.0
      %v4872 = vmax.f32 %v4856, 0.0
      %v4873 = vmax.f32 %v4857, 0.0
      %v4874 = vmax.f32 %v4858, 0.0
      %v4875 = vmax.f32 %v4859, 0.0
      %v4876 = vmax.f32 %v4860, 0.0
      %v4877 = vmax.f32 %v4861, 0.0
      %v4878 = vmax.f32 %v4862, 0.0
      %v4879 = vmax.f32 %v4863, 0.0
      %4880 = vst [vmem:[%s262] sm:$0xff] %v4864
      %4881 = vst [vmem:[%s262 + $0x8] sm:$0xff] %v4865
      %4882 = vst [vmem:[%s262 + $0x10] sm:$0xff] %v4866
      %4883 = vst [vmem:[%s262 + $0x18] sm:$0xff] %v4867
      %4884 = vst [vmem:[%s262 + $0x20] sm:$0xff] %v4868
      %4885 = vst [vmem:[%s262 + $0x28] sm:$0xff] %v4869
      %4886 = vst [vmem:[%s262 + $0x30] sm:$0xff] %v4870
      %4887 = vst [vmem:[%s262 + $0x38] sm:$0xff] %v4871
      %4888 = vst [vmem:[%s262 + $0x40] sm:$0xff] %v4872
      %4889 = vst [vmem:[%s262 + $0x48] sm:$0xff] %v4873
      %4890 = vst [vmem:[%s262 + $0x50] sm:$0xff] %v4874
      %4891 = vst [vmem:[%s262 + $0x58] sm:$0xff] %v4875
      %4892 = vst [vmem:[%s262 + $0x60] sm:$0xff] %v4876
      %4893 = vst [vmem:[%s262 + $0x68] sm:$0xff] %v4877
      %4894 = vst [vmem:[%s262 + $0x70] sm:$0xff] %v4878
      %4895 = vst [vmem:[%s262 + $0x78] sm:$0xff] %v4879
      %s4896 = smul.u32 8, %s21
      %p4897 = scmp.lt.s32.totalorder %s20, 1
      %s4898 = scalar_select %p4897, %s20, 1
      %p4899 = scmp.lt.s32.totalorder %s4896, 15
      %s4900 = scalar_select %p4899, %s4896, 15
      %s4901 = smul.addr %s4900, 2
      %s4902 = smul.addr %s4898, 32
      %s4903 = sadd.s32 %s4901, %s4902
      %s4904 = smul.addr %s4903, 8
      %s4905 = scalar_lea.vmem %s5, %s4904
      // Predicated region
      $region41: #{conv_block_forward.1} parent=39 // pred_check
        %p4906 = pneg %p160
      $region42: #{conv_block_forward.1} parent=39 // pred_check_branch
        %4908 = sbr.rel (%p4906) target = $region44
      $region43: #{conv_block_forward.1} parent=39 // pred_region
        %s4909 = smul.u32 8, %s21
      $region44: #{conv_block_forward.1} parent=39 // pred_fallthru
        _
    $region40: #{conv_block_forward.1} parent=5 // pred_fallthru
      _
    %p4910 = scmp.le.s32.totalorder 2, %s11
    // Predicated region
    $region45: #{conv_block_forward.1} parent=5 // pred_check
      %p4911 = pneg %p4910
    $region46: #{conv_block_forward.1} parent=5 // pred_check_branch
      %4913 = sbr.rel (%p4911) target = $region48
    $region47: #{conv_block_forward.1} parent=5 // pred_region
      %s4914 = ssub.s32 %s11, 2
      // Predicated region
      $region49: #{conv_block_forward.1} parent=47 // pred_check
        %p4915 = pneg %p166
      $region50: #{conv_block_forward.1} parent=47 // pred_check_branch
        %4917 = sbr.rel (%p4915) target = $region52
      $region51: #{conv_block_forward.1} parent=47 // pred_region
        %s4918 = smul.u32 8, %s23
        %p4919 = scmp.lt.s32.totalorder %s22, 1
        %s4920 = scalar_select %p4919, %s22, 1
        %p4921 = scmp.lt.s32.totalorder %s4918, 15
        %s4922 = scalar_select %p4921, %s4918, 15
        %s4923 = smul.addr %s4922, 2
        %s4924 = smul.addr %s4920, 32
        %s4925 = sadd.s32 %s4923, %s4924
        %s4926 = smul.addr %s4925, 8
        %s4927 = scalar_lea.vmem %s5, %s4926
      $region52: #{conv_block_forward.1} parent=47 // pred_fallthru
        _
    $region48: #{conv_block_forward.1} parent=5 // pred_fallthru
      _
  $region6: #{conv_block_forward.1} parent=0 // loop_footer
    %s15 = sadd.s32 1, %s11
  $region7: #{conv_block_forward.1} parent=0 // loop_footer_branch
    %10 = sbr.rel target = $region3
  $region8: #{conv_block_forward.1} parent=0 // loop_exit
    _

</llo_original>
